<compile_context>
chip_gen: v7x
topology: tpu7x:2x2x1
jax: 0.10.0
libtpu: 0.0.40
codegen_flags: <defaults>
</compile_context>

<pallas_src>
import functools
import math

import jax
import jax.numpy as jnp
from jax.experimental import pallas as pl
from jax.experimental.pallas import tpu as pltpu

_LANE = 128
_SUBLANE = 8


def _round_up(x, m):
    return (x + m - 1) // m * m


def _cdiv(a, b):
    return -(-a // b)


def _choose_tb(batch, tb_request, min_steps):
    """Pick a batch tile: multiple of 8, <= padded batch, and (when the batch
    is large enough) small enough to leave >= min_steps grid steps so v7x can
    shard the grid across its two TensorCores."""
    b8 = _round_up(batch, _SUBLANE)
    tb = max(_SUBLANE, min(_round_up(tb_request, _SUBLANE), b8))
    if min_steps > 1 and _cdiv(b8, tb) < min_steps and b8 >= min_steps * _SUBLANE:
        tb = _round_up(_cdiv(b8, min_steps), _SUBLANE)
    return tb


def _autoencoder_kernel(*refs, activations, compute_dtype):
    """refs = (x_ref, w0, w1, ..., w_{L-1}, biases_ref, out_ref).

    x is loaded unpadded and cast to the MXU compute dtype in-kernel.
    Weights are pre-padded (lane-dense) in compute_dtype; biases live in one
    packed f32 [n_layers, 128] block.  Matmuls accumulate in f32; the
    bias/activation epilogue stays in f32; the final store is lane-dense bf16.
    """
    x_ref = refs[0]
    out_ref = refs[-1]
    b_ref = refs[-2]
    w_refs = refs[1:-2]
    n_layers = len(activations)
    assert len(w_refs) == n_layers

    h = x_ref[...].astype(compute_dtype)          # [tb, F] -> compute dtype
    for l in range(n_layers):
        w_ref = w_refs[l]                          # [in_pad, out_pad]
        fo = w_ref.shape[1]
        acc = jnp.dot(h, w_ref[...], preferred_element_type=jnp.float32)
        acc = acc + b_ref[l:l + 1, :fo]            # f32 bias row, broadcast add
        act = activations[l]
        if act == "relu":
            acc = jnp.maximum(acc, 0.0)
        elif act == "sigmoid":
            acc = jax.nn.sigmoid(acc)
        # act == "none": identity (embedding layer output)
        h = acc.astype(compute_dtype) if l + 1 < n_layers else acc
    out_ref[...] = h.astype(out_ref.dtype)


def prepare_params(params, weight_dtype=jnp.bfloat16):
    """One-time padding/packing of (W[in,out], b[1,out]) params.

    Layer 0 keeps its unpadded input dim (matches the unpadded x block); every
    output dim (and therefore every subsequent input dim) is zero-padded to a
    multiple of 128 lanes.  All biases are packed into a single
    [n_layers, max_out_pad] f32 array.
    """
    n = len(params)
    w_list = []
    fo_pads = []
    prev_out_pad = None
    for l, (w, _) in enumerate(params):
        fi, fo = w.shape
        fi_p = fi if l == 0 else _round_up(fi, _LANE)
        fo_p = _round_up(fo, _LANE)
        if l > 0:
            assert fi_p == prev_out_pad, "chained layer dims must match"
        w_p = jnp.zeros((fi_p, fo_p), weight_dtype).at[:fi, :fo].set(
            w.astype(weight_dtype))
        w_list.append(w_p)
        fo_pads.append(fo_p)
        prev_out_pad = fo_p

    pmax = max(fo_pads)
    biases = jnp.zeros((n, pmax), jnp.float32)
    for l, (w, b) in enumerate(params):
        biases = biases.at[l, :w.shape[1]].set(
            b.reshape(-1).astype(jnp.float32))
    return w_list, biases


def autoencoder_forward(x, prepared, activations, *, tb=512, min_grid_steps=2):
    """x: [B, inputsize] (any float dtype); prepared = prepare_params(params).

    Runs one fused Pallas kernel over batch tiles; the bf16 lane-padded output
    slab is sliced back to [B, inputsize] and cast to x.dtype.
    """
    w_list, biases = prepared
    B, F = x.shape
    compute_dtype = w_list[0].dtype
    f_out_pad = w_list[-1].shape[1]

    tb = _choose_tb(B, tb, min_grid_steps)
    B_pad = _round_up(B, tb)
    x_in = x if B_pad == B else jnp.zeros((B_pad, F), x.dtype).at[:B].set(x)
    grid = (B_pad // tb,)

    # Unpadded x block: last dim F equals the full array dim, so it is legal
    # even when F is not a multiple of 128; the lane pad lives only in the
    # (zero-padded) weights.
    in_specs = [pl.BlockSpec((tb, F), lambda i: (i, 0))]
    for w in w_list:
        fi_p, fo_p = w.shape
        # Constant index_map -> same VMEM block reused every grid step.
        in_specs.append(pl.BlockSpec((fi_p, fo_p), lambda i: (0, 0)))
    in_specs.append(pl.BlockSpec(biases.shape, lambda i: (0, 0)))

    total_flops = sum(2 * B_pad * w.shape[0] * w.shape[1] for w in w_list)
    bytes_accessed = (
        x_in.size * x_in.dtype.itemsize
        + sum(w.size * w.dtype.itemsize for w in w_list)
        + biases.size * biases.dtype.itemsize
        + B_pad * f_out_pad * jnp.dtype(compute_dtype).itemsize)
    cost = pl.CostEstimate(flops=total_flops,
                           transcendentals=B_pad * f_out_pad,  # final sigmoid
                           bytes_accessed=bytes_accessed)

    kernel = functools.partial(_autoencoder_kernel,
                               activations=tuple(activations),
                               compute_dtype=compute_dtype)

    out_pad = pl.pallas_call(
        kernel,
        out_shape=jax.ShapeDtypeStruct((B_pad, f_out_pad), compute_dtype),
        grid_spec=pltpu.PrefetchScalarGridSpec(
            num_scalar_prefetch=0,
            grid=grid,
            in_specs=in_specs,
            out_specs=pl.BlockSpec((tb, f_out_pad), lambda i: (i, 0)),
        ),
        compiler_params=pltpu.CompilerParams(
            dimension_semantics=("parallel",)),
        cost_estimate=cost,
    )(x_in, *w_list, biases)

    return out_pad[:B, :F].astype(x.dtype)


def build_autoencoder_params(key, inputsize, embedding_size, dims):
    """Mirror Autoencoder.__init__: dims gets embedding_size appended.

    Returns (params, activations) where params[l] = (W[in,out], b[1,out]) in
    forward order, and activations[l] in {"relu", "none", "sigmoid"}.
    """
    dims = list(dims) + [embedding_size]

    enc_sizes = [(inputsize, dims[0])]
    for i in range(len(dims) - 1):
        enc_sizes.append((dims[i], dims[i + 1]))
    dec_sizes = []
    for i in range(len(dims) - 1, 0, -1):
        dec_sizes.append((dims[i], dims[i - 1]))
    dec_sizes.append((dims[0], inputsize))
    layer_sizes = enc_sizes + dec_sizes

    activations = []
    for l in range(len(enc_sizes)):
        activations.append("relu" if l < len(enc_sizes) - 1 else "none")
    for l in range(len(dec_sizes)):
        activations.append("relu" if l < len(dec_sizes) - 1 else "sigmoid")

    params = []
    for (fan_in, fan_out) in layer_sizes:
        key, kw, kb = jax.random.split(key, 3)
        bound = 1.0 / math.sqrt(fan_in)  # PyTorch nn.Linear default init range
        w = jax.random.uniform(kw, (fan_in, fan_out), jnp.float32, -bound, bound)
        b = jax.random.uniform(kb, (1, fan_out), jnp.float32, -bound, bound)
        params.append((w, b))
    return params, activations


def _reference_forward_mixed(x, params, activations, weight_dtype):
    """Pure-JAX reference mirroring the kernel's precision choices exactly
    (bf16 MXU inputs, f32 accumulate/epilogue, bf16 output slab)."""
    n = len(params)
    h = x.astype(weight_dtype)
    for l, ((w, b), act) in enumerate(zip(params, activations)):
        acc = jnp.dot(h, w.astype(weight_dtype),
                      preferred_element_type=jnp.float32)
        acc = acc + b.astype(jnp.float32)
        if act == "relu":
            acc = jnp.maximum(acc, 0.0)
        elif act == "sigmoid":
            acc = jax.nn.sigmoid(acc)
        h = acc.astype(weight_dtype) if l + 1 < n else acc
    return h.astype(weight_dtype).astype(x.dtype)


def _reference_forward_f32(x, params, activations):
    h = x
    for (w, b), act in zip(params, activations):
        h = h @ w + b
        if act == "relu":
            h = jnp.maximum(h, 0.0)
        elif act == "sigmoid":
            h = jax.nn.sigmoid(h)
    return h


if __name__ == "__main__":
    inputsize = 32
    embedding_size = 8
    dims = [24, 16]          # module appends embedding_size -> [24, 16, 8]
    batch = 1024             # tb=512 -> grid (2,): both TCs on v7x, 1 pass each

    key = jax.random.PRNGKey(0)
    key, kx, kx2 = jax.random.split(key, 3)
    x = jax.random.uniform(kx, (batch, inputsize), jnp.float32)

    params, activations = build_autoencoder_params(
        key, inputsize, embedding_size, dims)
    prepared = prepare_params(params, weight_dtype=jnp.bfloat16)  # one-time prep

    fwd = jax.jit(functools.partial(autoencoder_forward,
                                    activations=activations, tb=512))
    out = jax.block_until_ready(fwd(x, prepared))
    assert out.shape == (batch, inputsize)
    assert out.dtype == x.dtype

    # Tight check vs. a reference doing the same bf16-MXU / f32-accumulate math.
    ref_mixed = _reference_forward_mixed(x, params, activations, jnp.bfloat16)
    assert jnp.allclose(out, ref_mixed, atol=5e-3), float(
        jnp.max(jnp.abs(out - ref_mixed)))

    # Loose sanity check vs. pure-f32 math (bounds the bf16 quantization error).
    ref_f32 = _reference_forward_f32(x, params, activations)
    assert jnp.allclose(out, ref_f32, atol=5e-2), float(
        jnp.max(jnp.abs(out - ref_f32)))

    # Exercise the ragged-batch path (batch not a multiple of the tile).
    x_small = jax.random.uniform(kx2, (100, inputsize), jnp.float32)
    out_small = jax.block_until_ready(fwd(x_small, prepared))
    ref_small = _reference_forward_mixed(x_small, params, activations,
                                         jnp.bfloat16)
    assert out_small.shape == (100, inputsize)
    assert jnp.allclose(out_small, ref_small, atol=5e-3), float(
        jnp.max(jnp.abs(out_small - ref_small)))

    print("KERNEL_OK")
</pallas_src>

<mosaic_0001>
module attributes {stable_mosaic.version = 11 : i64} {
  func.func @_autoencoder_kernel(%arg0: i32, %arg1: memref<512x32xf32, #tpu.memory_space<vmem>>, %arg2: memref<32x128xbf16, #tpu.memory_space<vmem>>, %arg3: memref<128x128xbf16, #tpu.memory_space<vmem>>, %arg4: memref<128x128xbf16, #tpu.memory_space<vmem>>, %arg5: memref<128x128xbf16, #tpu.memory_space<vmem>>, %arg6: memref<128x128xbf16, #tpu.memory_space<vmem>>, %arg7: memref<128x128xbf16, #tpu.memory_space<vmem>>, %arg8: memref<6x128xf32, #tpu.memory_space<vmem>>, %arg9: memref<512x128xbf16, #tpu.memory_space<vmem>>) attributes {dimension_semantics = [#tpu.dimension_semantics<parallel>], iteration_bounds = array<i64: 2>, scalar_prefetch = 0 : i64, scratch_operands = 0 : i64, tpu.core_type = #tpu.core_type<tc>, window_params = [{transform_indices = @transform_0, window_bounds = array<i64: 512, 32>}, {pipeline_mode = #tpu.pipeline_mode<synchronous>, transform_indices = @transform_1, window_bounds = array<i64: 32, 128>}, {pipeline_mode = #tpu.pipeline_mode<synchronous>, transform_indices = @transform_2, window_bounds = array<i64: 128, 128>}, {pipeline_mode = #tpu.pipeline_mode<synchronous>, transform_indices = @transform_3, window_bounds = array<i64: 128, 128>}, {pipeline_mode = #tpu.pipeline_mode<synchronous>, transform_indices = @transform_4, window_bounds = array<i64: 128, 128>}, {pipeline_mode = #tpu.pipeline_mode<synchronous>, transform_indices = @transform_5, window_bounds = array<i64: 128, 128>}, {pipeline_mode = #tpu.pipeline_mode<synchronous>, transform_indices = @transform_6, window_bounds = array<i64: 128, 128>}, {pipeline_mode = #tpu.pipeline_mode<synchronous>, transform_indices = @transform_7, window_bounds = array<i64: 6, 128>}, {transform_indices = @transform_8, window_bounds = array<i64: 512, 128>}]} {
    %c0 = arith.constant 0 : index
    %c0_0 = arith.constant 0 : index
    %0 = vector.load %arg1[%c0, %c0_0] : memref<512x32xf32, #tpu.memory_space<vmem>>, vector<512x32xf32>
    %1 = arith.truncf %0 : vector<512x32xf32> to vector<512x32xbf16>
    %c0_1 = arith.constant 0 : index
    %c0_2 = arith.constant 0 : index
    %2 = vector.load %arg2[%c0_1, %c0_2] : memref<32x128xbf16, #tpu.memory_space<vmem>>, vector<32x128xbf16>
    %cst = arith.constant dense<0.000000e+00> : vector<512x128xf32>
    %3 = tpu.matmul %1, %2, %cst {dimension_numbers = #tpu.dot_dimension_numbers<[1], [0], [0], [1], [0, 0, 1, 1], [], []>} : vector<512x32xbf16>, vector<32x128xbf16>, vector<512x128xf32> -> vector<512x128xf32>
    %c0_3 = arith.constant 0 : index
    %c0_4 = arith.constant 0 : index
    %4 = vector.load %arg8[%c0_3, %c0_4] : memref<6x128xf32, #tpu.memory_space<vmem>>, vector<1x128xf32>
    %5 = vector.broadcast %4 : vector<1x128xf32> to vector<512x128xf32>
    %6 = arith.addf %3, %5 : vector<512x128xf32>
    %cst_5 = arith.constant 0.000000e+00 : f32
    %7 = vector.broadcast %cst_5 : f32 to vector<512x128xf32>
    %8 = arith.maximumf %6, %7 : vector<512x128xf32>
    %9 = arith.truncf %8 : vector<512x128xf32> to vector<512x128xbf16>
    %c0_6 = arith.constant 0 : index
    %c0_7 = arith.constant 0 : index
    %10 = vector.load %arg3[%c0_6, %c0_7] : memref<128x128xbf16, #tpu.memory_space<vmem>>, vector<128x128xbf16>
    %cst_8 = arith.constant dense<0.000000e+00> : vector<512x128xf32>
    %11 = tpu.matmul %9, %10, %cst_8 {dimension_numbers = #tpu.dot_dimension_numbers<[1], [0], [0], [1], [0, 0, 1, 1], [], []>} : vector<512x128xbf16>, vector<128x128xbf16>, vector<512x128xf32> -> vector<512x128xf32>
    %c1 = arith.constant 1 : index
    %c0_9 = arith.constant 0 : index
    %12 = vector.load %arg8[%c1, %c0_9] : memref<6x128xf32, #tpu.memory_space<vmem>>, vector<1x128xf32>
    %13 = vector.broadcast %12 : vector<1x128xf32> to vector<512x128xf32>
    %14 = arith.addf %11, %13 : vector<512x128xf32>
    %cst_10 = arith.constant 0.000000e+00 : f32
    %15 = vector.broadcast %cst_10 : f32 to vector<512x128xf32>
    %16 = arith.maximumf %14, %15 : vector<512x128xf32>
    %17 = arith.truncf %16 : vector<512x128xf32> to vector<512x128xbf16>
    %c0_11 = arith.constant 0 : index
    %c0_12 = arith.constant 0 : index
    %18 = vector.load %arg4[%c0_11, %c0_12] : memref<128x128xbf16, #tpu.memory_space<vmem>>, vector<128x128xbf16>
    %cst_13 = arith.constant dense<0.000000e+00> : vector<512x128xf32>
    %19 = tpu.matmul %17, %18, %cst_13 {dimension_numbers = #tpu.dot_dimension_numbers<[1], [0], [0], [1], [0, 0, 1, 1], [], []>} : vector<512x128xbf16>, vector<128x128xbf16>, vector<512x128xf32> -> vector<512x128xf32>
    %c2 = arith.constant 2 : index
    %c0_14 = arith.constant 0 : index
    %20 = vector.load %arg8[%c2, %c0_14] : memref<6x128xf32, #tpu.memory_space<vmem>>, vector<1x128xf32>
    %21 = vector.broadcast %20 : vector<1x128xf32> to vector<512x128xf32>
    %22 = arith.addf %19, %21 : vector<512x128xf32>
    %23 = arith.truncf %22 : vector<512x128xf32> to vector<512x128xbf16>
    %c0_15 = arith.constant 0 : index
    %c0_16 = arith.constant 0 : index
    %24 = vector.load %arg5[%c0_15, %c0_16] : memref<128x128xbf16, #tpu.memory_space<vmem>>, vector<128x128xbf16>
    %cst_17 = arith.constant dense<0.000000e+00> : vector<512x128xf32>
    %25 = tpu.matmul %23, %24, %cst_17 {dimension_numbers = #tpu.dot_dimension_numbers<[1], [0], [0], [1], [0, 0, 1, 1], [], []>} : vector<512x128xbf16>, vector<128x128xbf16>, vector<512x128xf32> -> vector<512x128xf32>
    %c3 = arith.constant 3 : index
    %c0_18 = arith.constant 0 : index
    %26 = vector.load %arg8[%c3, %c0_18] : memref<6x128xf32, #tpu.memory_space<vmem>>, vector<1x128xf32>
    %27 = vector.broadcast %26 : vector<1x128xf32> to vector<512x128xf32>
    %28 = arith.addf %25, %27 : vector<512x128xf32>
    %cst_19 = arith.constant 0.000000e+00 : f32
    %29 = vector.broadcast %cst_19 : f32 to vector<512x128xf32>
    %30 = arith.maximumf %28, %29 : vector<512x128xf32>
    %31 = arith.truncf %30 : vector<512x128xf32> to vector<512x128xbf16>
    %c0_20 = arith.constant 0 : index
    %c0_21 = arith.constant 0 : index
    %32 = vector.load %arg6[%c0_20, %c0_21] : memref<128x128xbf16, #tpu.memory_space<vmem>>, vector<128x128xbf16>
    %cst_22 = arith.constant dense<0.000000e+00> : vector<512x128xf32>
    %33 = tpu.matmul %31, %32, %cst_22 {dimension_numbers = #tpu.dot_dimension_numbers<[1], [0], [0], [1], [0, 0, 1, 1], [], []>} : vector<512x128xbf16>, vector<128x128xbf16>, vector<512x128xf32> -> vector<512x128xf32>
    %c4 = arith.constant 4 : index
    %c0_23 = arith.constant 0 : index
    %34 = vector.load %arg8[%c4, %c0_23] : memref<6x128xf32, #tpu.memory_space<vmem>>, vector<1x128xf32>
    %35 = vector.broadcast %34 : vector<1x128xf32> to vector<512x128xf32>
    %36 = arith.addf %33, %35 : vector<512x128xf32>
    %cst_24 = arith.constant 0.000000e+00 : f32
    %37 = vector.broadcast %cst_24 : f32 to vector<512x128xf32>
    %38 = arith.maximumf %36, %37 : vector<512x128xf32>
    %39 = arith.truncf %38 : vector<512x128xf32> to vector<512x128xbf16>
    %c0_25 = arith.constant 0 : index
    %c0_26 = arith.constant 0 : index
    %40 = vector.load %arg7[%c0_25, %c0_26] : memref<128x128xbf16, #tpu.memory_space<vmem>>, vector<128x128xbf16>
    %cst_27 = arith.constant dense<0.000000e+00> : vector<512x128xf32>
    %41 = tpu.matmul %39, %40, %cst_27 {dimension_numbers = #tpu.dot_dimension_numbers<[1], [0], [0], [1], [0, 0, 1, 1], [], []>} : vector<512x128xbf16>, vector<128x128xbf16>, vector<512x128xf32> -> vector<512x128xf32>
    %c5 = arith.constant 5 : index
    %c0_28 = arith.constant 0 : index
    %42 = vector.load %arg8[%c5, %c0_28] : memref<6x128xf32, #tpu.memory_space<vmem>>, vector<1x128xf32>
    %43 = vector.broadcast %42 : vector<1x128xf32> to vector<512x128xf32>
    %44 = arith.addf %41, %43 : vector<512x128xf32>
    %45 = arith.negf %44 : vector<512x128xf32>
    %46 = math.exp %45 : vector<512x128xf32>
    %cst_29 = arith.constant 1.000000e+00 : f32
    %47 = vector.broadcast %cst_29 : f32 to vector<512x128xf32>
    %48 = arith.addf %47, %46 : vector<512x128xf32>
    %49 = arith.divf %47, %48 : vector<512x128xf32>
    %50 = arith.truncf %49 : vector<512x128xf32> to vector<512x128xbf16>
    %c0_30 = arith.constant 0 : index
    %c0_31 = arith.constant 0 : index
    %51 = vector.load %arg9[%c0_30, %c0_31] : memref<512x128xbf16, #tpu.memory_space<vmem>>, vector<512x128xbf16>
    tpu.vector_store %arg9[%c0_30, %c0_31], %50 {strides = array<i32>} : memref<512x128xbf16, #tpu.memory_space<vmem>>, vector<512x128xbf16>,
    return
  }
  func.func @transform_0(%arg0: i32) -> (i32, i32) {
    %c0_i32 = arith.constant 0 : i32
    %c0_i32_0 = arith.constant 0 : i32
    return %arg0, %c0_i32 : i32, i32
  }
  func.func @transform_1(%arg0: i32) -> (i32, i32) {
    %c0_i32 = arith.constant 0 : i32
    %c0_i32_0 = arith.constant 0 : i32
    %c0_i32_1 = arith.constant 0 : i32
    return %c0_i32, %c0_i32_0 : i32, i32
  }
  func.func @transform_2(%arg0: i32) -> (i32, i32) {
    %c0_i32 = arith.constant 0 : i32
    %c0_i32_0 = arith.constant 0 : i32
    %c0_i32_1 = arith.constant 0 : i32
    return %c0_i32, %c0_i32_0 : i32, i32
  }
  func.func @transform_3(%arg0: i32) -> (i32, i32) {
    %c0_i32 = arith.constant 0 : i32
    %c0_i32_0 = arith.constant 0 : i32
    %c0_i32_1 = arith.constant 0 : i32
    return %c0_i32, %c0_i32_0 : i32, i32
  }
  func.func @transform_4(%arg0: i32) -> (i32, i32) {
    %c0_i32 = arith.constant 0 : i32
    %c0_i32_0 = arith.constant 0 : i32
    %c0_i32_1 = arith.constant 0 : i32
    return %c0_i32, %c0_i32_0 : i32, i32
  }
  func.func @transform_5(%arg0: i32) -> (i32, i32) {
    %c0_i32 = arith.constant 0 : i32
    %c0_i32_0 = arith.constant 0 : i32
    %c0_i32_1 = arith.constant 0 : i32
    return %c0_i32, %c0_i32_0 : i32, i32
  }
  func.func @transform_6(%arg0: i32) -> (i32, i32) {
    %c0_i32 = arith.constant 0 : i32
    %c0_i32_0 = arith.constant 0 : i32
    %c0_i32_1 = arith.constant 0 : i32
    return %c0_i32, %c0_i32_0 : i32, i32
  }
  func.func @transform_7(%arg0: i32) -> (i32, i32) {
    %c0_i32 = arith.constant 0 : i32
    %c0_i32_0 = arith.constant 0 : i32
    %c0_i32_1 = arith.constant 0 : i32
    return %c0_i32, %c0_i32_0 : i32, i32
  }
  func.func @transform_8(%arg0: i32) -> (i32, i32) {
    %c0_i32 = arith.constant 0 : i32
    %c0_i32_0 = arith.constant 0 : i32
    return %arg0, %c0_i32 : i32, i32
  }
}

</mosaic_0001>

<llo_original>
// kernel: autoencoder_forward.1
$region0: #{autoencoder_forward.1}
  #allocation0 [shape = 'u32[]', space=smem, size = 0x4, offset = 0x4, fixed_abs, tag = 'smem constant byte address 0x4 - core index']
  #allocation1 [shape = 'u32[144,128]{1,0:T(1,128)}', space=vmem, size = 0x12000, scoped, tag = 'internal scratch']
  %s0 = inlined_call_operand.vmem [shape: f32[1024,32], index: 0, kind: input, shape index: {}]
  %s1 = inlined_call_operand.vmem [shape: bf16[32,128], index: 1, kind: input, shape index: {}]
  %s2 = inlined_call_operand.vmem [shape: bf16[128,128], index: 2, kind: input, shape index: {}]
  %s3 = inlined_call_operand.vmem [shape: bf16[128,128], index: 3, kind: input, shape index: {}]
  %s4 = inlined_call_operand.vmem [shape: bf16[128,128], index: 4, kind: input, shape index: {}]
  %s5 = inlined_call_operand.vmem [shape: bf16[128,128], index: 5, kind: input, shape index: {}]
  %s6 = inlined_call_operand.vmem [shape: bf16[128,128], index: 6, kind: input, shape index: {}]
  %s7 = inlined_call_operand.vmem [shape: f32[6,128], index: 7, kind: input, shape index: {}]
  %s8 = inlined_call_operand.vmem [shape: bf16[1024,128], index: 8, kind: output, shape index: {}]
  %s9 = sld [smem:[#allocation0]]
  $region65: #{autoencoder_forward.1} parent=0
    _
  %s11 = ssub.s32 1, %s9
  %s12 = scalar_select 0, %s11, %s9
  loop: start=0, step=1, limit=4
  $region2: #{autoencoder_forward.1} parent=0 // loop_pre_header
    _
  $region3: #{autoencoder_forward.1} parent=0 // loop_header
    %s14 = sphi 0, %s18
    %p15 = scmp.ge.s32.totalorder %s14, 4
    %s24 = sphi 0, %s26
    %s27 = sphi 0, %s24
    %s28 = sphi 0, %s27
    %s44 = sphi 0, %s28
    %s48 = sphi 0, %s48
    %s50 = sphi 0, %s48
    %s51 = sphi 0, %s50
    %s65 = sphi 0, %s51
    %s69 = sphi 0, %s69
    %s71 = sphi 0, %s69
    %s72 = sphi 0, %s71
    %s86 = sphi 0, %s72
    %s90 = sphi 0, %s90
    %s92 = sphi 0, %s90
    %s93 = sphi 0, %s92
    %s107 = sphi 0, %s93
    %s111 = sphi 0, %s111
    %s113 = sphi 0, %s111
    %s114 = sphi 0, %s113
    %s128 = sphi 0, %s114
    %s132 = sphi 0, %s132
    %s134 = sphi 0, %s132
    %s135 = sphi 0, %s134
    %s149 = sphi 0, %s135
    %s153 = sphi 0, %s153
    %s155 = sphi 0, %s153
    %s156 = sphi 0, %s155
    %s170 = sphi 0, %s156
    %s174 = sphi 0, %s174
    %s176 = sphi 0, %s174
    %s177 = sphi 0, %s176
    %s191 = sphi 0, %s177
    %s197 = sphi 0, %s199
    %s200 = sphi 0, %s197
    %s201 = sphi 0, %s200
    %s217 = sphi 0, %s201
  $region4: #{autoencoder_forward.1} parent=0 // loop_header_branch
    %17 = sbr.rel (%p15) target = $region8
  $region5: #{autoencoder_forward.1} parent=0 // loop_body
    %s19 = ssub.s32 %s14, 1
    %s20 = ssub.s32 %s14, 2
    %s21 = sadd.s32 %s14, 1
    %s22 = ssub.s32 %s14, %s21
    %p23 = scmp.eq.s32.totalorder %s22, 0
    %s25 = sadd.s32 %s24, 1
    %s26 = scalar_select %p23, %s24, %s25
    %p29 = pneg %p23
    %p30 = scmp.eq.s32.totalorder %s14, 1
    %p31 = por %p29, %p30
    %p32 = scmp.ne.s32.totalorder %s24, %s27
    %p33 = scmp.eq.s32.totalorder %s14, 0
    %p34 = por %p32, %p33
    %p35 = scmp.ne.s32.totalorder %s24, %s27
    %p36 = scmp.eq.s32.totalorder %s19, 1
    %p37 = por %p35, %p36
    %p38 = scmp.ne.s32.totalorder %s27, %s28
    %p39 = scmp.eq.s32.totalorder %s19, 0
    %p40 = por %p38, %p39
    %p41 = scmp.ne.s32.totalorder %s27, %s28
    %p42 = scmp.eq.s32.totalorder %s20, 1
    %p43 = por %p41, %p42
    %p45 = scmp.ne.s32.totalorder %s28, %s44
    %p46 = scmp.eq.s32.totalorder %s20, 0
    %p47 = por %p45, %p46
    %s49 = sadd.s32 %s48, 1
    %p52 = scmp.eq.s32.totalorder %s14, 1
    %p53 = scmp.ne.s32.totalorder %s48, %s50
    %p54 = scmp.eq.s32.totalorder %s14, 0
    %p55 = por %p53, %p54
    %p56 = scmp.ne.s32.totalorder %s48, %s50
    %p57 = scmp.eq.s32.totalorder %s19, 1
    %p58 = por %p56, %p57
    %p59 = scmp.ne.s32.totalorder %s50, %s51
    %p60 = scmp.eq.s32.totalorder %s19, 0
    %p61 = por %p59, %p60
    %p62 = scmp.ne.s32.totalorder %s50, %s51
    %p63 = scmp.eq.s32.totalorder %s20, 1
    %p64 = por %p62, %p63
    %p66 = scmp.ne.s32.totalorder %s51, %s65
    %p67 = scmp.eq.s32.totalorder %s20, 0
    %p68 = por %p66, %p67
    %s70 = sadd.s32 %s69, 1
    %p73 = scmp.eq.s32.totalorder %s14, 1
    %p74 = scmp.ne.s32.totalorder %s69, %s71
    %p75 = scmp.eq.s32.totalorder %s14, 0
    %p76 = por %p74, %p75
    %p77 = scmp.ne.s32.totalorder %s69, %s71
    %p78 = scmp.eq.s32.totalorder %s19, 1
    %p79 = por %p77, %p78
    %p80 = scmp.ne.s32.totalorder %s71, %s72
    %p81 = scmp.eq.s32.totalorder %s19, 0
    %p82 = por %p80, %p81
    %p83 = scmp.ne.s32.totalorder %s71, %s72
    %p84 = scmp.eq.s32.totalorder %s20, 1
    %p85 = por %p83, %p84
    %p87 = scmp.ne.s32.totalorder %s72, %s86
    %p88 = scmp.eq.s32.totalorder %s20, 0
    %p89 = por %p87, %p88
    %s91 = sadd.s32 %s90, 1
    %p94 = scmp.eq.s32.totalorder %s14, 1
    %p95 = scmp.ne.s32.totalorder %s90, %s92
    %p96 = scmp.eq.s32.totalorder %s14, 0
    %p97 = por %p95, %p96
    %p98 = scmp.ne.s32.totalorder %s90, %s92
    %p99 = scmp.eq.s32.totalorder %s19, 1
    %p100 = por %p98, %p99
    %p101 = scmp.ne.s32.totalorder %s92, %s93
    %p102 = scmp.eq.s32.totalorder %s19, 0
    %p103 = por %p101, %p102
    %p104 = scmp.ne.s32.totalorder %s92, %s93
    %p105 = scmp.eq.s32.totalorder %s20, 1
    %p106 = por %p104, %p105
    %p108 = scmp.ne.s32.totalorder %s93, %s107
    %p109 = scmp.eq.s32.totalorder %s20, 0
    %p110 = por %p108, %p109
    %s112 = sadd.s32 %s111, 1
    %p115 = scmp.eq.s32.totalorder %s14, 1
    %p116 = scmp.ne.s32.totalorder %s111, %s113
    %p117 = scmp.eq.s32.totalorder %s14, 0
    %p118 = por %p116, %p117
    %p119 = scmp.ne.s32.totalorder %s111, %s113
    %p120 = scmp.eq.s32.totalorder %s19, 1
    %p121 = por %p119, %p120
    %p122 = scmp.ne.s32.totalorder %s113, %s114
    %p123 = scmp.eq.s32.totalorder %s19, 0
    %p124 = por %p122, %p123
    %p125 = scmp.ne.s32.totalorder %s113, %s114
    %p126 = scmp.eq.s32.totalorder %s20, 1
    %p127 = por %p125, %p126
    %p129 = scmp.ne.s32.totalorder %s114, %s128
    %p130 = scmp.eq.s32.totalorder %s20, 0
    %p131 = por %p129, %p130
    %s133 = sadd.s32 %s132, 1
    %p136 = scmp.eq.s32.totalorder %s14, 1
    %p137 = scmp.ne.s32.totalorder %s132, %s134
    %p138 = scmp.eq.s32.totalorder %s14, 0
    %p139 = por %p137, %p138
    %p140 = scmp.ne.s32.totalorder %s132, %s134
    %p141 = scmp.eq.s32.totalorder %s19, 1
    %p142 = por %p140, %p141
    %p143 = scmp.ne.s32.totalorder %s134, %s135
    %p144 = scmp.eq.s32.totalorder %s19, 0
    %p145 = por %p143, %p144
    %p146 = scmp.ne.s32.totalorder %s134, %s135
    %p147 = scmp.eq.s32.totalorder %s20, 1
    %p148 = por %p146, %p147
    %p150 = scmp.ne.s32.totalorder %s135, %s149
    %p151 = scmp.eq.s32.totalorder %s20, 0
    %p152 = por %p150, %p151
    %s154 = sadd.s32 %s153, 1
    %p157 = scmp.eq.s32.totalorder %s14, 1
    %p158 = scmp.ne.s32.totalorder %s153, %s155
    %p159 = scmp.eq.s32.totalorder %s14, 0
    %p160 = por %p158, %p159
    %p161 = scmp.ne.s32.totalorder %s153, %s155
    %p162 = scmp.eq.s32.totalorder %s19, 1
    %p163 = por %p161, %p162
    %p164 = scmp.ne.s32.totalorder %s155, %s156
    %p165 = scmp.eq.s32.totalorder %s19, 0
    %p166 = por %p164, %p165
    %p167 = scmp.ne.s32.totalorder %s155, %s156
    %p168 = scmp.eq.s32.totalorder %s20, 1
    %p169 = por %p167, %p168
    %p171 = scmp.ne.s32.totalorder %s156, %s170
    %p172 = scmp.eq.s32.totalorder %s20, 0
    %p173 = por %p171, %p172
    %s175 = sadd.s32 %s174, 1
    %p178 = scmp.eq.s32.totalorder %s14, 1
    %p179 = scmp.ne.s32.totalorder %s174, %s176
    %p180 = scmp.eq.s32.totalorder %s14, 0
    %p181 = por %p179, %p180
    %p182 = scmp.ne.s32.totalorder %s174, %s176
    %p183 = scmp.eq.s32.totalorder %s19, 1
    %p184 = por %p182, %p183
    %p185 = scmp.ne.s32.totalorder %s176, %s177
    %p186 = scmp.eq.s32.totalorder %s19, 0
    %p187 = por %p185, %p186
    %p188 = scmp.ne.s32.totalorder %s176, %s177
    %p189 = scmp.eq.s32.totalorder %s20, 1
    %p190 = por %p188, %p189
    %p192 = scmp.ne.s32.totalorder %s177, %s191
    %p193 = scmp.eq.s32.totalorder %s20, 0
    %p194 = por %p192, %p193
    %s195 = ssub.s32 %s14, %s21
    %p196 = scmp.eq.s32.totalorder %s195, 0
    %s198 = sadd.s32 %s197, 1
    %s199 = scalar_select %p196, %s197, %s198
    %p202 = pneg %p196
    %p203 = scmp.eq.s32.totalorder %s14, 1
    %p204 = por %p202, %p203
    %p205 = scmp.ne.s32.totalorder %s197, %s200
    %p206 = scmp.eq.s32.totalorder %s14, 0
    %p207 = por %p205, %p206
    %p208 = scmp.ne.s32.totalorder %s197, %s200
    %p209 = scmp.eq.s32.totalorder %s19, 1
    %p210 = por %p208, %p209
    %p211 = scmp.ne.s32.totalorder %s200, %s201
    %p212 = scmp.eq.s32.totalorder %s19, 0
    %p213 = por %p211, %p212
    %p214 = scmp.ne.s32.totalorder %s200, %s201
    %p215 = scmp.eq.s32.totalorder %s20, 1
    %p216 = por %p214, %p215
    %p218 = scmp.ne.s32.totalorder %s201, %s217
    %p219 = scmp.eq.s32.totalorder %s20, 0
    %p220 = por %p218, %p219
    %p221 = scmp.le.s32.totalorder 1, %s14
    %p222 = scmp.lt.s32.totalorder %s14, 3
    %p223 = pnand %p221, %p222
    %p224 = pneg %p223
    // Predicated region
    $region9: #{autoencoder_forward.1} parent=5 // pred_check
      _
    $region10: #{autoencoder_forward.1} parent=5 // pred_check_branch
      %226 = sbr.rel (%p223) target = $region12
    $region11: #{autoencoder_forward.1} parent=5 // pred_region
      %s227 = ssub.s32 %s14, 1
      // Predicated region
      $region13: #{autoencoder_forward.1} parent=11 // pred_check
        %p228 = pneg %p61
      $region14: #{autoencoder_forward.1} parent=11 // pred_check_branch
        %230 = sbr.rel (%p228) target = $region16
      $region15: #{autoencoder_forward.1} parent=11 // pred_region
        _
      $region16: #{autoencoder_forward.1} parent=11 // pred_fallthru
        _
      // Predicated region
      $region17: #{autoencoder_forward.1} parent=11 // pred_check
        %p231 = pneg %p82
      $region18: #{autoencoder_forward.1} parent=11 // pred_check_branch
        %233 = sbr.rel (%p231) target = $region20
      $region19: #{autoencoder_forward.1} parent=11 // pred_region
        _
      $region20: #{autoencoder_forward.1} parent=11 // pred_fallthru
        _
      // Predicated region
      $region21: #{autoencoder_forward.1} parent=11 // pred_check
        %p234 = pneg %p103
      $region22: #{autoencoder_forward.1} parent=11 // pred_check_branch
        %236 = sbr.rel (%p234) target = $region24
      $region23: #{autoencoder_forward.1} parent=11 // pred_region
        _
      $region24: #{autoencoder_forward.1} parent=11 // pred_fallthru
        _
      // Predicated region
      $region25: #{autoencoder_forward.1} parent=11 // pred_check
        %p237 = pneg %p124
      $region26: #{autoencoder_forward.1} parent=11 // pred_check_branch
        %239 = sbr.rel (%p237) target = $region28
      $region27: #{autoencoder_forward.1} parent=11 // pred_region
        _
      $region28: #{autoencoder_forward.1} parent=11 // pred_fallthru
        _
      // Predicated region
      $region29: #{autoencoder_forward.1} parent=11 // pred_check
        %p240 = pneg %p145
      $region30: #{autoencoder_forward.1} parent=11 // pred_check_branch
        %242 = sbr.rel (%p240) target = $region32
      $region31: #{autoencoder_forward.1} parent=11 // pred_region
        _
      $region32: #{autoencoder_forward.1} parent=11 // pred_fallthru
        _
      // Predicated region
      $region33: #{autoencoder_forward.1} parent=11 // pred_check
        %p243 = pneg %p166
      $region34: #{autoencoder_forward.1} parent=11 // pred_check_branch
        %245 = sbr.rel (%p243) target = $region36
      $region35: #{autoencoder_forward.1} parent=11 // pred_region
        _
      $region36: #{autoencoder_forward.1} parent=11 // pred_fallthru
        _
      // Predicated region
      $region37: #{autoencoder_forward.1} parent=11 // pred_check
        %p246 = pneg %p187
      $region38: #{autoencoder_forward.1} parent=11 // pred_check_branch
        %248 = sbr.rel (%p246) target = $region40
      $region39: #{autoencoder_forward.1} parent=11 // pred_region
        _
      $region40: #{autoencoder_forward.1} parent=11 // pred_fallthru
        _
    $region12: #{autoencoder_forward.1} parent=5 // pred_fallthru
      _
    %p249 = scmp.lt.s32.totalorder %s14, 2
    // Predicated region
    $region41: #{autoencoder_forward.1} parent=5 // pred_check
      %p250 = pneg %p249
    $region42: #{autoencoder_forward.1} parent=5 // pred_check_branch
      %252 = sbr.rel (%p250) target = $region44
    $region43: #{autoencoder_forward.1} parent=5 // pred_region
      // Predicated region
      $region45: #{autoencoder_forward.1} parent=43 // pred_check
        %p253 = pneg %p34
      $region46: #{autoencoder_forward.1} parent=43 // pred_check_branch
        %255 = sbr.rel (%p253) target = $region48
      $region47: #{autoencoder_forward.1} parent=43 // pred_region
        %s256 = smul.u32 64, %s14
        %p257 = scmp.lt.s32.totalorder %s256, 127
        %s258 = scalar_select %p257, %s256, 127
        %s259 = smul.addr %s258, 8
        %s260 = scalar_lea.vmem %s0, %s259
        %s261 = smul.u32 64, %s14
      $region48: #{autoencoder_forward.1} parent=43 // pred_fallthru
        _
    $region44: #{autoencoder_forward.1} parent=5 // pred_fallthru
      _
    %p262 = scmp.le.s32.totalorder 1, %s14
    %p263 = scmp.lt.s32.totalorder %s14, 3
    %p264 = pnand %p262, %p263
    %p265 = pneg %p264
    // Predicated region
    $region49: #{autoencoder_forward.1} parent=5 // pred_check
      _
    $region50: #{autoencoder_forward.1} parent=5 // pred_check_branch
      %267 = sbr.rel (%p264) target = $region52
    $region51: #{autoencoder_forward.1} parent=5 // pred_region
      %s268 = ssub.s32 %s14, 1
      %s269 = smul.u32 64, %s19
      %p270 = scmp.lt.s32.totalorder %s269, 127
      %s271 = scalar_select %p270, %s269, 127
      %s272 = smul.addr %s271, 8
      %s273 = scalar_lea.vmem %s0, %s272
      %p274 = pneg %p40
      %p275 = pneg %p37
      %p276 = pneg %p61
      %p277 = pneg %p58
      %p278 = pneg %p82
      %p279 = pneg %p79
      %p280 = pneg %p103
      %p281 = pneg %p100
      %p282 = pneg %p124
      %p283 = pneg %p121
      %p284 = pneg %p145
      %p285 = pneg %p142
      %p286 = pneg %p166
      %p287 = pneg %p163
      %p288 = pneg %p187
      %p289 = pneg %p184
      %p290 = pneg %p213
      %p291 = pneg %p210
      %s292 = smul.u32 64, %s19
      %p293 = scmp.lt.s32.totalorder %s292, 127
      %s294 = scalar_select %p293, %s292, 127
      %s295 = smul.addr %s294, 4
      %s296 = scalar_lea.vmem %s8, %s295
      %s297 = smul.u32 64, %s19
      %p298 = scmp.lt.s32.totalorder %s297, 127
      %s299 = scalar_select %p298, %s297, 127
      %s300 = smul.addr %s299, 8
      %s301 = scalar_lea.vmem %s0, %s300
      %s302 = smul.u32 64, %s19
      %s303 = smul.u32 64, %s19
      %p304 = scmp.lt.s32.totalorder %s303, 127
      %s305 = scalar_select %p304, %s303, 127
      %s306 = smul.addr %s305, 4
      %s307 = scalar_lea.vmem %s8, %s306
      %s308 = smul.u32 64, %s19
      %v310 = vld [vmem:[%s301] sm:$0xff]
      %v311 = vld [vmem:[%s301 + $0x8] sm:$0xff]
      %v312 = vld [vmem:[%s301 + $0x10] sm:$0xff]
      %v313 = vld [vmem:[%s301 + $0x18] sm:$0xff]
      %v314 = vld [vmem:[%s301 + $0x20] sm:$0xff]
      %v315 = vld [vmem:[%s301 + $0x28] sm:$0xff]
      %v316 = vld [vmem:[%s301 + $0x30] sm:$0xff]
      %v317 = vld [vmem:[%s301 + $0x38] sm:$0xff]
      %v318 = vld [vmem:[%s301 + $0x40] sm:$0xff]
      %v319 = vld [vmem:[%s301 + $0x48] sm:$0xff]
      %v320 = vld [vmem:[%s301 + $0x50] sm:$0xff]
      %v321 = vld [vmem:[%s301 + $0x58] sm:$0xff]
      %v322 = vld [vmem:[%s301 + $0x60] sm:$0xff]
      %v323 = vld [vmem:[%s301 + $0x68] sm:$0xff]
      %v324 = vld [vmem:[%s301 + $0x70] sm:$0xff]
      %v325 = vld [vmem:[%s301 + $0x78] sm:$0xff]
      %v326 = vld [vmem:[%s301 + $0x80] sm:$0xff]
      %v327 = vld [vmem:[%s301 + $0x88] sm:$0xff]
      %v328 = vld [vmem:[%s301 + $0x90] sm:$0xff]
      %v329 = vld [vmem:[%s301 + $0x98] sm:$0xff]
      %v330 = vld [vmem:[%s301 + $0xa0] sm:$0xff]
      %v331 = vld [vmem:[%s301 + $0xa8] sm:$0xff]
      %v332 = vld [vmem:[%s301 + $0xb0] sm:$0xff]
      %v333 = vld [vmem:[%s301 + $0xb8] sm:$0xff]
      %v334 = vld [vmem:[%s301 + $0xc0] sm:$0xff]
      %v335 = vld [vmem:[%s301 + $0xc8] sm:$0xff]
      %v336 = vld [vmem:[%s301 + $0xd0] sm:$0xff]
      %v337 = vld [vmem:[%s301 + $0xd8] sm:$0xff]
      %v338 = vld [vmem:[%s301 + $0xe0] sm:$0xff]
      %v339 = vld [vmem:[%s301 + $0xe8] sm:$0xff]
      %v340 = vld [vmem:[%s301 + $0xf0] sm:$0xff]
      %v341 = vld [vmem:[%s301 + $0xf8] sm:$0xff]
      %v342 = vld [vmem:[%s301 + $0x100] sm:$0xff]
      %v343 = vld [vmem:[%s301 + $0x108] sm:$0xff]
      %v344 = vld [vmem:[%s301 + $0x110] sm:$0xff]
      %v345 = vld [vmem:[%s301 + $0x118] sm:$0xff]
      %v346 = vld [vmem:[%s301 + $0x120] sm:$0xff]
      %v347 = vld [vmem:[%s301 + $0x128] sm:$0xff]
      %v348 = vld [vmem:[%s301 + $0x130] sm:$0xff]
      %v349 = vld [vmem:[%s301 + $0x138] sm:$0xff]
      %v350 = vld [vmem:[%s301 + $0x140] sm:$0xff]
      %v351 = vld [vmem:[%s301 + $0x148] sm:$0xff]
      %v352 = vld [vmem:[%s301 + $0x150] sm:$0xff]
      %v353 = vld [vmem:[%s301 + $0x158] sm:$0xff]
      %v354 = vld [vmem:[%s301 + $0x160] sm:$0xff]
      %v355 = vld [vmem:[%s301 + $0x168] sm:$0xff]
      %v356 = vld [vmem:[%s301 + $0x170] sm:$0xff]
      %v357 = vld [vmem:[%s301 + $0x178] sm:$0xff]
      %v358 = vld [vmem:[%s301 + $0x180] sm:$0xff]
      %v359 = vld [vmem:[%s301 + $0x188] sm:$0xff]
      %v360 = vld [vmem:[%s301 + $0x190] sm:$0xff]
      %v361 = vld [vmem:[%s301 + $0x198] sm:$0xff]
      %v362 = vld [vmem:[%s301 + $0x1a0] sm:$0xff]
      %v363 = vld [vmem:[%s301 + $0x1a8] sm:$0xff]
      %v364 = vld [vmem:[%s301 + $0x1b0] sm:$0xff]
      %v365 = vld [vmem:[%s301 + $0x1b8] sm:$0xff]
      %v366 = vld [vmem:[%s301 + $0x1c0] sm:$0xff]
      %v367 = vld [vmem:[%s301 + $0x1c8] sm:$0xff]
      %v368 = vld [vmem:[%s301 + $0x1d0] sm:$0xff]
      %v369 = vld [vmem:[%s301 + $0x1d8] sm:$0xff]
      %v370 = vld [vmem:[%s301 + $0x1e0] sm:$0xff]
      %v371 = vld [vmem:[%s301 + $0x1e8] sm:$0xff]
      %v372 = vld [vmem:[%s301 + $0x1f0] sm:$0xff]
      %v373 = vld [vmem:[%s301 + $0x1f8] sm:$0xff]
      %v374 = vpack.c.bf16 %v311, %v310
      %v375 = vpack.c.bf16 %v313, %v312
      %v376 = vpack.c.bf16 %v315, %v314
      %v377 = vpack.c.bf16 %v317, %v316
      %v378 = vpack.c.bf16 %v319, %v318
      %v379 = vpack.c.bf16 %v321, %v320
      %v380 = vpack.c.bf16 %v323, %v322
      %v381 = vpack.c.bf16 %v325, %v324
      %v382 = vpack.c.bf16 %v327, %v326
      %v383 = vpack.c.bf16 %v329, %v328
      %v384 = vpack.c.bf16 %v331, %v330
      %v385 = vpack.c.bf16 %v333, %v332
      %v386 = vpack.c.bf16 %v335, %v334
      %v387 = vpack.c.bf16 %v337, %v336
      %v388 = vpack.c.bf16 %v339, %v338
      %v389 = vpack.c.bf16 %v341, %v340
      %v390 = vpack.c.bf16 %v343, %v342
      %v391 = vpack.c.bf16 %v345, %v344
      %v392 = vpack.c.bf16 %v347, %v346
      %v393 = vpack.c.bf16 %v349, %v348
      %v394 = vpack.c.bf16 %v351, %v350
      %v395 = vpack.c.bf16 %v353, %v352
      %v396 = vpack.c.bf16 %v355, %v354
      %v397 = vpack.c.bf16 %v357, %v356
      %v398 = vpack.c.bf16 %v359, %v358
      %v399 = vpack.c.bf16 %v361, %v360
      %v400 = vpack.c.bf16 %v363, %v362
      %v401 = vpack.c.bf16 %v365, %v364
      %v402 = vpack.c.bf16 %v367, %v366
      %v403 = vpack.c.bf16 %v369, %v368
      %v404 = vpack.c.bf16 %v371, %v370
      %v405 = vpack.c.bf16 %v373, %v372
      %v406 = vld [vmem:[%s1] sm:$0xf]
      %v407 = vld [vmem:[%s1 + $0x4] sm:$0xf]
      %v408 = vld [vmem:[%s1 + $0x8] sm:$0xf]
      %v409 = vld [vmem:[%s1 + $0xc] sm:$0xf]
      %v410 = vld [vmem:[%s7] sm:$0x1]
      %v411 = vlaneseq
      %v412 = vshrl.u32 %v411, 7
      %v413 = vsub.s32 0, %v412
      %v414 = vrot.slane %v410, %v413
      %v419 = vunpack.c.l.b16 %v406
      %v420 = vunpack.c.l.b16 %v407
      %v421 = vunpack.c.l.b16 %v408
      %v422 = vunpack.c.l.b16 %v409
      %v423 = vpack.c.b16 %v420, %v419
      %v424 = vpack.c.b16 %v422, %v421
      %vm427 = vcmask 261120
      %v429 = vsel %vm427, %v374, 0
      %v432 = vsel %vm427, %v375, 0
      %v435 = vsel %vm427, %v376, 0
      %v438 = vsel %vm427, %v377, 0
      %v441 = vsel %vm427, %v378, 0
      %v444 = vsel %vm427, %v379, 0
      %v447 = vsel %vm427, %v380, 0
      %v450 = vsel %vm427, %v381, 0
      %v453 = vsel %vm427, %v382, 0
      %v456 = vsel %vm427, %v383, 0
      %v459 = vsel %vm427, %v384, 0
      %v462 = vsel %vm427, %v385, 0
      %v465 = vsel %vm427, %v386, 0
      %v468 = vsel %vm427, %v387, 0
      %v471 = vsel %vm427, %v388, 0
      %v474 = vsel %vm427, %v389, 0
      %v477 = vsel %vm427, %v390, 0
      %v480 = vsel %vm427, %v391, 0
      %v483 = vsel %vm427, %v392, 0
      %v486 = vsel %vm427, %v393, 0
      %v489 = vsel %vm427, %v394, 0
      %v492 = vsel %vm427, %v395, 0
      %v495 = vsel %vm427, %v396, 0
      %v498 = vsel %vm427, %v397, 0
      %v501 = vsel %vm427, %v398, 0
      %v504 = vsel %vm427, %v399, 0
      %v507 = vsel %vm427, %v400, 0
      %v510 = vsel %vm427, %v401, 0
      %v513 = vsel %vm427, %v402, 0
      %v516 = vsel %vm427, %v403, 0
      %v519 = vsel %vm427, %v404, 0
      %v522 = vsel %vm427, %v405, 0
      %524 = vmatprep.subr.bf16.mxu0 0
      %525 = vmatpush1.bf16.msra.mxu0 %v423
      %526 = vmatprep.subr.bf16.mxu0 0
      %527 = vmatpush1.bf16.msra.mxu0 %v424
      %528 = vmatprep.subr.bf16.mxu0 0
      %529 = vmatpush1.bf16.msra.mxu0 0
      %530 = vmatprep.subr.bf16.mxu0 0
      %531 = vmatpush1.bf16.msra.mxu0 0
      %532 = vmatprep.subr.bf16.mxu0 0
      %533 = vmatpush1.bf16.msra.mxu0 0
      %534 = vmatprep.subr.bf16.mxu0 0
      %535 = vmatpush1.bf16.msra.mxu0 0
      %536 = vmatprep.subr.bf16.mxu0 0
      %537 = vmatpush1.bf16.msra.mxu0 0
      %538 = vmatprep.subr.bf16.mxu0 0
      %539 = vmatpush1.bf16.msra.mxu0 0
      %540 = vmatprep.subr.bf16.mxu0 0
      %541 = vmatpush1.bf16.msra.mxu0 0
      %542 = vmatprep.subr.bf16.mxu0 0
      %543 = vmatpush1.bf16.msra.mxu0 0
      %544 = vmatprep.subr.bf16.mxu0 0
      %545 = vmatpush1.bf16.msra.mxu0 0
      %546 = vmatprep.subr.bf16.mxu0 0
      %547 = vmatpush1.bf16.msra.mxu0 0
      %548 = vmatprep.subr.bf16.mxu0 0
      %549 = vmatpush1.bf16.msra.mxu0 0
      %550 = vmatprep.subr.bf16.mxu0 0
      %551 = vmatpush1.bf16.msra.mxu0 0
      %552 = vmatprep.subr.bf16.mxu0 0
      %553 = vmatpush1.bf16.msra.mxu0 0
      %554 = vmatprep.subr.bf16.mxu0 0
      %555 = vmatpush1.bf16.msra.mxu0 0
      %556 = vmatprep.mubr.bf16.mxu0 0
      %557 = vmatmul.mubr.bf16.gmra.mrb[0].mxu0 %v429
      %v558 = vpop.f32.mrb[0].mxu0
      %v559 = vadd.f32 %v414, %v558
      %v560 = vpop.f32.mrb[0].mxu0
      %v561 = vpop.f32.mrb[0].mxu0
      %v562 = vadd.f32 %v414, %v561
      %v563 = vpop.f32.mrb[0].mxu0
      %564 = vmatprep.mubr.bf16.mxu0 0
      %565 = vmatmul.mubr.bf16.gmra.mrb[0].mxu0 %v432
      %v566 = vpop.f32.mrb[0].mxu0
      %v567 = vadd.f32 %v414, %v566
      %v568 = vpop.f32.mrb[0].mxu0
      %v569 = vpop.f32.mrb[0].mxu0
      %v570 = vadd.f32 %v414, %v569
      %v571 = vpop.f32.mrb[0].mxu0
      %572 = vmatprep.mubr.bf16.mxu0 0
      %573 = vmatmul.mubr.bf16.gmra.mrb[0].mxu0 %v435
      %v574 = vpop.f32.mrb[0].mxu0
      %v575 = vadd.f32 %v414, %v574
      %v576 = vpop.f32.mrb[0].mxu0
      %v577 = vpop.f32.mrb[0].mxu0
      %v578 = vadd.f32 %v414, %v577
      %v579 = vpop.f32.mrb[0].mxu0
      %580 = vmatprep.mubr.bf16.mxu0 0
      %581 = vmatmul.mubr.bf16.gmra.mrb[0].mxu0 %v438
      %v582 = vpop.f32.mrb[0].mxu0
      %v583 = vadd.f32 %v414, %v582
      %v584 = vpop.f32.mrb[0].mxu0
      %v585 = vpop.f32.mrb[0].mxu0
      %v586 = vadd.f32 %v414, %v585
      %v587 = vpop.f32.mrb[0].mxu0
      %588 = vmatprep.mubr.bf16.mxu0 0
      %589 = vmatmul.mubr.bf16.gmra.mrb[0].mxu0 %v441
      %v590 = vpop.f32.mrb[0].mxu0
      %v591 = vadd.f32 %v414, %v590
      %v592 = vpop.f32.mrb[0].mxu0
      %v593 = vpop.f32.mrb[0].mxu0
      %v594 = vadd.f32 %v414, %v593
      %v595 = vpop.f32.mrb[0].mxu0
      %596 = vmatprep.mubr.bf16.mxu0 0
      %597 = vmatmul.mubr.bf16.gmra.mrb[0].mxu0 %v444
      %v598 = vpop.f32.mrb[0].mxu0
      %v599 = vadd.f32 %v414, %v598
      %v600 = vpop.f32.mrb[0].mxu0
      %v601 = vpop.f32.mrb[0].mxu0
      %v602 = vadd.f32 %v414, %v601
      %v603 = vpop.f32.mrb[0].mxu0
      %604 = vmatprep.mubr.bf16.mxu0 0
      %605 = vmatmul.mubr.bf16.gmra.mrb[0].mxu0 %v447
      %v606 = vpop.f32.mrb[0].mxu0
      %v607 = vadd.f32 %v414, %v606
      %v608 = vpop.f32.mrb[0].mxu0
      %v609 = vpop.f32.mrb[0].mxu0
      %v610 = vadd.f32 %v414, %v609
      %v611 = vpop.f32.mrb[0].mxu0
      %612 = vmatprep.mubr.bf16.mxu0 0
      %613 = vmatmul.mubr.bf16.gmra.mrb[0].mxu0 %v450
      %v614 = vpop.f32.mrb[0].mxu0
      %v615 = vadd.f32 %v414, %v614
      %v616 = vpop.f32.mrb[0].mxu0
      %v617 = vpop.f32.mrb[0].mxu0
      %v618 = vadd.f32 %v414, %v617
      %v619 = vpop.f32.mrb[0].mxu0
      %620 = vmatprep.mubr.bf16.mxu0 0
      %621 = vmatmul.mubr.bf16.gmra.mrb[0].mxu0 %v453
      %v622 = vpop.f32.mrb[0].mxu0
      %v623 = vadd.f32 %v414, %v622
      %v624 = vpop.f32.mrb[0].mxu0
      %v625 = vpop.f32.mrb[0].mxu0
      %v626 = vadd.f32 %v414, %v625
      %v627 = vpop.f32.mrb[0].mxu0
      %628 = vmatprep.mubr.bf16.mxu0 0
      %629 = vmatmul.mubr.bf16.gmra.mrb[0].mxu0 %v456
      %v630 = vpop.f32.mrb[0].mxu0
      %v631 = vadd.f32 %v414, %v630
      %v632 = vpop.f32.mrb[0].mxu0
      %v633 = vpop.f32.mrb[0].mxu0
      %v634 = vadd.f32 %v414, %v633
      %v635 = vpop.f32.mrb[0].mxu0
      %636 = vmatprep.mubr.bf16.mxu0 0
      %637 = vmatmul.mubr.bf16.gmra.mrb[0].mxu0 %v459
      %v638 = vpop.f32.mrb[0].mxu0
      %v639 = vadd.f32 %v414, %v638
      %v640 = vpop.f32.mrb[0].mxu0
      %v641 = vpop.f32.mrb[0].mxu0
      %v642 = vadd.f32 %v414, %v641
      %v643 = vpop.f32.mrb[0].mxu0
      %644 = vmatprep.mubr.bf16.mxu0 0
      %645 = vmatmul.mubr.bf16.gmra.mrb[0].mxu0 %v462
      %v646 = vpop.f32.mrb[0].mxu0
      %v647 = vadd.f32 %v414, %v646
      %v648 = vpop.f32.mrb[0].mxu0
      %v649 = vpop.f32.mrb[0].mxu0
      %v650 = vadd.f32 %v414, %v649
      %v651 = vpop.f32.mrb[0].mxu0
      %652 = vmatprep.mubr.bf16.mxu0 0
      %653 = vmatmul.mubr.bf16.gmra.mrb[0].mxu0 %v465
      %v654 = vpop.f32.mrb[0].mxu0
      %v655 = vadd.f32 %v414, %v654
      %v656 = vpop.f32.mrb[0].mxu0
      %v657 = vpop.f32.mrb[0].mxu0
      %v658 = vadd.f32 %v414, %v657
      %v659 = vpop.f32.mrb[0].mxu0
      %660 = vmatprep.mubr.bf16.mxu0 0
      %661 = vmatmul.mubr.bf16.gmra.mrb[0].mxu0 %v468
      %v662 = vpop.f32.mrb[0].mxu0
      %v663 = vadd.f32 %v414, %v662
      %v664 = vpop.f32.mrb[0].mxu0
      %v665 = vpop.f32.mrb[0].mxu0
      %v666 = vadd.f32 %v414, %v665
      %v667 = vpop.f32.mrb[0].mxu0
      %668 = vmatprep.mubr.bf16.mxu0 0
      %669 = vmatmul.mubr.bf16.gmra.mrb[0].mxu0 %v471
      %v670 = vpop.f32.mrb[0].mxu0
      %v671 = vadd.f32 %v414, %v670
      %v672 = vpop.f32.mrb[0].mxu0
      %v673 = vpop.f32.mrb[0].mxu0
      %v674 = vadd.f32 %v414, %v673
      %v675 = vpop.f32.mrb[0].mxu0
      %676 = vmatprep.mubr.bf16.mxu0 0
      %677 = vmatmul.mubr.bf16.gmra.mrb[0].mxu0 %v474
      %v678 = vpop.f32.mrb[0].mxu0
      %v679 = vadd.f32 %v414, %v678
      %v680 = vpop.f32.mrb[0].mxu0
      %v681 = vpop.f32.mrb[0].mxu0
      %v682 = vadd.f32 %v414, %v681
      %v683 = vpop.f32.mrb[0].mxu0
      %684 = vmatprep.mubr.bf16.mxu0 0
      %685 = vmatmul.mubr.bf16.gmra.mrb[0].mxu0 %v477
      %v686 = vpop.f32.mrb[0].mxu0
      %v687 = vadd.f32 %v414, %v686
      %v688 = vpop.f32.mrb[0].mxu0
      %v689 = vpop.f32.mrb[0].mxu0
      %v690 = vadd.f32 %v414, %v689
      %v691 = vpop.f32.mrb[0].mxu0
      %692 = vmatprep.mubr.bf16.mxu0 0
      %693 = vmatmul.mubr.bf16.gmra.mrb[0].mxu0 %v480
      %v694 = vpop.f32.mrb[0].mxu0
      %v695 = vadd.f32 %v414, %v694
      %v696 = vpop.f32.mrb[0].mxu0
      %v697 = vpop.f32.mrb[0].mxu0
      %v698 = vadd.f32 %v414, %v697
      %v699 = vpop.f32.mrb[0].mxu0
      %700 = vmatprep.mubr.bf16.mxu0 0
      %701 = vmatmul.mubr.bf16.gmra.mrb[0].mxu0 %v483
      %v702 = vpop.f32.mrb[0].mxu0
      %v703 = vadd.f32 %v414, %v702
      %v704 = vpop.f32.mrb[0].mxu0
      %v705 = vpop.f32.mrb[0].mxu0
      %v706 = vadd.f32 %v414, %v705
      %v707 = vpop.f32.mrb[0].mxu0
      %708 = vmatprep.mubr.bf16.mxu0 0
      %709 = vmatmul.mubr.bf16.gmra.mrb[0].mxu0 %v486
      %v710 = vpop.f32.mrb[0].mxu0
      %v711 = vadd.f32 %v414, %v710
      %v712 = vpop.f32.mrb[0].mxu0
      %v713 = vpop.f32.mrb[0].mxu0
      %v714 = vadd.f32 %v414, %v713
      %v715 = vpop.f32.mrb[0].mxu0
      %716 = vmatprep.mubr.bf16.mxu0 0
      %717 = vmatmul.mubr.bf16.gmra.mrb[0].mxu0 %v489
      %v718 = vpop.f32.mrb[0].mxu0
      %v719 = vadd.f32 %v414, %v718
      %v720 = vpop.f32.mrb[0].mxu0
      %v721 = vpop.f32.mrb[0].mxu0
      %v722 = vadd.f32 %v414, %v721
      %v723 = vpop.f32.mrb[0].mxu0
      %724 = vmatprep.mubr.bf16.mxu0 0
      %725 = vmatmul.mubr.bf16.gmra.mrb[0].mxu0 %v492
      %v726 = vpop.f32.mrb[0].mxu0
      %v727 = vadd.f32 %v414, %v726
      %v728 = vpop.f32.mrb[0].mxu0
      %v729 = vpop.f32.mrb[0].mxu0
      %v730 = vadd.f32 %v414, %v729
      %v731 = vpop.f32.mrb[0].mxu0
      %732 = vmatprep.mubr.bf16.mxu0 0
      %733 = vmatmul.mubr.bf16.gmra.mrb[0].mxu0 %v495
      %v734 = vpop.f32.mrb[0].mxu0
      %v735 = vadd.f32 %v414, %v734
      %v736 = vpop.f32.mrb[0].mxu0
      %v737 = vpop.f32.mrb[0].mxu0
      %v738 = vadd.f32 %v414, %v737
      %v739 = vpop.f32.mrb[0].mxu0
      %740 = vmatprep.mubr.bf16.mxu0 0
      %741 = vmatmul.mubr.bf16.gmra.mrb[0].mxu0 %v498
      %v742 = vpop.f32.mrb[0].mxu0
      %v743 = vadd.f32 %v414, %v742
      %v744 = vpop.f32.mrb[0].mxu0
      %v745 = vpop.f32.mrb[0].mxu0
      %v746 = vadd.f32 %v414, %v745
      %v747 = vpop.f32.mrb[0].mxu0
      %748 = vmatprep.mubr.bf16.mxu0 0
      %749 = vmatmul.mubr.bf16.gmra.mrb[0].mxu0 %v501
      %v750 = vpop.f32.mrb[0].mxu0
      %v751 = vadd.f32 %v414, %v750
      %v752 = vpop.f32.mrb[0].mxu0
      %v753 = vpop.f32.mrb[0].mxu0
      %v754 = vadd.f32 %v414, %v753
      %v755 = vpop.f32.mrb[0].mxu0
      %756 = vmatprep.mubr.bf16.mxu0 0
      %757 = vmatmul.mubr.bf16.gmra.mrb[0].mxu0 %v504
      %v758 = vpop.f32.mrb[0].mxu0
      %v759 = vadd.f32 %v414, %v758
      %v760 = vpop.f32.mrb[0].mxu0
      %v761 = vpop.f32.mrb[0].mxu0
      %v762 = vadd.f32 %v414, %v761
      %v763 = vpop.f32.mrb[0].mxu0
      %764 = vmatprep.mubr.bf16.mxu0 0
      %765 = vmatmul.mubr.bf16.gmra.mrb[0].mxu0 %v507
      %v766 = vpop.f32.mrb[0].mxu0
      %v767 = vadd.f32 %v414, %v766
      %v768 = vpop.f32.mrb[0].mxu0
      %v769 = vpop.f32.mrb[0].mxu0
      %v770 = vadd.f32 %v414, %v769
      %v771 = vpop.f32.mrb[0].mxu0
      %772 = vmatprep.mubr.bf16.mxu0 0
      %773 = vmatmul.mubr.bf16.gmra.mrb[0].mxu0 %v510
      %v774 = vpop.f32.mrb[0].mxu0
      %v775 = vadd.f32 %v414, %v774
      %v776 = vpop.f32.mrb[0].mxu0
      %v777 = vpop.f32.mrb[0].mxu0
      %v778 = vadd.f32 %v414, %v777
      %v779 = vpop.f32.mrb[0].mxu0
      %780 = vmatprep.mubr.bf16.mxu0 0
      %781 = vmatmul.mubr.bf16.gmra.mrb[0].mxu0 %v513
      %v782 = vpop.f32.mrb[0].mxu0
      %v783 = vadd.f32 %v414, %v782
      %v784 = vpop.f32.mrb[0].mxu0
      %v785 = vpop.f32.mrb[0].mxu0
      %v786 = vadd.f32 %v414, %v785
      %v787 = vpop.f32.mrb[0].mxu0
      %788 = vmatprep.mubr.bf16.mxu0 0
      %789 = vmatmul.mubr.bf16.gmra.mrb[0].mxu0 %v516
      %v790 = vpop.f32.mrb[0].mxu0
      %v791 = vadd.f32 %v414, %v790
      %v792 = vpop.f32.mrb[0].mxu0
      %v793 = vpop.f32.mrb[0].mxu0
      %v794 = vadd.f32 %v414, %v793
      %v795 = vpop.f32.mrb[0].mxu0
      %796 = vmatprep.mubr.bf16.mxu0 0
      %797 = vmatmul.mubr.bf16.gmra.mrb[0].mxu0 %v519
      %v798 = vpop.f32.mrb[0].mxu0
      %v799 = vadd.f32 %v414, %v798
      %v800 = vpop.f32.mrb[0].mxu0
      %v801 = vpop.f32.mrb[0].mxu0
      %v802 = vadd.f32 %v414, %v801
      %v803 = vpop.f32.mrb[0].mxu0
      %804 = vmatprep.mubr.bf16.mxu0 0
      %805 = vmatmul.mubr.bf16.gmra.mrb[0].mxu0 %v522
      %v806 = vpop.f32.mrb[0].mxu0
      %v807 = vadd.f32 %v414, %v806
      %v808 = vpop.f32.mrb[0].mxu0
      %v809 = vpop.f32.mrb[0].mxu0
      %v810 = vadd.f32 %v414, %v809
      %v811 = vpop.f32.mrb[0].mxu0
      %812 = vdwg.mxu0
      %v813 = vmax.f32 %v559, 0.0
      %v814 = vmax.f32 %v562, 0.0
      %v815 = vmax.f32 %v567, 0.0
      %v816 = vmax.f32 %v570, 0.0
      %v817 = vmax.f32 %v575, 0.0
      %v818 = vmax.f32 %v578, 0.0
      %v819 = vmax.f32 %v583, 0.0
      %v820 = vmax.f32 %v586, 0.0
      %v821 = vmax.f32 %v591, 0.0
      %v822 = vmax.f32 %v594, 0.0
      %v823 = vmax.f32 %v599, 0.0
      %v824 = vmax.f32 %v602, 0.0
      %v825 = vmax.f32 %v607, 0.0
      %v826 = vmax.f32 %v610, 0.0
      %v827 = vmax.f32 %v615, 0.0
      %v828 = vmax.f32 %v618, 0.0
      %v829 = vmax.f32 %v623, 0.0
      %v830 = vmax.f32 %v626, 0.0
      %v831 = vmax.f32 %v631, 0.0
      %v832 = vmax.f32 %v634, 0.0
      %v833 = vmax.f32 %v639, 0.0
      %v834 = vmax.f32 %v642, 0.0
      %v835 = vmax.f32 %v647, 0.0
      %v836 = vmax.f32 %v650, 0.0
      %v837 = vmax.f32 %v655, 0.0
      %v838 = vmax.f32 %v658, 0.0
      %v839 = vmax.f32 %v663, 0.0
      %v840 = vmax.f32 %v666, 0.0
      %v841 = vmax.f32 %v671, 0.0
      %v842 = vmax.f32 %v674, 0.0
      %v843 = vmax.f32 %v679, 0.0
      %v844 = vmax.f32 %v682, 0.0
      %v845 = vmax.f32 %v687, 0.0
      %v846 = vmax.f32 %v690, 0.0
      %v847 = vmax.f32 %v695, 0.0
      %v848 = vmax.f32 %v698, 0.0
      %v849 = vmax.f32 %v703, 0.0
      %v850 = vmax.f32 %v706, 0.0
      %v851 = vmax.f32 %v711, 0.0
      %v852 = vmax.f32 %v714, 0.0
      %v853 = vmax.f32 %v719, 0.0
      %v854 = vmax.f32 %v722, 0.0
      %v855 = vmax.f32 %v727, 0.0
      %v856 = vmax.f32 %v730, 0.0
      %v857 = vmax.f32 %v735, 0.0
      %v858 = vmax.f32 %v738, 0.0
      %v859 = vmax.f32 %v743, 0.0
      %v860 = vmax.f32 %v746, 0.0
      %v861 = vmax.f32 %v751, 0.0
      %v862 = vmax.f32 %v754, 0.0
      %v863 = vmax.f32 %v759, 0.0
      %v864 = vmax.f32 %v762, 0.0
      %v865 = vmax.f32 %v767, 0.0
      %v866 = vmax.f32 %v770, 0.0
      %v867 = vmax.f32 %v775, 0.0
      %v868 = vmax.f32 %v778, 0.0
      %v869 = vmax.f32 %v783, 0.0
      %v870 = vmax.f32 %v786, 0.0
      %v871 = vmax.f32 %v791, 0.0
      %v872 = vmax.f32 %v794, 0.0
      %v873 = vmax.f32 %v799, 0.0
      %v874 = vmax.f32 %v802, 0.0
      %v875 = vmax.f32 %v807, 0.0
      %v876 = vmax.f32 %v810, 0.0
      %v877 = vpack.c.bf16 %v814, %v813
      %v878 = vpack.c.bf16 %v816, %v815
      %v879 = vpack.c.bf16 %v818, %v817
      %v880 = vpack.c.bf16 %v820, %v819
      %v881 = vpack.c.bf16 %v822, %v821
      %v882 = vpack.c.bf16 %v824, %v823
      %v883 = vpack.c.bf16 %v826, %v825
      %v884 = vpack.c.bf16 %v828, %v827
      %v885 = vpack.c.bf16 %v830, %v829
      %v886 = vpack.c.bf16 %v832, %v831
      %v887 = vpack.c.bf16 %v834, %v833
      %v888 = vpack.c.bf16 %v836, %v835
      %v889 = vpack.c.bf16 %v838, %v837
      %v890 = vpack.c.bf16 %v840, %v839
      %v891 = vpack.c.bf16 %v842, %v841
      %v892 = vpack.c.bf16 %v844, %v843
      %v893 = vpack.c.bf16 %v846, %v845
      %v894 = vpack.c.bf16 %v848, %v847
      %v895 = vpack.c.bf16 %v850, %v849
      %v896 = vpack.c.bf16 %v852, %v851
      %v897 = vpack.c.bf16 %v854, %v853
      %v898 = vpack.c.bf16 %v856, %v855
      %v899 = vpack.c.bf16 %v858, %v857
      %v900 = vpack.c.bf16 %v860, %v859
      %v901 = vpack.c.bf16 %v862, %v861
      %v902 = vpack.c.bf16 %v864, %v863
      %v903 = vpack.c.bf16 %v866, %v865
      %v904 = vpack.c.bf16 %v868, %v867
      %v905 = vpack.c.bf16 %v870, %v869
      %v906 = vpack.c.bf16 %v872, %v871
      %v907 = vpack.c.bf16 %v874, %v873
      %v908 = vpack.c.bf16 %v876, %v875
      %v909 = vld [vmem:[%s2] sm:$0xf]
      %v910 = vld [vmem:[%s2 + $0x4] sm:$0xf]
      %v911 = vld [vmem:[%s2 + $0x8] sm:$0xf]
      %v912 = vld [vmem:[%s2 + $0xc] sm:$0xf]
      %v913 = vld [vmem:[%s2 + $0x10] sm:$0xf]
      %v914 = vld [vmem:[%s2 + $0x14] sm:$0xf]
      %v915 = vld [vmem:[%s2 + $0x18] sm:$0xf]
      %v916 = vld [vmem:[%s2 + $0x1c] sm:$0xf]
      %v917 = vld [vmem:[%s2 + $0x20] sm:$0xf]
      %v918 = vld [vmem:[%s2 + $0x24] sm:$0xf]
      %v919 = vld [vmem:[%s2 + $0x28] sm:$0xf]
      %v920 = vld [vmem:[%s2 + $0x2c] sm:$0xf]
      %v921 = vld [vmem:[%s2 + $0x30] sm:$0xf]
      %v922 = vld [vmem:[%s2 + $0x34] sm:$0xf]
      %v923 = vld [vmem:[%s2 + $0x38] sm:$0xf]
      %v924 = vld [vmem:[%s2 + $0x3c] sm:$0xf]
      %v925 = vld [vmem:[%s7 + $0x1] sm:$0x1]
      %v926 = vlaneseq
      %v927 = vshrl.u32 %v926, 7
      %v928 = vsub.s32 0, %v927
      %v929 = vrot.slane %v925, %v928
      %v946 = vunpack.c.l.b16 %v909
      %v947 = vunpack.c.l.b16 %v910
      %v948 = vunpack.c.l.b16 %v911
      %v949 = vunpack.c.l.b16 %v912
      %v950 = vunpack.c.l.b16 %v913
      %v951 = vunpack.c.l.b16 %v914
      %v952 = vunpack.c.l.b16 %v915
      %v953 = vunpack.c.l.b16 %v916
      %v954 = vunpack.c.l.b16 %v917
      %v955 = vunpack.c.l.b16 %v918
      %v956 = vunpack.c.l.b16 %v919
      %v957 = vunpack.c.l.b16 %v920
      %v958 = vunpack.c.l.b16 %v921
      %v959 = vunpack.c.l.b16 %v922
      %v960 = vunpack.c.l.b16 %v923
      %v961 = vunpack.c.l.b16 %v924
      %v962 = vpack.c.b16 %v947, %v946
      %v963 = vpack.c.b16 %v949, %v948
      %v964 = vpack.c.b16 %v951, %v950
      %v965 = vpack.c.b16 %v953, %v952
      %v966 = vpack.c.b16 %v955, %v954
      %v967 = vpack.c.b16 %v957, %v956
      %v968 = vpack.c.b16 %v959, %v958
      %v969 = vpack.c.b16 %v961, %v960
      %978 = vmatprep.subr.bf16.mxu0 0
      %979 = vmatpush1.bf16.msra.mxu0 %v962
      %980 = vmatprep.subr.bf16.mxu0 0
      %981 = vmatpush1.bf16.msra.mxu0 %v963
      %982 = vmatprep.subr.bf16.mxu0 0
      %983 = vmatpush1.bf16.msra.mxu0 %v964
      %984 = vmatprep.subr.bf16.mxu0 0
      %985 = vmatpush1.bf16.msra.mxu0 %v965
      %986 = vmatprep.subr.bf16.mxu0 0
      %987 = vmatpush1.bf16.msra.mxu0 %v966
      %988 = vmatprep.subr.bf16.mxu0 0
      %989 = vmatpush1.bf16.msra.mxu0 %v967
      %990 = vmatprep.subr.bf16.mxu0 0
      %991 = vmatpush1.bf16.msra.mxu0 %v968
      %992 = vmatprep.subr.bf16.mxu0 0
      %993 = vmatpush1.bf16.msra.mxu0 %v969
      %994 = vmatprep.subr.bf16.mxu0 0
      %995 = vmatpush1.bf16.msra.mxu0 0
      %996 = vmatprep.subr.bf16.mxu0 0
      %997 = vmatpush1.bf16.msra.mxu0 0
      %998 = vmatprep.subr.bf16.mxu0 0
      %999 = vmatpush1.bf16.msra.mxu0 0
      %1000 = vmatprep.subr.bf16.mxu0 0
      %1001 = vmatpush1.bf16.msra.mxu0 0
      %1002 = vmatprep.subr.bf16.mxu0 0
      %1003 = vmatpush1.bf16.msra.mxu0 0
      %1004 = vmatprep.subr.bf16.mxu0 0
      %1005 = vmatpush1.bf16.msra.mxu0 0
      %1006 = vmatprep.subr.bf16.mxu0 0
      %1007 = vmatpush1.bf16.msra.mxu0 0
      %1008 = vmatprep.subr.bf16.mxu0 0
      %1009 = vmatpush1.bf16.msra.mxu0 0
      %1010 = vmatprep.mubr.bf16.mxu0 0
      %1011 = vmatmul.mubr.bf16.gmra.mrb[0].mxu0 %v877
      %v1012 = vpop.f32.mrb[0].mxu0
      %v1013 = vadd.f32 %v929, %v1012
      %v1014 = vpop.f32.mrb[0].mxu0
      %v1015 = vpop.f32.mrb[0].mxu0
      %v1016 = vadd.f32 %v929, %v1015
      %v1017 = vpop.f32.mrb[0].mxu0
      %1018 = vmatprep.mubr.bf16.mxu0 0
      %1019 = vmatmul.mubr.bf16.gmra.mrb[0].mxu0 %v878
      %v1020 = vpop.f32.mrb[0].mxu0
      %v1021 = vadd.f32 %v929, %v1020
      %v1022 = vpop.f32.mrb[0].mxu0
      %v1023 = vpop.f32.mrb[0].mxu0
      %v1024 = vadd.f32 %v929, %v1023
      %v1025 = vpop.f32.mrb[0].mxu0
      %1026 = vmatprep.mubr.bf16.mxu0 0
      %1027 = vmatmul.mubr.bf16.gmra.mrb[0].mxu0 %v879
      %v1028 = vpop.f32.mrb[0].mxu0
      %v1029 = vadd.f32 %v929, %v1028
      %v1030 = vpop.f32.mrb[0].mxu0
      %v1031 = vpop.f32.mrb[0].mxu0
      %v1032 = vadd.f32 %v929, %v1031
      %v1033 = vpop.f32.mrb[0].mxu0
      %1034 = vmatprep.mubr.bf16.mxu0 0
      %1035 = vmatmul.mubr.bf16.gmra.mrb[0].mxu0 %v880
      %v1036 = vpop.f32.mrb[0].mxu0
      %v1037 = vadd.f32 %v929, %v1036
      %v1038 = vpop.f32.mrb[0].mxu0
      %v1039 = vpop.f32.mrb[0].mxu0
      %v1040 = vadd.f32 %v929, %v1039
      %v1041 = vpop.f32.mrb[0].mxu0
      %1042 = vmatprep.mubr.bf16.mxu0 0
      %1043 = vmatmul.mubr.bf16.gmra.mrb[0].mxu0 %v881
      %v1044 = vpop.f32.mrb[0].mxu0
      %v1045 = vadd.f32 %v929, %v1044
      %v1046 = vpop.f32.mrb[0].mxu0
      %v1047 = vpop.f32.mrb[0].mxu0
      %v1048 = vadd.f32 %v929, %v1047
      %v1049 = vpop.f32.mrb[0].mxu0
      %1050 = vmatprep.mubr.bf16.mxu0 0
      %1051 = vmatmul.mubr.bf16.gmra.mrb[0].mxu0 %v882
      %v1052 = vpop.f32.mrb[0].mxu0
      %v1053 = vadd.f32 %v929, %v1052
      %v1054 = vpop.f32.mrb[0].mxu0
      %v1055 = vpop.f32.mrb[0].mxu0
      %v1056 = vadd.f32 %v929, %v1055
      %v1057 = vpop.f32.mrb[0].mxu0
      %1058 = vmatprep.mubr.bf16.mxu0 0
      %1059 = vmatmul.mubr.bf16.gmra.mrb[0].mxu0 %v883
      %v1060 = vpop.f32.mrb[0].mxu0
      %v1061 = vadd.f32 %v929, %v1060
      %v1062 = vpop.f32.mrb[0].mxu0
      %v1063 = vpop.f32.mrb[0].mxu0
      %v1064 = vadd.f32 %v929, %v1063
      %v1065 = vpop.f32.mrb[0].mxu0
      %1066 = vmatprep.mubr.bf16.mxu0 0
      %1067 = vmatmul.mubr.bf16.gmra.mrb[0].mxu0 %v884
      %v1068 = vpop.f32.mrb[0].mxu0
      %v1069 = vadd.f32 %v929, %v1068
      %v1070 = vpop.f32.mrb[0].mxu0
      %v1071 = vpop.f32.mrb[0].mxu0
      %v1072 = vadd.f32 %v929, %v1071
      %v1073 = vpop.f32.mrb[0].mxu0
      %1074 = vmatprep.mubr.bf16.mxu0 0
      %1075 = vmatmul.mubr.bf16.gmra.mrb[0].mxu0 %v885
      %v1076 = vpop.f32.mrb[0].mxu0
      %v1077 = vadd.f32 %v929, %v1076
      %v1078 = vpop.f32.mrb[0].mxu0
      %v1079 = vpop.f32.mrb[0].mxu0
      %v1080 = vadd.f32 %v929, %v1079
      %v1081 = vpop.f32.mrb[0].mxu0
      %1082 = vmatprep.mubr.bf16.mxu0 0
      %1083 = vmatmul.mubr.bf16.gmra.mrb[0].mxu0 %v886
      %v1084 = vpop.f32.mrb[0].mxu0
      %v1085 = vadd.f32 %v929, %v1084
      %v1086 = vpop.f32.mrb[0].mxu0
      %v1087 = vpop.f32.mrb[0].mxu0
      %v1088 = vadd.f32 %v929, %v1087
      %v1089 = vpop.f32.mrb[0].mxu0
      %1090 = vmatprep.mubr.bf16.mxu0 0
      %1091 = vmatmul.mubr.bf16.gmra.mrb[0].mxu0 %v887
      %v1092 = vpop.f32.mrb[0].mxu0
      %v1093 = vadd.f32 %v929, %v1092
      %v1094 = vpop.f32.mrb[0].mxu0
      %v1095 = vpop.f32.mrb[0].mxu0
      %v1096 = vadd.f32 %v929, %v1095
      %v1097 = vpop.f32.mrb[0].mxu0
      %1098 = vmatprep.mubr.bf16.mxu0 0
      %1099 = vmatmul.mubr.bf16.gmra.mrb[0].mxu0 %v888
      %v1100 = vpop.f32.mrb[0].mxu0
      %v1101 = vadd.f32 %v929, %v1100
      %v1102 = vpop.f32.mrb[0].mxu0
      %v1103 = vpop.f32.mrb[0].mxu0
      %v1104 = vadd.f32 %v929, %v1103
      %v1105 = vpop.f32.mrb[0].mxu0
      %1106 = vmatprep.mubr.bf16.mxu0 0
      %1107 = vmatmul.mubr.bf16.gmra.mrb[0].mxu0 %v889
      %v1108 = vpop.f32.mrb[0].mxu0
      %v1109 = vadd.f32 %v929, %v1108
      %v1110 = vpop.f32.mrb[0].mxu0
      %v1111 = vpop.f32.mrb[0].mxu0
      %v1112 = vadd.f32 %v929, %v1111
      %v1113 = vpop.f32.mrb[0].mxu0
      %1114 = vmatprep.mubr.bf16.mxu0 0
      %1115 = vmatmul.mubr.bf16.gmra.mrb[0].mxu0 %v890
      %v1116 = vpop.f32.mrb[0].mxu0
      %v1117 = vadd.f32 %v929, %v1116
      %v1118 = vpop.f32.mrb[0].mxu0
      %v1119 = vpop.f32.mrb[0].mxu0
      %v1120 = vadd.f32 %v929, %v1119
      %v1121 = vpop.f32.mrb[0].mxu0
      %1122 = vmatprep.mubr.bf16.mxu0 0
      %1123 = vmatmul.mubr.bf16.gmra.mrb[0].mxu0 %v891
      %v1124 = vpop.f32.mrb[0].mxu0
      %v1125 = vadd.f32 %v929, %v1124
      %v1126 = vpop.f32.mrb[0].mxu0
      %v1127 = vpop.f32.mrb[0].mxu0
      %v1128 = vadd.f32 %v929, %v1127
      %v1129 = vpop.f32.mrb[0].mxu0
      %1130 = vmatprep.mubr.bf16.mxu0 0
      %1131 = vmatmul.mubr.bf16.gmra.mrb[0].mxu0 %v892
      %v1132 = vpop.f32.mrb[0].mxu0
      %v1133 = vadd.f32 %v929, %v1132
      %v1134 = vpop.f32.mrb[0].mxu0
      %v1135 = vpop.f32.mrb[0].mxu0
      %v1136 = vadd.f32 %v929, %v1135
      %v1137 = vpop.f32.mrb[0].mxu0
      %1138 = vmatprep.mubr.bf16.mxu0 0
      %1139 = vmatmul.mubr.bf16.gmra.mrb[0].mxu0 %v893
      %v1140 = vpop.f32.mrb[0].mxu0
      %v1141 = vadd.f32 %v929, %v1140
      %v1142 = vpop.f32.mrb[0].mxu0
      %v1143 = vpop.f32.mrb[0].mxu0
      %v1144 = vadd.f32 %v929, %v1143
      %v1145 = vpop.f32.mrb[0].mxu0
      %1146 = vmatprep.mubr.bf16.mxu0 0
      %1147 = vmatmul.mubr.bf16.gmra.mrb[0].mxu0 %v894
      %v1148 = vpop.f32.mrb[0].mxu0
      %v1149 = vadd.f32 %v929, %v1148
      %v1150 = vpop.f32.mrb[0].mxu0
      %v1151 = vpop.f32.mrb[0].mxu0
      %v1152 = vadd.f32 %v929, %v1151
      %v1153 = vpop.f32.mrb[0].mxu0
      %1154 = vmatprep.mubr.bf16.mxu0 0
      %1155 = vmatmul.mubr.bf16.gmra.mrb[0].mxu0 %v895
      %v1156 = vpop.f32.mrb[0].mxu0
      %v1157 = vadd.f32 %v929, %v1156
      %v1158 = vpop.f32.mrb[0].mxu0
      %v1159 = vpop.f32.mrb[0].mxu0
      %v1160 = vadd.f32 %v929, %v1159
      %v1161 = vpop.f32.mrb[0].mxu0
      %1162 = vmatprep.mubr.bf16.mxu0 0
      %1163 = vmatmul.mubr.bf16.gmra.mrb[0].mxu0 %v896
      %v1164 = vpop.f32.mrb[0].mxu0
      %v1165 = vadd.f32 %v929, %v1164
      %v1166 = vpop.f32.mrb[0].mxu0
      %v1167 = vpop.f32.mrb[0].mxu0
      %v1168 = vadd.f32 %v929, %v1167
      %v1169 = vpop.f32.mrb[0].mxu0
      %1170 = vmatprep.mubr.bf16.mxu0 0
      %1171 = vmatmul.mubr.bf16.gmra.mrb[0].mxu0 %v897
      %v1172 = vpop.f32.mrb[0].mxu0
      %v1173 = vadd.f32 %v929, %v1172
      %v1174 = vpop.f32.mrb[0].mxu0
      %v1175 = vpop.f32.mrb[0].mxu0
      %v1176 = vadd.f32 %v929, %v1175
      %v1177 = vpop.f32.mrb[0].mxu0
      %1178 = vmatprep.mubr.bf16.mxu0 0
      %1179 = vmatmul.mubr.bf16.gmra.mrb[0].mxu0 %v898
      %v1180 = vpop.f32.mrb[0].mxu0
      %v1181 = vadd.f32 %v929, %v1180
      %v1182 = vpop.f32.mrb[0].mxu0
      %v1183 = vpop.f32.mrb[0].mxu0
      %v1184 = vadd.f32 %v929, %v1183
      %v1185 = vpop.f32.mrb[0].mxu0
      %1186 = vmatprep.mubr.bf16.mxu0 0
      %1187 = vmatmul.mubr.bf16.gmra.mrb[0].mxu0 %v899
      %v1188 = vpop.f32.mrb[0].mxu0
      %v1189 = vadd.f32 %v929, %v1188
      %v1190 = vpop.f32.mrb[0].mxu0
      %v1191 = vpop.f32.mrb[0].mxu0
      %v1192 = vadd.f32 %v929, %v1191
      %v1193 = vpop.f32.mrb[0].mxu0
      %1194 = vmatprep.mubr.bf16.mxu0 0
      %1195 = vmatmul.mubr.bf16.gmra.mrb[0].mxu0 %v900
      %v1196 = vpop.f32.mrb[0].mxu0
      %v1197 = vadd.f32 %v929, %v1196
      %v1198 = vpop.f32.mrb[0].mxu0
      %v1199 = vpop.f32.mrb[0].mxu0
      %v1200 = vadd.f32 %v929, %v1199
      %v1201 = vpop.f32.mrb[0].mxu0
      %1202 = vmatprep.mubr.bf16.mxu0 0
      %1203 = vmatmul.mubr.bf16.gmra.mrb[0].mxu0 %v901
      %v1204 = vpop.f32.mrb[0].mxu0
      %v1205 = vadd.f32 %v929, %v1204
      %v1206 = vpop.f32.mrb[0].mxu0
      %v1207 = vpop.f32.mrb[0].mxu0
      %v1208 = vadd.f32 %v929, %v1207
      %v1209 = vpop.f32.mrb[0].mxu0
      %1210 = vmatprep.mubr.bf16.mxu0 0
      %1211 = vmatmul.mubr.bf16.gmra.mrb[0].mxu0 %v902
      %v1212 = vpop.f32.mrb[0].mxu0
      %v1213 = vadd.f32 %v929, %v1212
      %v1214 = vpop.f32.mrb[0].mxu0
      %v1215 = vpop.f32.mrb[0].mxu0
      %v1216 = vadd.f32 %v929, %v1215
      %v1217 = vpop.f32.mrb[0].mxu0
      %1218 = vmatprep.mubr.bf16.mxu0 0
      %1219 = vmatmul.mubr.bf16.gmra.mrb[0].mxu0 %v903
      %v1220 = vpop.f32.mrb[0].mxu0
      %v1221 = vadd.f32 %v929, %v1220
      %v1222 = vpop.f32.mrb[0].mxu0
      %v1223 = vpop.f32.mrb[0].mxu0
      %v1224 = vadd.f32 %v929, %v1223
      %v1225 = vpop.f32.mrb[0].mxu0
      %1226 = vmatprep.mubr.bf16.mxu0 0
      %1227 = vmatmul.mubr.bf16.gmra.mrb[0].mxu0 %v904
      %v1228 = vpop.f32.mrb[0].mxu0
      %v1229 = vadd.f32 %v929, %v1228
      %v1230 = vpop.f32.mrb[0].mxu0
      %v1231 = vpop.f32.mrb[0].mxu0
      %v1232 = vadd.f32 %v929, %v1231
      %v1233 = vpop.f32.mrb[0].mxu0
      %1234 = vmatprep.mubr.bf16.mxu0 0
      %1235 = vmatmul.mubr.bf16.gmra.mrb[0].mxu0 %v905
      %v1236 = vpop.f32.mrb[0].mxu0
      %v1237 = vadd.f32 %v929, %v1236
      %v1238 = vpop.f32.mrb[0].mxu0
      %v1239 = vpop.f32.mrb[0].mxu0
      %v1240 = vadd.f32 %v929, %v1239
      %v1241 = vpop.f32.mrb[0].mxu0
      %1242 = vmatprep.mubr.bf16.mxu0 0
      %1243 = vmatmul.mubr.bf16.gmra.mrb[0].mxu0 %v906
      %v1244 = vpop.f32.mrb[0].mxu0
      %v1245 = vadd.f32 %v929, %v1244
      %v1246 = vpop.f32.mrb[0].mxu0
      %v1247 = vpop.f32.mrb[0].mxu0
      %v1248 = vadd.f32 %v929, %v1247
      %v1249 = vpop.f32.mrb[0].mxu0
      %1250 = vmatprep.mubr.bf16.mxu0 0
      %1251 = vmatmul.mubr.bf16.gmra.mrb[0].mxu0 %v907
      %v1252 = vpop.f32.mrb[0].mxu0
      %v1253 = vadd.f32 %v929, %v1252
      %v1254 = vpop.f32.mrb[0].mxu0
      %v1255 = vpop.f32.mrb[0].mxu0
      %v1256 = vadd.f32 %v929, %v1255
      %v1257 = vpop.f32.mrb[0].mxu0
      %1258 = vmatprep.mubr.bf16.mxu0 0
      %1259 = vmatmul.mubr.bf16.gmra.mrb[0].mxu0 %v908
      %v1260 = vpop.f32.mrb[0].mxu0
      %v1261 = vadd.f32 %v929, %v1260
      %v1262 = vpop.f32.mrb[0].mxu0
      %v1263 = vpop.f32.mrb[0].mxu0
      %v1264 = vadd.f32 %v929, %v1263
      %v1265 = vpop.f32.mrb[0].mxu0
      %1266 = vdwg.mxu0
      %v1267 = vmax.f32 %v1013, 0.0
      %v1268 = vmax.f32 %v1016, 0.0
      %v1269 = vmax.f32 %v1021, 0.0
      %v1270 = vmax.f32 %v1024, 0.0
      %v1271 = vmax.f32 %v1029, 0.0
      %v1272 = vmax.f32 %v1032, 0.0
      %v1273 = vmax.f32 %v1037, 0.0
      %v1274 = vmax.f32 %v1040, 0.0
      %v1275 = vmax.f32 %v1045, 0.0
      %v1276 = vmax.f32 %v1048, 0.0
      %v1277 = vmax.f32 %v1053, 0.0
      %v1278 = vmax.f32 %v1056, 0.0
      %v1279 = vmax.f32 %v1061, 0.0
      %v1280 = vmax.f32 %v1064, 0.0
      %v1281 = vmax.f32 %v1069, 0.0
      %v1282 = vmax.f32 %v1072, 0.0
      %v1283 = vmax.f32 %v1077, 0.0
      %v1284 = vmax.f32 %v1080, 0.0
      %v1285 = vmax.f32 %v1085, 0.0
      %v1286 = vmax.f32 %v1088, 0.0
      %v1287 = vmax.f32 %v1093, 0.0
      %v1288 = vmax.f32 %v1096, 0.0
      %v1289 = vmax.f32 %v1101, 0.0
      %v1290 = vmax.f32 %v1104, 0.0
      %v1291 = vmax.f32 %v1109, 0.0
      %v1292 = vmax.f32 %v1112, 0.0
      %v1293 = vmax.f32 %v1117, 0.0
      %v1294 = vmax.f32 %v1120, 0.0
      %v1295 = vmax.f32 %v1125, 0.0
      %v1296 = vmax.f32 %v1128, 0.0
      %v1297 = vmax.f32 %v1133, 0.0
      %v1298 = vmax.f32 %v1136, 0.0
      %v1299 = vmax.f32 %v1141, 0.0
      %v1300 = vmax.f32 %v1144, 0.0
      %v1301 = vmax.f32 %v1149, 0.0
      %v1302 = vmax.f32 %v1152, 0.0
      %v1303 = vmax.f32 %v1157, 0.0
      %v1304 = vmax.f32 %v1160, 0.0
      %v1305 = vmax.f32 %v1165, 0.0
      %v1306 = vmax.f32 %v1168, 0.0
      %v1307 = vmax.f32 %v1173, 0.0
      %v1308 = vmax.f32 %v1176, 0.0
      %v1309 = vmax.f32 %v1181, 0.0
      %v1310 = vmax.f32 %v1184, 0.0
      %v1311 = vmax.f32 %v1189, 0.0
      %v1312 = vmax.f32 %v1192, 0.0
      %v1313 = vmax.f32 %v1197, 0.0
      %v1314 = vmax.f32 %v1200, 0.0
      %v1315 = vmax.f32 %v1205, 0.0
      %v1316 = vmax.f32 %v1208, 0.0
      %v1317 = vmax.f32 %v1213, 0.0
      %v1318 = vmax.f32 %v1216, 0.0
      %v1319 = vmax.f32 %v1221, 0.0
      %v1320 = vmax.f32 %v1224, 0.0
      %v1321 = vmax.f32 %v1229, 0.0
      %v1322 = vmax.f32 %v1232, 0.0
      %v1323 = vmax.f32 %v1237, 0.0
      %v1324 = vmax.f32 %v1240, 0.0
      %v1325 = vmax.f32 %v1245, 0.0
      %v1326 = vmax.f32 %v1248, 0.0
      %v1327 = vmax.f32 %v1253, 0.0
      %v1328 = vmax.f32 %v1256, 0.0
      %v1329 = vmax.f32 %v1261, 0.0
      %v1330 = vmax.f32 %v1264, 0.0
      %v1331 = vpack.c.bf16 %v1268, %v1267
      %v1332 = vpack.c.bf16 %v1270, %v1269
      %v1333 = vpack.c.bf16 %v1272, %v1271
      %v1334 = vpack.c.bf16 %v1274, %v1273
      %v1335 = vpack.c.bf16 %v1276, %v1275
      %v1336 = vpack.c.bf16 %v1278, %v1277
      %v1337 = vpack.c.bf16 %v1280, %v1279
      %v1338 = vpack.c.bf16 %v1282, %v1281
      %v1339 = vpack.c.bf16 %v1284, %v1283
      %v1340 = vpack.c.bf16 %v1286, %v1285
      %v1341 = vpack.c.bf16 %v1288, %v1287
      %v1342 = vpack.c.bf16 %v1290, %v1289
      %v1343 = vpack.c.bf16 %v1292, %v1291
      %v1344 = vpack.c.bf16 %v1294, %v1293
      %v1345 = vpack.c.bf16 %v1296, %v1295
      %v1346 = vpack.c.bf16 %v1298, %v1297
      %v1347 = vpack.c.bf16 %v1300, %v1299
      %v1348 = vpack.c.bf16 %v1302, %v1301
      %v1349 = vpack.c.bf16 %v1304, %v1303
      %v1350 = vpack.c.bf16 %v1306, %v1305
      %v1351 = vpack.c.bf16 %v1308, %v1307
      %v1352 = vpack.c.bf16 %v1310, %v1309
      %v1353 = vpack.c.bf16 %v1312, %v1311
      %v1354 = vpack.c.bf16 %v1314, %v1313
      %v1355 = vpack.c.bf16 %v1316, %v1315
      %v1356 = vpack.c.bf16 %v1318, %v1317
      %v1357 = vpack.c.bf16 %v1320, %v1319
      %v1358 = vpack.c.bf16 %v1322, %v1321
      %v1359 = vpack.c.bf16 %v1324, %v1323
      %v1360 = vpack.c.bf16 %v1326, %v1325
      %v1361 = vpack.c.bf16 %v1328, %v1327
      %v1362 = vpack.c.bf16 %v1330, %v1329
      %v1363 = vld [vmem:[%s3] sm:$0xf]
      %v1364 = vld [vmem:[%s3 + $0x4] sm:$0xf]
      %v1365 = vld [vmem:[%s3 + $0x8] sm:$0xf]
      %v1366 = vld [vmem:[%s3 + $0xc] sm:$0xf]
      %v1367 = vld [vmem:[%s3 + $0x10] sm:$0xf]
      %v1368 = vld [vmem:[%s3 + $0x14] sm:$0xf]
      %v1369 = vld [vmem:[%s3 + $0x18] sm:$0xf]
      %v1370 = vld [vmem:[%s3 + $0x1c] sm:$0xf]
      %v1371 = vld [vmem:[%s3 + $0x20] sm:$0xf]
      %v1372 = vld [vmem:[%s3 + $0x24] sm:$0xf]
      %v1373 = vld [vmem:[%s3 + $0x28] sm:$0xf]
      %v1374 = vld [vmem:[%s3 + $0x2c] sm:$0xf]
      %v1375 = vld [vmem:[%s3 + $0x30] sm:$0xf]
      %v1376 = vld [vmem:[%s3 + $0x34] sm:$0xf]
      %v1377 = vld [vmem:[%s3 + $0x38] sm:$0xf]
      %v1378 = vld [vmem:[%s3 + $0x3c] sm:$0xf]
      %v1379 = vld [vmem:[%s7 + $0x2] sm:$0x1]
      %v1380 = vlaneseq
      %v1381 = vshrl.u32 %v1380, 7
      %v1382 = vsub.s32 0, %v1381
      %v1383 = vrot.slane %v1379, %v1382
      %v1400 = vunpack.c.l.b16 %v1363
      %v1401 = vunpack.c.l.b16 %v1364
      %v1402 = vunpack.c.l.b16 %v1365
      %v1403 = vunpack.c.l.b16 %v1366
      %v1404 = vunpack.c.l.b16 %v1367
      %v1405 = vunpack.c.l.b16 %v1368
      %v1406 = vunpack.c.l.b16 %v1369
      %v1407 = vunpack.c.l.b16 %v1370
      %v1408 = vunpack.c.l.b16 %v1371
      %v1409 = vunpack.c.l.b16 %v1372
      %v1410 = vunpack.c.l.b16 %v1373
      %v1411 = vunpack.c.l.b16 %v1374
      %v1412 = vunpack.c.l.b16 %v1375
      %v1413 = vunpack.c.l.b16 %v1376
      %v1414 = vunpack.c.l.b16 %v1377
      %v1415 = vunpack.c.l.b16 %v1378
      %v1416 = vpack.c.b16 %v1401, %v1400
      %v1417 = vpack.c.b16 %v1403, %v1402
      %v1418 = vpack.c.b16 %v1405, %v1404
      %v1419 = vpack.c.b16 %v1407, %v1406
      %v1420 = vpack.c.b16 %v1409, %v1408
      %v1421 = vpack.c.b16 %v1411, %v1410
      %v1422 = vpack.c.b16 %v1413, %v1412
      %v1423 = vpack.c.b16 %v1415, %v1414
      %1432 = vmatprep.subr.bf16.mxu0 0
      %1433 = vmatpush1.bf16.msra.mxu0 %v1416
      %1434 = vmatprep.subr.bf16.mxu0 0
      %1435 = vmatpush1.bf16.msra.mxu0 %v1417
      %1436 = vmatprep.subr.bf16.mxu0 0
      %1437 = vmatpush1.bf16.msra.mxu0 %v1418
      %1438 = vmatprep.subr.bf16.mxu0 0
      %1439 = vmatpush1.bf16.msra.mxu0 %v1419
      %1440 = vmatprep.subr.bf16.mxu0 0
      %1441 = vmatpush1.bf16.msra.mxu0 %v1420
      %1442 = vmatprep.subr.bf16.mxu0 0
      %1443 = vmatpush1.bf16.msra.mxu0 %v1421
      %1444 = vmatprep.subr.bf16.mxu0 0
      %1445 = vmatpush1.bf16.msra.mxu0 %v1422
      %1446 = vmatprep.subr.bf16.mxu0 0
      %1447 = vmatpush1.bf16.msra.mxu0 %v1423
      %1448 = vmatprep.subr.bf16.mxu0 0
      %1449 = vmatpush1.bf16.msra.mxu0 0
      %1450 = vmatprep.subr.bf16.mxu0 0
      %1451 = vmatpush1.bf16.msra.mxu0 0
      %1452 = vmatprep.subr.bf16.mxu0 0
      %1453 = vmatpush1.bf16.msra.mxu0 0
      %1454 = vmatprep.subr.bf16.mxu0 0
      %1455 = vmatpush1.bf16.msra.mxu0 0
      %1456 = vmatprep.subr.bf16.mxu0 0
      %1457 = vmatpush1.bf16.msra.mxu0 0
      %1458 = vmatprep.subr.bf16.mxu0 0
      %1459 = vmatpush1.bf16.msra.mxu0 0
      %1460 = vmatprep.subr.bf16.mxu0 0
      %1461 = vmatpush1.bf16.msra.mxu0 0
      %1462 = vmatprep.subr.bf16.mxu0 0
      %1463 = vmatpush1.bf16.msra.mxu0 0
      %1464 = vmatprep.mubr.bf16.mxu0 0
      %1465 = vmatmul.mubr.bf16.gmra.mrb[0].mxu0 %v1331
      %v1466 = vpop.f32.mrb[0].mxu0
      %v1467 = vadd.f32 %v1383, %v1466
      %v1468 = vpop.f32.mrb[0].mxu0
      %v1469 = vpop.f32.mrb[0].mxu0
      %v1470 = vadd.f32 %v1383, %v1469
      %v1471 = vpop.f32.mrb[0].mxu0
      %1472 = vmatprep.mubr.bf16.mxu0 0
      %1473 = vmatmul.mubr.bf16.gmra.mrb[0].mxu0 %v1332
      %v1474 = vpop.f32.mrb[0].mxu0
      %v1475 = vadd.f32 %v1383, %v1474
      %v1476 = vpop.f32.mrb[0].mxu0
      %v1477 = vpop.f32.mrb[0].mxu0
      %v1478 = vadd.f32 %v1383, %v1477
      %v1479 = vpop.f32.mrb[0].mxu0
      %1480 = vmatprep.mubr.bf16.mxu0 0
      %1481 = vmatmul.mubr.bf16.gmra.mrb[0].mxu0 %v1333
      %v1482 = vpop.f32.mrb[0].mxu0
      %v1483 = vadd.f32 %v1383, %v1482
      %v1484 = vpop.f32.mrb[0].mxu0
      %v1485 = vpop.f32.mrb[0].mxu0
      %v1486 = vadd.f32 %v1383, %v1485
      %v1487 = vpop.f32.mrb[0].mxu0
      %1488 = vmatprep.mubr.bf16.mxu0 0
      %1489 = vmatmul.mubr.bf16.gmra.mrb[0].mxu0 %v1334
      %v1490 = vpop.f32.mrb[0].mxu0
      %v1491 = vadd.f32 %v1383, %v1490
      %v1492 = vpop.f32.mrb[0].mxu0
      %v1493 = vpop.f32.mrb[0].mxu0
      %v1494 = vadd.f32 %v1383, %v1493
      %v1495 = vpop.f32.mrb[0].mxu0
      %1496 = vmatprep.mubr.bf16.mxu0 0
      %1497 = vmatmul.mubr.bf16.gmra.mrb[0].mxu0 %v1335
      %v1498 = vpop.f32.mrb[0].mxu0
      %v1499 = vadd.f32 %v1383, %v1498
      %v1500 = vpop.f32.mrb[0].mxu0
      %v1501 = vpop.f32.mrb[0].mxu0
      %v1502 = vadd.f32 %v1383, %v1501
      %v1503 = vpop.f32.mrb[0].mxu0
      %1504 = vmatprep.mubr.bf16.mxu0 0
      %1505 = vmatmul.mubr.bf16.gmra.mrb[0].mxu0 %v1336
      %v1506 = vpop.f32.mrb[0].mxu0
      %v1507 = vadd.f32 %v1383, %v1506
      %v1508 = vpop.f32.mrb[0].mxu0
      %v1509 = vpop.f32.mrb[0].mxu0
      %v1510 = vadd.f32 %v1383, %v1509
      %v1511 = vpop.f32.mrb[0].mxu0
      %1512 = vmatprep.mubr.bf16.mxu0 0
      %1513 = vmatmul.mubr.bf16.gmra.mrb[0].mxu0 %v1337
      %v1514 = vpop.f32.mrb[0].mxu0
      %v1515 = vadd.f32 %v1383, %v1514
      %v1516 = vpop.f32.mrb[0].mxu0
      %v1517 = vpop.f32.mrb[0].mxu0
      %v1518 = vadd.f32 %v1383, %v1517
      %v1519 = vpop.f32.mrb[0].mxu0
      %1520 = vmatprep.mubr.bf16.mxu0 0
      %1521 = vmatmul.mubr.bf16.gmra.mrb[0].mxu0 %v1338
      %v1522 = vpop.f32.mrb[0].mxu0
      %v1523 = vadd.f32 %v1383, %v1522
      %v1524 = vpop.f32.mrb[0].mxu0
      %v1525 = vpop.f32.mrb[0].mxu0
      %v1526 = vadd.f32 %v1383, %v1525
      %v1527 = vpop.f32.mrb[0].mxu0
      %1528 = vmatprep.mubr.bf16.mxu0 0
      %1529 = vmatmul.mubr.bf16.gmra.mrb[0].mxu0 %v1339
      %v1530 = vpop.f32.mrb[0].mxu0
      %v1531 = vadd.f32 %v1383, %v1530
      %v1532 = vpop.f32.mrb[0].mxu0
      %v1533 = vpop.f32.mrb[0].mxu0
      %v1534 = vadd.f32 %v1383, %v1533
      %v1535 = vpop.f32.mrb[0].mxu0
      %1536 = vmatprep.mubr.bf16.mxu0 0
      %1537 = vmatmul.mubr.bf16.gmra.mrb[0].mxu0 %v1340
      %v1538 = vpop.f32.mrb[0].mxu0
      %v1539 = vadd.f32 %v1383, %v1538
      %v1540 = vpop.f32.mrb[0].mxu0
      %v1541 = vpop.f32.mrb[0].mxu0
      %v1542 = vadd.f32 %v1383, %v1541
      %v1543 = vpop.f32.mrb[0].mxu0
      %1544 = vmatprep.mubr.bf16.mxu0 0
      %1545 = vmatmul.mubr.bf16.gmra.mrb[0].mxu0 %v1341
      %v1546 = vpop.f32.mrb[0].mxu0
      %v1547 = vadd.f32 %v1383, %v1546
      %v1548 = vpop.f32.mrb[0].mxu0
      %v1549 = vpop.f32.mrb[0].mxu0
      %v1550 = vadd.f32 %v1383, %v1549
      %v1551 = vpop.f32.mrb[0].mxu0
      %1552 = vmatprep.mubr.bf16.mxu0 0
      %1553 = vmatmul.mubr.bf16.gmra.mrb[0].mxu0 %v1342
      %v1554 = vpop.f32.mrb[0].mxu0
      %v1555 = vadd.f32 %v1383, %v1554
      %v1556 = vpop.f32.mrb[0].mxu0
      %v1557 = vpop.f32.mrb[0].mxu0
      %v1558 = vadd.f32 %v1383, %v1557
      %v1559 = vpop.f32.mrb[0].mxu0
      %1560 = vmatprep.mubr.bf16.mxu0 0
      %1561 = vmatmul.mubr.bf16.gmra.mrb[0].mxu0 %v1343
      %v1562 = vpop.f32.mrb[0].mxu0
      %v1563 = vadd.f32 %v1383, %v1562
      %v1564 = vpop.f32.mrb[0].mxu0
      %v1565 = vpop.f32.mrb[0].mxu0
      %v1566 = vadd.f32 %v1383, %v1565
      %v1567 = vpop.f32.mrb[0].mxu0
      %1568 = vmatprep.mubr.bf16.mxu0 0
      %1569 = vmatmul.mubr.bf16.gmra.mrb[0].mxu0 %v1344
      %v1570 = vpop.f32.mrb[0].mxu0
      %v1571 = vadd.f32 %v1383, %v1570
      %v1572 = vpop.f32.mrb[0].mxu0
      %v1573 = vpop.f32.mrb[0].mxu0
      %v1574 = vadd.f32 %v1383, %v1573
      %v1575 = vpop.f32.mrb[0].mxu0
      %1576 = vmatprep.mubr.bf16.mxu0 0
      %1577 = vmatmul.mubr.bf16.gmra.mrb[0].mxu0 %v1345
      %v1578 = vpop.f32.mrb[0].mxu0
      %v1579 = vadd.f32 %v1383, %v1578
      %v1580 = vpop.f32.mrb[0].mxu0
      %v1581 = vpop.f32.mrb[0].mxu0
      %v1582 = vadd.f32 %v1383, %v1581
      %v1583 = vpop.f32.mrb[0].mxu0
      %1584 = vmatprep.mubr.bf16.mxu0 0
      %1585 = vmatmul.mubr.bf16.gmra.mrb[0].mxu0 %v1346
      %v1586 = vpop.f32.mrb[0].mxu0
      %v1587 = vadd.f32 %v1383, %v1586
      %v1588 = vpop.f32.mrb[0].mxu0
      %v1589 = vpop.f32.mrb[0].mxu0
      %v1590 = vadd.f32 %v1383, %v1589
      %v1591 = vpop.f32.mrb[0].mxu0
      %1592 = vmatprep.mubr.bf16.mxu0 0
      %1593 = vmatmul.mubr.bf16.gmra.mrb[0].mxu0 %v1347
      %v1594 = vpop.f32.mrb[0].mxu0
      %v1595 = vadd.f32 %v1383, %v1594
      %v1596 = vpop.f32.mrb[0].mxu0
      %v1597 = vpop.f32.mrb[0].mxu0
      %v1598 = vadd.f32 %v1383, %v1597
      %v1599 = vpop.f32.mrb[0].mxu0
      %1600 = vmatprep.mubr.bf16.mxu0 0
      %1601 = vmatmul.mubr.bf16.gmra.mrb[0].mxu0 %v1348
      %v1602 = vpop.f32.mrb[0].mxu0
      %v1603 = vadd.f32 %v1383, %v1602
      %v1604 = vpop.f32.mrb[0].mxu0
      %v1605 = vpop.f32.mrb[0].mxu0
      %v1606 = vadd.f32 %v1383, %v1605
      %v1607 = vpop.f32.mrb[0].mxu0
      %1608 = vmatprep.mubr.bf16.mxu0 0
      %1609 = vmatmul.mubr.bf16.gmra.mrb[0].mxu0 %v1349
      %v1610 = vpop.f32.mrb[0].mxu0
      %v1611 = vadd.f32 %v1383, %v1610
      %v1612 = vpop.f32.mrb[0].mxu0
      %v1613 = vpop.f32.mrb[0].mxu0
      %v1614 = vadd.f32 %v1383, %v1613
      %v1615 = vpop.f32.mrb[0].mxu0
      %1616 = vmatprep.mubr.bf16.mxu0 0
      %1617 = vmatmul.mubr.bf16.gmra.mrb[0].mxu0 %v1350
      %v1618 = vpop.f32.mrb[0].mxu0
      %v1619 = vadd.f32 %v1383, %v1618
      %v1620 = vpop.f32.mrb[0].mxu0
      %v1621 = vpop.f32.mrb[0].mxu0
      %v1622 = vadd.f32 %v1383, %v1621
      %v1623 = vpop.f32.mrb[0].mxu0
      %1624 = vmatprep.mubr.bf16.mxu0 0
      %1625 = vmatmul.mubr.bf16.gmra.mrb[0].mxu0 %v1351
      %v1626 = vpop.f32.mrb[0].mxu0
      %v1627 = vadd.f32 %v1383, %v1626
      %v1628 = vpop.f32.mrb[0].mxu0
      %v1629 = vpop.f32.mrb[0].mxu0
      %v1630 = vadd.f32 %v1383, %v1629
      %v1631 = vpop.f32.mrb[0].mxu0
      %1632 = vmatprep.mubr.bf16.mxu0 0
      %1633 = vmatmul.mubr.bf16.gmra.mrb[0].mxu0 %v1352
      %v1634 = vpop.f32.mrb[0].mxu0
      %v1635 = vadd.f32 %v1383, %v1634
      %v1636 = vpop.f32.mrb[0].mxu0
      %v1637 = vpop.f32.mrb[0].mxu0
      %v1638 = vadd.f32 %v1383, %v1637
      %v1639 = vpop.f32.mrb[0].mxu0
      %1640 = vmatprep.mubr.bf16.mxu0 0
      %1641 = vmatmul.mubr.bf16.gmra.mrb[0].mxu0 %v1353
      %v1642 = vpop.f32.mrb[0].mxu0
      %v1643 = vadd.f32 %v1383, %v1642
      %v1644 = vpop.f32.mrb[0].mxu0
      %v1645 = vpop.f32.mrb[0].mxu0
      %v1646 = vadd.f32 %v1383, %v1645
      %v1647 = vpop.f32.mrb[0].mxu0
      %1648 = vmatprep.mubr.bf16.mxu0 0
      %1649 = vmatmul.mubr.bf16.gmra.mrb[0].mxu0 %v1354
      %v1650 = vpop.f32.mrb[0].mxu0
      %v1651 = vadd.f32 %v1383, %v1650
      %v1652 = vpop.f32.mrb[0].mxu0
      %v1653 = vpop.f32.mrb[0].mxu0
      %v1654 = vadd.f32 %v1383, %v1653
      %v1655 = vpop.f32.mrb[0].mxu0
      %1656 = vmatprep.mubr.bf16.mxu0 0
      %1657 = vmatmul.mubr.bf16.gmra.mrb[0].mxu0 %v1355
      %v1658 = vpop.f32.mrb[0].mxu0
      %v1659 = vadd.f32 %v1383, %v1658
      %v1660 = vpop.f32.mrb[0].mxu0
      %v1661 = vpop.f32.mrb[0].mxu0
      %v1662 = vadd.f32 %v1383, %v1661
      %v1663 = vpop.f32.mrb[0].mxu0
      %1664 = vmatprep.mubr.bf16.mxu0 0
      %1665 = vmatmul.mubr.bf16.gmra.mrb[0].mxu0 %v1356
      %v1666 = vpop.f32.mrb[0].mxu0
      %v1667 = vadd.f32 %v1383, %v1666
      %v1668 = vpop.f32.mrb[0].mxu0
      %v1669 = vpop.f32.mrb[0].mxu0
      %v1670 = vadd.f32 %v1383, %v1669
      %v1671 = vpop.f32.mrb[0].mxu0
      %1672 = vmatprep.mubr.bf16.mxu0 0
      %1673 = vmatmul.mubr.bf16.gmra.mrb[0].mxu0 %v1357
      %v1674 = vpop.f32.mrb[0].mxu0
      %v1675 = vadd.f32 %v1383, %v1674
      %v1676 = vpop.f32.mrb[0].mxu0
      %v1677 = vpop.f32.mrb[0].mxu0
      %v1678 = vadd.f32 %v1383, %v1677
      %v1679 = vpop.f32.mrb[0].mxu0
      %1680 = vmatprep.mubr.bf16.mxu0 0
      %1681 = vmatmul.mubr.bf16.gmra.mrb[0].mxu0 %v1358
      %v1682 = vpop.f32.mrb[0].mxu0
      %v1683 = vadd.f32 %v1383, %v1682
      %v1684 = vpop.f32.mrb[0].mxu0
      %v1685 = vpop.f32.mrb[0].mxu0
      %v1686 = vadd.f32 %v1383, %v1685
      %v1687 = vpop.f32.mrb[0].mxu0
      %1688 = vmatprep.mubr.bf16.mxu0 0
      %1689 = vmatmul.mubr.bf16.gmra.mrb[0].mxu0 %v1359
      %v1690 = vpop.f32.mrb[0].mxu0
      %v1691 = vadd.f32 %v1383, %v1690
      %v1692 = vpop.f32.mrb[0].mxu0
      %v1693 = vpop.f32.mrb[0].mxu0
      %v1694 = vadd.f32 %v1383, %v1693
      %v1695 = vpop.f32.mrb[0].mxu0
      %1696 = vmatprep.mubr.bf16.mxu0 0
      %1697 = vmatmul.mubr.bf16.gmra.mrb[0].mxu0 %v1360
      %v1698 = vpop.f32.mrb[0].mxu0
      %v1699 = vadd.f32 %v1383, %v1698
      %v1700 = vpop.f32.mrb[0].mxu0
      %v1701 = vpop.f32.mrb[0].mxu0
      %v1702 = vadd.f32 %v1383, %v1701
      %v1703 = vpop.f32.mrb[0].mxu0
      %1704 = vmatprep.mubr.bf16.mxu0 0
      %1705 = vmatmul.mubr.bf16.gmra.mrb[0].mxu0 %v1361
      %v1706 = vpop.f32.mrb[0].mxu0
      %v1707 = vadd.f32 %v1383, %v1706
      %v1708 = vpop.f32.mrb[0].mxu0
      %v1709 = vpop.f32.mrb[0].mxu0
      %v1710 = vadd.f32 %v1383, %v1709
      %v1711 = vpop.f32.mrb[0].mxu0
      %1712 = vmatprep.mubr.bf16.mxu0 0
      %1713 = vmatmul.mubr.bf16.gmra.mrb[0].mxu0 %v1362
      %v1714 = vpop.f32.mrb[0].mxu0
      %v1715 = vadd.f32 %v1383, %v1714
      %v1716 = vpop.f32.mrb[0].mxu0
      %v1717 = vpop.f32.mrb[0].mxu0
      %v1718 = vadd.f32 %v1383, %v1717
      %v1719 = vpop.f32.mrb[0].mxu0
      %1720 = vdwg.mxu0
      %v1721 = vpack.c.bf16 %v1470, %v1467
      %v1722 = vpack.c.bf16 %v1478, %v1475
      %v1723 = vpack.c.bf16 %v1486, %v1483
      %v1724 = vpack.c.bf16 %v1494, %v1491
      %v1725 = vpack.c.bf16 %v1502, %v1499
      %v1726 = vpack.c.bf16 %v1510, %v1507
      %v1727 = vpack.c.bf16 %v1518, %v1515
      %v1728 = vpack.c.bf16 %v1526, %v1523
      %v1729 = vpack.c.bf16 %v1534, %v1531
      %v1730 = vpack.c.bf16 %v1542, %v1539
      %v1731 = vpack.c.bf16 %v1550, %v1547
      %v1732 = vpack.c.bf16 %v1558, %v1555
      %v1733 = vpack.c.bf16 %v1566, %v1563
      %v1734 = vpack.c.bf16 %v1574, %v1571
      %v1735 = vpack.c.bf16 %v1582, %v1579
      %v1736 = vpack.c.bf16 %v1590, %v1587
      %v1737 = vpack.c.bf16 %v1598, %v1595
      %v1738 = vpack.c.bf16 %v1606, %v1603
      %v1739 = vpack.c.bf16 %v1614, %v1611
      %v1740 = vpack.c.bf16 %v1622, %v1619
      %v1741 = vpack.c.bf16 %v1630, %v1627
      %v1742 = vpack.c.bf16 %v1638, %v1635
      %v1743 = vpack.c.bf16 %v1646, %v1643
      %v1744 = vpack.c.bf16 %v1654, %v1651
      %v1745 = vpack.c.bf16 %v1662, %v1659
      %v1746 = vpack.c.bf16 %v1670, %v1667
      %v1747 = vpack.c.bf16 %v1678, %v1675
      %v1748 = vpack.c.bf16 %v1686, %v1683
      %v1749 = vpack.c.bf16 %v1694, %v1691
      %v1750 = vpack.c.bf16 %v1702, %v1699
      %v1751 = vpack.c.bf16 %v1710, %v1707
      %v1752 = vpack.c.bf16 %v1718, %v1715
      %v1753 = vld [vmem:[%s4] sm:$0xf]
      %v1754 = vld [vmem:[%s4 + $0x4] sm:$0xf]
      %v1755 = vld [vmem:[%s4 + $0x8] sm:$0xf]
      %v1756 = vld [vmem:[%s4 + $0xc] sm:$0xf]
      %v1757 = vld [vmem:[%s4 + $0x10] sm:$0xf]
      %v1758 = vld [vmem:[%s4 + $0x14] sm:$0xf]
      %v1759 = vld [vmem:[%s4 + $0x18] sm:$0xf]
      %v1760 = vld [vmem:[%s4 + $0x1c] sm:$0xf]
      %v1761 = vld [vmem:[%s4 + $0x20] sm:$0xf]
      %v1762 = vld [vmem:[%s4 + $0x24] sm:$0xf]
      %v1763 = vld [vmem:[%s4 + $0x28] sm:$0xf]
      %v1764 = vld [vmem:[%s4 + $0x2c] sm:$0xf]
      %v1765 = vld [vmem:[%s4 + $0x30] sm:$0xf]
      %v1766 = vld [vmem:[%s4 + $0x34] sm:$0xf]
      %v1767 = vld [vmem:[%s4 + $0x38] sm:$0xf]
      %v1768 = vld [vmem:[%s4 + $0x3c] sm:$0xf]
      %v1769 = vld [vmem:[%s7 + $0x3] sm:$0x1]
      %v1770 = vlaneseq
      %v1771 = vshrl.u32 %v1770, 7
      %v1772 = vsub.s32 0, %v1771
      %v1773 = vrot.slane %v1769, %v1772
      %v1790 = vunpack.c.l.b16 %v1753
      %v1791 = vunpack.c.l.b16 %v1754
      %v1792 = vunpack.c.l.b16 %v1755
      %v1793 = vunpack.c.l.b16 %v1756
      %v1794 = vunpack.c.l.b16 %v1757
      %v1795 = vunpack.c.l.b16 %v1758
      %v1796 = vunpack.c.l.b16 %v1759
      %v1797 = vunpack.c.l.b16 %v1760
      %v1798 = vunpack.c.l.b16 %v1761
      %v1799 = vunpack.c.l.b16 %v1762
      %v1800 = vunpack.c.l.b16 %v1763
      %v1801 = vunpack.c.l.b16 %v1764
      %v1802 = vunpack.c.l.b16 %v1765
      %v1803 = vunpack.c.l.b16 %v1766
      %v1804 = vunpack.c.l.b16 %v1767
      %v1805 = vunpack.c.l.b16 %v1768
      %v1806 = vpack.c.b16 %v1791, %v1790
      %v1807 = vpack.c.b16 %v1793, %v1792
      %v1808 = vpack.c.b16 %v1795, %v1794
      %v1809 = vpack.c.b16 %v1797, %v1796
      %v1810 = vpack.c.b16 %v1799, %v1798
      %v1811 = vpack.c.b16 %v1801, %v1800
      %v1812 = vpack.c.b16 %v1803, %v1802
      %v1813 = vpack.c.b16 %v1805, %v1804
      %1822 = vmatprep.subr.bf16.mxu0 0
      %1823 = vmatpush1.bf16.msra.mxu0 %v1806
      %1824 = vmatprep.subr.bf16.mxu0 0
      %1825 = vmatpush1.bf16.msra.mxu0 %v1807
      %1826 = vmatprep.subr.bf16.mxu0 0
      %1827 = vmatpush1.bf16.msra.mxu0 %v1808
      %1828 = vmatprep.subr.bf16.mxu0 0
      %1829 = vmatpush1.bf16.msra.mxu0 %v1809
      %1830 = vmatprep.subr.bf16.mxu0 0
      %1831 = vmatpush1.bf16.msra.mxu0 %v1810
      %1832 = vmatprep.subr.bf16.mxu0 0
      %1833 = vmatpush1.bf16.msra.mxu0 %v1811
      %1834 = vmatprep.subr.bf16.mxu0 0
      %1835 = vmatpush1.bf16.msra.mxu0 %v1812
      %1836 = vmatprep.subr.bf16.mxu0 0
      %1837 = vmatpush1.bf16.msra.mxu0 %v1813
      %1838 = vmatprep.subr.bf16.mxu0 0
      %1839 = vmatpush1.bf16.msra.mxu0 0
      %1840 = vmatprep.subr.bf16.mxu0 0
      %1841 = vmatpush1.bf16.msra.mxu0 0
      %1842 = vmatprep.subr.bf16.mxu0 0
      %1843 = vmatpush1.bf16.msra.mxu0 0
      %1844 = vmatprep.subr.bf16.mxu0 0
      %1845 = vmatpush1.bf16.msra.mxu0 0
      %1846 = vmatprep.subr.bf16.mxu0 0
      %1847 = vmatpush1.bf16.msra.mxu0 0
      %1848 = vmatprep.subr.bf16.mxu0 0
      %1849 = vmatpush1.bf16.msra.mxu0 0
      %1850 = vmatprep.subr.bf16.mxu0 0
      %1851 = vmatpush1.bf16.msra.mxu0 0
      %1852 = vmatprep.subr.bf16.mxu0 0
      %1853 = vmatpush1.bf16.msra.mxu0 0
      %1854 = vmatprep.mubr.bf16.mxu0 0
      %1855 = vmatmul.mubr.bf16.gmra.mrb[0].mxu0 %v1721
      %v1856 = vpop.f32.mrb[0].mxu0
      %v1857 = vadd.f32 %v1773, %v1856
      %v1858 = vpop.f32.mrb[0].mxu0
      %v1859 = vpop.f32.mrb[0].mxu0
      %v1860 = vadd.f32 %v1773, %v1859
      %v1861 = vpop.f32.mrb[0].mxu0
      %1862 = vmatprep.mubr.bf16.mxu0 0
      %1863 = vmatmul.mubr.bf16.gmra.mrb[0].mxu0 %v1722
      %v1864 = vpop.f32.mrb[0].mxu0
      %v1865 = vadd.f32 %v1773, %v1864
      %v1866 = vpop.f32.mrb[0].mxu0
      %v1867 = vpop.f32.mrb[0].mxu0
      %v1868 = vadd.f32 %v1773, %v1867
      %v1869 = vpop.f32.mrb[0].mxu0
      %1870 = vmatprep.mubr.bf16.mxu0 0
      %1871 = vmatmul.mubr.bf16.gmra.mrb[0].mxu0 %v1723
      %v1872 = vpop.f32.mrb[0].mxu0
      %v1873 = vadd.f32 %v1773, %v1872
      %v1874 = vpop.f32.mrb[0].mxu0
      %v1875 = vpop.f32.mrb[0].mxu0
      %v1876 = vadd.f32 %v1773, %v1875
      %v1877 = vpop.f32.mrb[0].mxu0
      %1878 = vmatprep.mubr.bf16.mxu0 0
      %1879 = vmatmul.mubr.bf16.gmra.mrb[0].mxu0 %v1724
      %v1880 = vpop.f32.mrb[0].mxu0
      %v1881 = vadd.f32 %v1773, %v1880
      %v1882 = vpop.f32.mrb[0].mxu0
      %v1883 = vpop.f32.mrb[0].mxu0
      %v1884 = vadd.f32 %v1773, %v1883
      %v1885 = vpop.f32.mrb[0].mxu0
      %1886 = vmatprep.mubr.bf16.mxu0 0
      %1887 = vmatmul.mubr.bf16.gmra.mrb[0].mxu0 %v1725
      %v1888 = vpop.f32.mrb[0].mxu0
      %v1889 = vadd.f32 %v1773, %v1888
      %v1890 = vpop.f32.mrb[0].mxu0
      %v1891 = vpop.f32.mrb[0].mxu0
      %v1892 = vadd.f32 %v1773, %v1891
      %v1893 = vpop.f32.mrb[0].mxu0
      %1894 = vmatprep.mubr.bf16.mxu0 0
      %1895 = vmatmul.mubr.bf16.gmra.mrb[0].mxu0 %v1726
      %v1896 = vpop.f32.mrb[0].mxu0
      %v1897 = vadd.f32 %v1773, %v1896
      %v1898 = vpop.f32.mrb[0].mxu0
      %v1899 = vpop.f32.mrb[0].mxu0
      %v1900 = vadd.f32 %v1773, %v1899
      %v1901 = vpop.f32.mrb[0].mxu0
      %1902 = vmatprep.mubr.bf16.mxu0 0
      %1903 = vmatmul.mubr.bf16.gmra.mrb[0].mxu0 %v1727
      %v1904 = vpop.f32.mrb[0].mxu0
      %v1905 = vadd.f32 %v1773, %v1904
      %v1906 = vpop.f32.mrb[0].mxu0
      %v1907 = vpop.f32.mrb[0].mxu0
      %v1908 = vadd.f32 %v1773, %v1907
      %v1909 = vpop.f32.mrb[0].mxu0
      %1910 = vmatprep.mubr.bf16.mxu0 0
      %1911 = vmatmul.mubr.bf16.gmra.mrb[0].mxu0 %v1728
      %v1912 = vpop.f32.mrb[0].mxu0
      %v1913 = vadd.f32 %v1773, %v1912
      %v1914 = vpop.f32.mrb[0].mxu0
      %v1915 = vpop.f32.mrb[0].mxu0
      %v1916 = vadd.f32 %v1773, %v1915
      %v1917 = vpop.f32.mrb[0].mxu0
      %1918 = vmatprep.mubr.bf16.mxu0 0
      %1919 = vmatmul.mubr.bf16.gmra.mrb[0].mxu0 %v1729
      %v1920 = vpop.f32.mrb[0].mxu0
      %v1921 = vadd.f32 %v1773, %v1920
      %v1922 = vpop.f32.mrb[0].mxu0
      %v1923 = vpop.f32.mrb[0].mxu0
      %v1924 = vadd.f32 %v1773, %v1923
      %v1925 = vpop.f32.mrb[0].mxu0
      %1926 = vmatprep.mubr.bf16.mxu0 0
      %1927 = vmatmul.mubr.bf16.gmra.mrb[0].mxu0 %v1730
      %v1928 = vpop.f32.mrb[0].mxu0
      %v1929 = vadd.f32 %v1773, %v1928
      %v1930 = vpop.f32.mrb[0].mxu0
      %v1931 = vpop.f32.mrb[0].mxu0
      %v1932 = vadd.f32 %v1773, %v1931
      %v1933 = vpop.f32.mrb[0].mxu0
      %1934 = vmatprep.mubr.bf16.mxu0 0
      %1935 = vmatmul.mubr.bf16.gmra.mrb[0].mxu0 %v1731
      %v1936 = vpop.f32.mrb[0].mxu0
      %v1937 = vadd.f32 %v1773, %v1936
      %v1938 = vpop.f32.mrb[0].mxu0
      %v1939 = vpop.f32.mrb[0].mxu0
      %v1940 = vadd.f32 %v1773, %v1939
      %v1941 = vpop.f32.mrb[0].mxu0
      %1942 = vmatprep.mubr.bf16.mxu0 0
      %1943 = vmatmul.mubr.bf16.gmra.mrb[0].mxu0 %v1732
      %v1944 = vpop.f32.mrb[0].mxu0
      %v1945 = vadd.f32 %v1773, %v1944
      %v1946 = vpop.f32.mrb[0].mxu0
      %v1947 = vpop.f32.mrb[0].mxu0
      %v1948 = vadd.f32 %v1773, %v1947
      %v1949 = vpop.f32.mrb[0].mxu0
      %1950 = vmatprep.mubr.bf16.mxu0 0
      %1951 = vmatmul.mubr.bf16.gmra.mrb[0].mxu0 %v1733
      %v1952 = vpop.f32.mrb[0].mxu0
      %v1953 = vadd.f32 %v1773, %v1952
      %v1954 = vpop.f32.mrb[0].mxu0
      %v1955 = vpop.f32.mrb[0].mxu0
      %v1956 = vadd.f32 %v1773, %v1955
      %v1957 = vpop.f32.mrb[0].mxu0
      %1958 = vmatprep.mubr.bf16.mxu0 0
      %1959 = vmatmul.mubr.bf16.gmra.mrb[0].mxu0 %v1734
      %v1960 = vpop.f32.mrb[0].mxu0
      %v1961 = vadd.f32 %v1773, %v1960
      %v1962 = vpop.f32.mrb[0].mxu0
      %v1963 = vpop.f32.mrb[0].mxu0
      %v1964 = vadd.f32 %v1773, %v1963
      %v1965 = vpop.f32.mrb[0].mxu0
      %1966 = vmatprep.mubr.bf16.mxu0 0
      %1967 = vmatmul.mubr.bf16.gmra.mrb[0].mxu0 %v1735
      %v1968 = vpop.f32.mrb[0].mxu0
      %v1969 = vadd.f32 %v1773, %v1968
      %v1970 = vpop.f32.mrb[0].mxu0
      %v1971 = vpop.f32.mrb[0].mxu0
      %v1972 = vadd.f32 %v1773, %v1971
      %v1973 = vpop.f32.mrb[0].mxu0
      %1974 = vmatprep.mubr.bf16.mxu0 0
      %1975 = vmatmul.mubr.bf16.gmra.mrb[0].mxu0 %v1736
      %v1976 = vpop.f32.mrb[0].mxu0
      %v1977 = vadd.f32 %v1773, %v1976
      %v1978 = vpop.f32.mrb[0].mxu0
      %v1979 = vpop.f32.mrb[0].mxu0
      %v1980 = vadd.f32 %v1773, %v1979
      %v1981 = vpop.f32.mrb[0].mxu0
      %1982 = vmatprep.mubr.bf16.mxu0 0
      %1983 = vmatmul.mubr.bf16.gmra.mrb[0].mxu0 %v1737
      %v1984 = vpop.f32.mrb[0].mxu0
      %v1985 = vadd.f32 %v1773, %v1984
      %v1986 = vpop.f32.mrb[0].mxu0
      %v1987 = vpop.f32.mrb[0].mxu0
      %v1988 = vadd.f32 %v1773, %v1987
      %v1989 = vpop.f32.mrb[0].mxu0
      %1990 = vmatprep.mubr.bf16.mxu0 0
      %1991 = vmatmul.mubr.bf16.gmra.mrb[0].mxu0 %v1738
      %v1992 = vpop.f32.mrb[0].mxu0
      %v1993 = vadd.f32 %v1773, %v1992
      %v1994 = vpop.f32.mrb[0].mxu0
      %v1995 = vpop.f32.mrb[0].mxu0
      %v1996 = vadd.f32 %v1773, %v1995
      %v1997 = vpop.f32.mrb[0].mxu0
      %1998 = vmatprep.mubr.bf16.mxu0 0
      %1999 = vmatmul.mubr.bf16.gmra.mrb[0].mxu0 %v1739
      %v2000 = vpop.f32.mrb[0].mxu0
      %v2001 = vadd.f32 %v1773, %v2000
      %v2002 = vpop.f32.mrb[0].mxu0
      %v2003 = vpop.f32.mrb[0].mxu0
      %v2004 = vadd.f32 %v1773, %v2003
      %v2005 = vpop.f32.mrb[0].mxu0
      %2006 = vmatprep.mubr.bf16.mxu0 0
      %2007 = vmatmul.mubr.bf16.gmra.mrb[0].mxu0 %v1740
      %v2008 = vpop.f32.mrb[0].mxu0
      %v2009 = vadd.f32 %v1773, %v2008
      %v2010 = vpop.f32.mrb[0].mxu0
      %v2011 = vpop.f32.mrb[0].mxu0
      %v2012 = vadd.f32 %v1773, %v2011
      %v2013 = vpop.f32.mrb[0].mxu0
      %2014 = vmatprep.mubr.bf16.mxu0 0
      %2015 = vmatmul.mubr.bf16.gmra.mrb[0].mxu0 %v1741
      %v2016 = vpop.f32.mrb[0].mxu0
      %v2017 = vadd.f32 %v1773, %v2016
      %v2018 = vpop.f32.mrb[0].mxu0
      %v2019 = vpop.f32.mrb[0].mxu0
      %v2020 = vadd.f32 %v1773, %v2019
      %v2021 = vpop.f32.mrb[0].mxu0
      %2022 = vmatprep.mubr.bf16.mxu0 0
      %2023 = vmatmul.mubr.bf16.gmra.mrb[0].mxu0 %v1742
      %v2024 = vpop.f32.mrb[0].mxu0
      %v2025 = vadd.f32 %v1773, %v2024
      %v2026 = vpop.f32.mrb[0].mxu0
      %v2027 = vpop.f32.mrb[0].mxu0
      %v2028 = vadd.f32 %v1773, %v2027
      %v2029 = vpop.f32.mrb[0].mxu0
      %2030 = vmatprep.mubr.bf16.mxu0 0
      %2031 = vmatmul.mubr.bf16.gmra.mrb[0].mxu0 %v1743
      %v2032 = vpop.f32.mrb[0].mxu0
      %v2033 = vadd.f32 %v1773, %v2032
      %v2034 = vpop.f32.mrb[0].mxu0
      %v2035 = vpop.f32.mrb[0].mxu0
      %v2036 = vadd.f32 %v1773, %v2035
      %v2037 = vpop.f32.mrb[0].mxu0
      %2038 = vmatprep.mubr.bf16.mxu0 0
      %2039 = vmatmul.mubr.bf16.gmra.mrb[0].mxu0 %v1744
      %v2040 = vpop.f32.mrb[0].mxu0
      %v2041 = vadd.f32 %v1773, %v2040
      %v2042 = vpop.f32.mrb[0].mxu0
      %v2043 = vpop.f32.mrb[0].mxu0
      %v2044 = vadd.f32 %v1773, %v2043
      %v2045 = vpop.f32.mrb[0].mxu0
      %2046 = vmatprep.mubr.bf16.mxu0 0
      %2047 = vmatmul.mubr.bf16.gmra.mrb[0].mxu0 %v1745
      %v2048 = vpop.f32.mrb[0].mxu0
      %v2049 = vadd.f32 %v1773, %v2048
      %v2050 = vpop.f32.mrb[0].mxu0
      %v2051 = vpop.f32.mrb[0].mxu0
      %v2052 = vadd.f32 %v1773, %v2051
      %v2053 = vpop.f32.mrb[0].mxu0
      %2054 = vmatprep.mubr.bf16.mxu0 0
      %2055 = vmatmul.mubr.bf16.gmra.mrb[0].mxu0 %v1746
      %v2056 = vpop.f32.mrb[0].mxu0
      %v2057 = vadd.f32 %v1773, %v2056
      %v2058 = vpop.f32.mrb[0].mxu0
      %v2059 = vpop.f32.mrb[0].mxu0
      %v2060 = vadd.f32 %v1773, %v2059
      %v2061 = vpop.f32.mrb[0].mxu0
      %2062 = vmatprep.mubr.bf16.mxu0 0
      %2063 = vmatmul.mubr.bf16.gmra.mrb[0].mxu0 %v1747
      %v2064 = vpop.f32.mrb[0].mxu0
      %v2065 = vadd.f32 %v1773, %v2064
      %v2066 = vpop.f32.mrb[0].mxu0
      %v2067 = vpop.f32.mrb[0].mxu0
      %v2068 = vadd.f32 %v1773, %v2067
      %v2069 = vpop.f32.mrb[0].mxu0
      %2070 = vmatprep.mubr.bf16.mxu0 0
      %2071 = vmatmul.mubr.bf16.gmra.mrb[0].mxu0 %v1748
      %v2072 = vpop.f32.mrb[0].mxu0
      %v2073 = vadd.f32 %v1773, %v2072
      %v2074 = vpop.f32.mrb[0].mxu0
      %v2075 = vpop.f32.mrb[0].mxu0
      %v2076 = vadd.f32 %v1773, %v2075
      %v2077 = vpop.f32.mrb[0].mxu0
      %2078 = vmatprep.mubr.bf16.mxu0 0
      %2079 = vmatmul.mubr.bf16.gmra.mrb[0].mxu0 %v1749
      %v2080 = vpop.f32.mrb[0].mxu0
      %v2081 = vadd.f32 %v1773, %v2080
      %v2082 = vpop.f32.mrb[0].mxu0
      %v2083 = vpop.f32.mrb[0].mxu0
      %v2084 = vadd.f32 %v1773, %v2083
      %v2085 = vpop.f32.mrb[0].mxu0
      %2086 = vmatprep.mubr.bf16.mxu0 0
      %2087 = vmatmul.mubr.bf16.gmra.mrb[0].mxu0 %v1750
      %v2088 = vpop.f32.mrb[0].mxu0
      %v2089 = vadd.f32 %v1773, %v2088
      %v2090 = vpop.f32.mrb[0].mxu0
      %v2091 = vpop.f32.mrb[0].mxu0
      %v2092 = vadd.f32 %v1773, %v2091
      %v2093 = vpop.f32.mrb[0].mxu0
      %2094 = vmatprep.mubr.bf16.mxu0 0
      %2095 = vmatmul.mubr.bf16.gmra.mrb[0].mxu0 %v1751
      %v2096 = vpop.f32.mrb[0].mxu0
      %v2097 = vadd.f32 %v1773, %v2096
      %v2098 = vpop.f32.mrb[0].mxu0
      %v2099 = vpop.f32.mrb[0].mxu0
      %v2100 = vadd.f32 %v1773, %v2099
      %v2101 = vpop.f32.mrb[0].mxu0
      %2102 = vmatprep.mubr.bf16.mxu0 0
      %2103 = vmatmul.mubr.bf16.gmra.mrb[0].mxu0 %v1752
      %v2104 = vpop.f32.mrb[0].mxu0
      %v2105 = vadd.f32 %v1773, %v2104
      %v2106 = vpop.f32.mrb[0].mxu0
      %v2107 = vpop.f32.mrb[0].mxu0
      %v2108 = vadd.f32 %v1773, %v2107
      %v2109 = vpop.f32.mrb[0].mxu0
      %2110 = vdwg.mxu0
      %v2111 = vmax.f32 %v1857, 0.0
      %v2112 = vmax.f32 %v1860, 0.0
      %v2113 = vmax.f32 %v1865, 0.0
      %v2114 = vmax.f32 %v1868, 0.0
      %v2115 = vmax.f32 %v1873, 0.0
      %v2116 = vmax.f32 %v1876, 0.0
      %v2117 = vmax.f32 %v1881, 0.0
      %v2118 = vmax.f32 %v1884, 0.0
      %v2119 = vmax.f32 %v1889, 0.0
      %v2120 = vmax.f32 %v1892, 0.0
      %v2121 = vmax.f32 %v1897, 0.0
      %v2122 = vmax.f32 %v1900, 0.0
      %v2123 = vmax.f32 %v1905, 0.0
      %v2124 = vmax.f32 %v1908, 0.0
      %v2125 = vmax.f32 %v1913, 0.0
      %v2126 = vmax.f32 %v1916, 0.0
      %v2127 = vmax.f32 %v1921, 0.0
      %v2128 = vmax.f32 %v1924, 0.0
      %v2129 = vmax.f32 %v1929, 0.0
      %v2130 = vmax.f32 %v1932, 0.0
      %v2131 = vmax.f32 %v1937, 0.0
      %v2132 = vmax.f32 %v1940, 0.0
      %v2133 = vmax.f32 %v1945, 0.0
      %v2134 = vmax.f32 %v1948, 0.0
      %v2135 = vmax.f32 %v1953, 0.0
      %v2136 = vmax.f32 %v1956, 0.0
      %v2137 = vmax.f32 %v1961, 0.0
      %v2138 = vmax.f32 %v1964, 0.0
      %v2139 = vmax.f32 %v1969, 0.0
      %v2140 = vmax.f32 %v1972, 0.0
      %v2141 = vmax.f32 %v1977, 0.0
      %v2142 = vmax.f32 %v1980, 0.0
      %v2143 = vmax.f32 %v1985, 0.0
      %v2144 = vmax.f32 %v1988, 0.0
      %v2145 = vmax.f32 %v1993, 0.0
      %v2146 = vmax.f32 %v1996, 0.0
      %v2147 = vmax.f32 %v2001, 0.0
      %v2148 = vmax.f32 %v2004, 0.0
      %v2149 = vmax.f32 %v2009, 0.0
      %v2150 = vmax.f32 %v2012, 0.0
      %v2151 = vmax.f32 %v2017, 0.0
      %v2152 = vmax.f32 %v2020, 0.0
      %v2153 = vmax.f32 %v2025, 0.0
      %v2154 = vmax.f32 %v2028, 0.0
      %v2155 = vmax.f32 %v2033, 0.0
      %v2156 = vmax.f32 %v2036, 0.0
      %v2157 = vmax.f32 %v2041, 0.0
      %v2158 = vmax.f32 %v2044, 0.0
      %v2159 = vmax.f32 %v2049, 0.0
      %v2160 = vmax.f32 %v2052, 0.0
      %v2161 = vmax.f32 %v2057, 0.0
      %v2162 = vmax.f32 %v2060, 0.0
      %v2163 = vmax.f32 %v2065, 0.0
      %v2164 = vmax.f32 %v2068, 0.0
      %v2165 = vmax.f32 %v2073, 0.0
      %v2166 = vmax.f32 %v2076, 0.0
      %v2167 = vmax.f32 %v2081, 0.0
      %v2168 = vmax.f32 %v2084, 0.0
      %v2169 = vmax.f32 %v2089, 0.0
      %v2170 = vmax.f32 %v2092, 0.0
      %v2171 = vmax.f32 %v2097, 0.0
      %v2172 = vmax.f32 %v2100, 0.0
      %v2173 = vmax.f32 %v2105, 0.0
      %v2174 = vmax.f32 %v2108, 0.0
      %v2175 = vpack.c.bf16 %v2112, %v2111
      %v2176 = vpack.c.bf16 %v2114, %v2113
      %v2177 = vpack.c.bf16 %v2116, %v2115
      %v2178 = vpack.c.bf16 %v2118, %v2117
      %v2179 = vpack.c.bf16 %v2120, %v2119
      %v2180 = vpack.c.bf16 %v2122, %v2121
      %v2181 = vpack.c.bf16 %v2124, %v2123
      %v2182 = vpack.c.bf16 %v2126, %v2125
      %v2183 = vpack.c.bf16 %v2128, %v2127
      %v2184 = vpack.c.bf16 %v2130, %v2129
      %v2185 = vpack.c.bf16 %v2132, %v2131
      %v2186 = vpack.c.bf16 %v2134, %v2133
      %v2187 = vpack.c.bf16 %v2136, %v2135
      %v2188 = vpack.c.bf16 %v2138, %v2137
      %v2189 = vpack.c.bf16 %v2140, %v2139
      %v2190 = vpack.c.bf16 %v2142, %v2141
      %v2191 = vpack.c.bf16 %v2144, %v2143
      %v2192 = vpack.c.bf16 %v2146, %v2145
      %v2193 = vpack.c.bf16 %v2148, %v2147
      %v2194 = vpack.c.bf16 %v2150, %v2149
      %v2195 = vpack.c.bf16 %v2152, %v2151
      %v2196 = vpack.c.bf16 %v2154, %v2153
      %v2197 = vpack.c.bf16 %v2156, %v2155
      %v2198 = vpack.c.bf16 %v2158, %v2157
      %v2199 = vpack.c.bf16 %v2160, %v2159
      %v2200 = vpack.c.bf16 %v2162, %v2161
      %v2201 = vpack.c.bf16 %v2164, %v2163
      %v2202 = vpack.c.bf16 %v2166, %v2165
      %v2203 = vpack.c.bf16 %v2168, %v2167
      %v2204 = vpack.c.bf16 %v2170, %v2169
      %v2205 = vpack.c.bf16 %v2172, %v2171
      %v2206 = vpack.c.bf16 %v2174, %v2173
      %v2207 = vld [vmem:[%s5] sm:$0xf]
      %v2208 = vld [vmem:[%s5 + $0x4] sm:$0xf]
      %v2209 = vld [vmem:[%s5 + $0x8] sm:$0xf]
      %v2210 = vld [vmem:[%s5 + $0xc] sm:$0xf]
      %v2211 = vld [vmem:[%s5 + $0x10] sm:$0xf]
      %v2212 = vld [vmem:[%s5 + $0x14] sm:$0xf]
      %v2213 = vld [vmem:[%s5 + $0x18] sm:$0xf]
      %v2214 = vld [vmem:[%s5 + $0x1c] sm:$0xf]
      %v2215 = vld [vmem:[%s5 + $0x20] sm:$0xf]
      %v2216 = vld [vmem:[%s5 + $0x24] sm:$0xf]
      %v2217 = vld [vmem:[%s5 + $0x28] sm:$0xf]
      %v2218 = vld [vmem:[%s5 + $0x2c] sm:$0xf]
      %v2219 = vld [vmem:[%s5 + $0x30] sm:$0xf]
      %v2220 = vld [vmem:[%s5 + $0x34] sm:$0xf]
      %v2221 = vld [vmem:[%s5 + $0x38] sm:$0xf]
      %v2222 = vld [vmem:[%s5 + $0x3c] sm:$0xf]
      %v2223 = vld [vmem:[%s7 + $0x4] sm:$0x1]
      %v2224 = vlaneseq
      %v2225 = vshrl.u32 %v2224, 7
      %v2226 = vsub.s32 0, %v2225
      %v2227 = vrot.slane %v2223, %v2226
      %v2244 = vunpack.c.l.b16 %v2207
      %v2245 = vunpack.c.l.b16 %v2208
      %v2246 = vunpack.c.l.b16 %v2209
      %v2247 = vunpack.c.l.b16 %v2210
      %v2248 = vunpack.c.l.b16 %v2211
      %v2249 = vunpack.c.l.b16 %v2212
      %v2250 = vunpack.c.l.b16 %v2213
      %v2251 = vunpack.c.l.b16 %v2214
      %v2252 = vunpack.c.l.b16 %v2215
      %v2253 = vunpack.c.l.b16 %v2216
      %v2254 = vunpack.c.l.b16 %v2217
      %v2255 = vunpack.c.l.b16 %v2218
      %v2256 = vunpack.c.l.b16 %v2219
      %v2257 = vunpack.c.l.b16 %v2220
      %v2258 = vunpack.c.l.b16 %v2221
      %v2259 = vunpack.c.l.b16 %v2222
      %v2260 = vpack.c.b16 %v2245, %v2244
      %v2261 = vpack.c.b16 %v2247, %v2246
      %v2262 = vpack.c.b16 %v2249, %v2248
      %v2263 = vpack.c.b16 %v2251, %v2250
      %v2264 = vpack.c.b16 %v2253, %v2252
      %v2265 = vpack.c.b16 %v2255, %v2254
      %v2266 = vpack.c.b16 %v2257, %v2256
      %v2267 = vpack.c.b16 %v2259, %v2258
      %2276 = vmatprep.subr.bf16.mxu0 0
      %2277 = vmatpush1.bf16.msra.mxu0 %v2260
      %2278 = vmatprep.subr.bf16.mxu0 0
      %2279 = vmatpush1.bf16.msra.mxu0 %v2261
      %2280 = vmatprep.subr.bf16.mxu0 0
      %2281 = vmatpush1.bf16.msra.mxu0 %v2262
      %2282 = vmatprep.subr.bf16.mxu0 0
      %2283 = vmatpush1.bf16.msra.mxu0 %v2263
      %2284 = vmatprep.subr.bf16.mxu0 0
      %2285 = vmatpush1.bf16.msra.mxu0 %v2264
      %2286 = vmatprep.subr.bf16.mxu0 0
      %2287 = vmatpush1.bf16.msra.mxu0 %v2265
      %2288 = vmatprep.subr.bf16.mxu0 0
      %2289 = vmatpush1.bf16.msra.mxu0 %v2266
      %2290 = vmatprep.subr.bf16.mxu0 0
      %2291 = vmatpush1.bf16.msra.mxu0 %v2267
      %2292 = vmatprep.subr.bf16.mxu0 0
      %2293 = vmatpush1.bf16.msra.mxu0 0
      %2294 = vmatprep.subr.bf16.mxu0 0
      %2295 = vmatpush1.bf16.msra.mxu0 0
      %2296 = vmatprep.subr.bf16.mxu0 0
      %2297 = vmatpush1.bf16.msra.mxu0 0
      %2298 = vmatprep.subr.bf16.mxu0 0
      %2299 = vmatpush1.bf16.msra.mxu0 0
      %2300 = vmatprep.subr.bf16.mxu0 0
      %2301 = vmatpush1.bf16.msra.mxu0 0
      %2302 = vmatprep.subr.bf16.mxu0 0
      %2303 = vmatpush1.bf16.msra.mxu0 0
      %2304 = vmatprep.subr.bf16.mxu0 0
      %2305 = vmatpush1.bf16.msra.mxu0 0
      %2306 = vmatprep.subr.bf16.mxu0 0
      %2307 = vmatpush1.bf16.msra.mxu0 0
      %2308 = vmatprep.mubr.bf16.mxu0 0
      %2309 = vmatmul.mubr.bf16.gmra.mrb[0].mxu0 %v2175
      %v2310 = vpop.f32.mrb[0].mxu0
      %v2311 = vadd.f32 %v2227, %v2310
      %v2312 = vpop.f32.mrb[0].mxu0
      %v2313 = vpop.f32.mrb[0].mxu0
      %v2314 = vadd.f32 %v2227, %v2313
      %v2315 = vpop.f32.mrb[0].mxu0
      %2316 = vmatprep.mubr.bf16.mxu0 0
      %2317 = vmatmul.mubr.bf16.gmra.mrb[0].mxu0 %v2176
      %v2318 = vpop.f32.mrb[0].mxu0
      %v2319 = vadd.f32 %v2227, %v2318
      %v2320 = vpop.f32.mrb[0].mxu0
      %v2321 = vpop.f32.mrb[0].mxu0
      %v2322 = vadd.f32 %v2227, %v2321
      %v2323 = vpop.f32.mrb[0].mxu0
      %2324 = vmatprep.mubr.bf16.mxu0 0
      %2325 = vmatmul.mubr.bf16.gmra.mrb[0].mxu0 %v2177
      %v2326 = vpop.f32.mrb[0].mxu0
      %v2327 = vadd.f32 %v2227, %v2326
      %v2328 = vpop.f32.mrb[0].mxu0
      %v2329 = vpop.f32.mrb[0].mxu0
      %v2330 = vadd.f32 %v2227, %v2329
      %v2331 = vpop.f32.mrb[0].mxu0
      %2332 = vmatprep.mubr.bf16.mxu0 0
      %2333 = vmatmul.mubr.bf16.gmra.mrb[0].mxu0 %v2178
      %v2334 = vpop.f32.mrb[0].mxu0
      %v2335 = vadd.f32 %v2227, %v2334
      %v2336 = vpop.f32.mrb[0].mxu0
      %v2337 = vpop.f32.mrb[0].mxu0
      %v2338 = vadd.f32 %v2227, %v2337
      %v2339 = vpop.f32.mrb[0].mxu0
      %2340 = vmatprep.mubr.bf16.mxu0 0
      %2341 = vmatmul.mubr.bf16.gmra.mrb[0].mxu0 %v2179
      %v2342 = vpop.f32.mrb[0].mxu0
      %v2343 = vadd.f32 %v2227, %v2342
      %v2344 = vpop.f32.mrb[0].mxu0
      %v2345 = vpop.f32.mrb[0].mxu0
      %v2346 = vadd.f32 %v2227, %v2345
      %v2347 = vpop.f32.mrb[0].mxu0
      %2348 = vmatprep.mubr.bf16.mxu0 0
      %2349 = vmatmul.mubr.bf16.gmra.mrb[0].mxu0 %v2180
      %v2350 = vpop.f32.mrb[0].mxu0
      %v2351 = vadd.f32 %v2227, %v2350
      %v2352 = vpop.f32.mrb[0].mxu0
      %v2353 = vpop.f32.mrb[0].mxu0
      %v2354 = vadd.f32 %v2227, %v2353
      %v2355 = vpop.f32.mrb[0].mxu0
      %2356 = vmatprep.mubr.bf16.mxu0 0
      %2357 = vmatmul.mubr.bf16.gmra.mrb[0].mxu0 %v2181
      %v2358 = vpop.f32.mrb[0].mxu0
      %v2359 = vadd.f32 %v2227, %v2358
      %v2360 = vpop.f32.mrb[0].mxu0
      %v2361 = vpop.f32.mrb[0].mxu0
      %v2362 = vadd.f32 %v2227, %v2361
      %v2363 = vpop.f32.mrb[0].mxu0
      %2364 = vmatprep.mubr.bf16.mxu0 0
      %2365 = vmatmul.mubr.bf16.gmra.mrb[0].mxu0 %v2182
      %v2366 = vpop.f32.mrb[0].mxu0
      %v2367 = vadd.f32 %v2227, %v2366
      %v2368 = vpop.f32.mrb[0].mxu0
      %v2369 = vpop.f32.mrb[0].mxu0
      %v2370 = vadd.f32 %v2227, %v2369
      %v2371 = vpop.f32.mrb[0].mxu0
      %2372 = vmatprep.mubr.bf16.mxu0 0
      %2373 = vmatmul.mubr.bf16.gmra.mrb[0].mxu0 %v2183
      %v2374 = vpop.f32.mrb[0].mxu0
      %v2375 = vadd.f32 %v2227, %v2374
      %v2376 = vpop.f32.mrb[0].mxu0
      %v2377 = vpop.f32.mrb[0].mxu0
      %v2378 = vadd.f32 %v2227, %v2377
      %v2379 = vpop.f32.mrb[0].mxu0
      %2380 = vmatprep.mubr.bf16.mxu0 0
      %2381 = vmatmul.mubr.bf16.gmra.mrb[0].mxu0 %v2184
      %v2382 = vpop.f32.mrb[0].mxu0
      %v2383 = vadd.f32 %v2227, %v2382
      %v2384 = vpop.f32.mrb[0].mxu0
      %v2385 = vpop.f32.mrb[0].mxu0
      %v2386 = vadd.f32 %v2227, %v2385
      %v2387 = vpop.f32.mrb[0].mxu0
      %2388 = vmatprep.mubr.bf16.mxu0 0
      %2389 = vmatmul.mubr.bf16.gmra.mrb[0].mxu0 %v2185
      %v2390 = vpop.f32.mrb[0].mxu0
      %v2391 = vadd.f32 %v2227, %v2390
      %v2392 = vpop.f32.mrb[0].mxu0
      %v2393 = vpop.f32.mrb[0].mxu0
      %v2394 = vadd.f32 %v2227, %v2393
      %v2395 = vpop.f32.mrb[0].mxu0
      %2396 = vmatprep.mubr.bf16.mxu0 0
      %2397 = vmatmul.mubr.bf16.gmra.mrb[0].mxu0 %v2186
      %v2398 = vpop.f32.mrb[0].mxu0
      %v2399 = vadd.f32 %v2227, %v2398
      %v2400 = vpop.f32.mrb[0].mxu0
      %v2401 = vpop.f32.mrb[0].mxu0
      %v2402 = vadd.f32 %v2227, %v2401
      %v2403 = vpop.f32.mrb[0].mxu0
      %2404 = vmatprep.mubr.bf16.mxu0 0
      %2405 = vmatmul.mubr.bf16.gmra.mrb[0].mxu0 %v2187
      %v2406 = vpop.f32.mrb[0].mxu0
      %v2407 = vadd.f32 %v2227, %v2406
      %v2408 = vpop.f32.mrb[0].mxu0
      %v2409 = vpop.f32.mrb[0].mxu0
      %v2410 = vadd.f32 %v2227, %v2409
      %v2411 = vpop.f32.mrb[0].mxu0
      %2412 = vmatprep.mubr.bf16.mxu0 0
      %2413 = vmatmul.mubr.bf16.gmra.mrb[0].mxu0 %v2188
      %v2414 = vpop.f32.mrb[0].mxu0
      %v2415 = vadd.f32 %v2227, %v2414
      %v2416 = vpop.f32.mrb[0].mxu0
      %v2417 = vpop.f32.mrb[0].mxu0
      %v2418 = vadd.f32 %v2227, %v2417
      %v2419 = vpop.f32.mrb[0].mxu0
      %2420 = vmatprep.mubr.bf16.mxu0 0
      %2421 = vmatmul.mubr.bf16.gmra.mrb[0].mxu0 %v2189
      %v2422 = vpop.f32.mrb[0].mxu0
      %v2423 = vadd.f32 %v2227, %v2422
      %v2424 = vpop.f32.mrb[0].mxu0
      %v2425 = vpop.f32.mrb[0].mxu0
      %v2426 = vadd.f32 %v2227, %v2425
      %v2427 = vpop.f32.mrb[0].mxu0
      %2428 = vmatprep.mubr.bf16.mxu0 0
      %2429 = vmatmul.mubr.bf16.gmra.mrb[0].mxu0 %v2190
      %v2430 = vpop.f32.mrb[0].mxu0
      %v2431 = vadd.f32 %v2227, %v2430
      %v2432 = vpop.f32.mrb[0].mxu0
      %v2433 = vpop.f32.mrb[0].mxu0
      %v2434 = vadd.f32 %v2227, %v2433
      %v2435 = vpop.f32.mrb[0].mxu0
      %2436 = vmatprep.mubr.bf16.mxu0 0
      %2437 = vmatmul.mubr.bf16.gmra.mrb[0].mxu0 %v2191
      %v2438 = vpop.f32.mrb[0].mxu0
      %v2439 = vadd.f32 %v2227, %v2438
      %v2440 = vpop.f32.mrb[0].mxu0
      %v2441 = vpop.f32.mrb[0].mxu0
      %v2442 = vadd.f32 %v2227, %v2441
      %v2443 = vpop.f32.mrb[0].mxu0
      %2444 = vmatprep.mubr.bf16.mxu0 0
      %2445 = vmatmul.mubr.bf16.gmra.mrb[0].mxu0 %v2192
      %v2446 = vpop.f32.mrb[0].mxu0
      %v2447 = vadd.f32 %v2227, %v2446
      %v2448 = vpop.f32.mrb[0].mxu0
      %v2449 = vpop.f32.mrb[0].mxu0
      %v2450 = vadd.f32 %v2227, %v2449
      %v2451 = vpop.f32.mrb[0].mxu0
      %2452 = vmatprep.mubr.bf16.mxu0 0
      %2453 = vmatmul.mubr.bf16.gmra.mrb[0].mxu0 %v2193
      %v2454 = vpop.f32.mrb[0].mxu0
      %v2455 = vadd.f32 %v2227, %v2454
      %v2456 = vpop.f32.mrb[0].mxu0
      %v2457 = vpop.f32.mrb[0].mxu0
      %v2458 = vadd.f32 %v2227, %v2457
      %v2459 = vpop.f32.mrb[0].mxu0
      %2460 = vmatprep.mubr.bf16.mxu0 0
      %2461 = vmatmul.mubr.bf16.gmra.mrb[0].mxu0 %v2194
      %v2462 = vpop.f32.mrb[0].mxu0
      %v2463 = vadd.f32 %v2227, %v2462
      %v2464 = vpop.f32.mrb[0].mxu0
      %v2465 = vpop.f32.mrb[0].mxu0
      %v2466 = vadd.f32 %v2227, %v2465
      %v2467 = vpop.f32.mrb[0].mxu0
      %2468 = vmatprep.mubr.bf16.mxu0 0
      %2469 = vmatmul.mubr.bf16.gmra.mrb[0].mxu0 %v2195
      %v2470 = vpop.f32.mrb[0].mxu0
      %v2471 = vadd.f32 %v2227, %v2470
      %v2472 = vpop.f32.mrb[0].mxu0
      %v2473 = vpop.f32.mrb[0].mxu0
      %v2474 = vadd.f32 %v2227, %v2473
      %v2475 = vpop.f32.mrb[0].mxu0
      %2476 = vmatprep.mubr.bf16.mxu0 0
      %2477 = vmatmul.mubr.bf16.gmra.mrb[0].mxu0 %v2196
      %v2478 = vpop.f32.mrb[0].mxu0
      %v2479 = vadd.f32 %v2227, %v2478
      %v2480 = vpop.f32.mrb[0].mxu0
      %v2481 = vpop.f32.mrb[0].mxu0
      %v2482 = vadd.f32 %v2227, %v2481
      %v2483 = vpop.f32.mrb[0].mxu0
      %2484 = vmatprep.mubr.bf16.mxu0 0
      %2485 = vmatmul.mubr.bf16.gmra.mrb[0].mxu0 %v2197
      %v2486 = vpop.f32.mrb[0].mxu0
      %v2487 = vadd.f32 %v2227, %v2486
      %v2488 = vpop.f32.mrb[0].mxu0
      %v2489 = vpop.f32.mrb[0].mxu0
      %v2490 = vadd.f32 %v2227, %v2489
      %v2491 = vpop.f32.mrb[0].mxu0
      %2492 = vmatprep.mubr.bf16.mxu0 0
      %2493 = vmatmul.mubr.bf16.gmra.mrb[0].mxu0 %v2198
      %v2494 = vpop.f32.mrb[0].mxu0
      %v2495 = vadd.f32 %v2227, %v2494
      %v2496 = vpop.f32.mrb[0].mxu0
      %v2497 = vpop.f32.mrb[0].mxu0
      %v2498 = vadd.f32 %v2227, %v2497
      %v2499 = vpop.f32.mrb[0].mxu0
      %2500 = vmatprep.mubr.bf16.mxu0 0
      %2501 = vmatmul.mubr.bf16.gmra.mrb[0].mxu0 %v2199
      %v2502 = vpop.f32.mrb[0].mxu0
      %v2503 = vadd.f32 %v2227, %v2502
      %v2504 = vpop.f32.mrb[0].mxu0
      %v2505 = vpop.f32.mrb[0].mxu0
      %v2506 = vadd.f32 %v2227, %v2505
      %v2507 = vpop.f32.mrb[0].mxu0
      %2508 = vmatprep.mubr.bf16.mxu0 0
      %2509 = vmatmul.mubr.bf16.gmra.mrb[0].mxu0 %v2200
      %v2510 = vpop.f32.mrb[0].mxu0
      %v2511 = vadd.f32 %v2227, %v2510
      %v2512 = vpop.f32.mrb[0].mxu0
      %v2513 = vpop.f32.mrb[0].mxu0
      %v2514 = vadd.f32 %v2227, %v2513
      %v2515 = vpop.f32.mrb[0].mxu0
      %2516 = vmatprep.mubr.bf16.mxu0 0
      %2517 = vmatmul.mubr.bf16.gmra.mrb[0].mxu0 %v2201
      %v2518 = vpop.f32.mrb[0].mxu0
      %v2519 = vadd.f32 %v2227, %v2518
      %v2520 = vpop.f32.mrb[0].mxu0
      %v2521 = vpop.f32.mrb[0].mxu0
      %v2522 = vadd.f32 %v2227, %v2521
      %v2523 = vpop.f32.mrb[0].mxu0
      %2524 = vmatprep.mubr.bf16.mxu0 0
      %2525 = vmatmul.mubr.bf16.gmra.mrb[0].mxu0 %v2202
      %v2526 = vpop.f32.mrb[0].mxu0
      %v2527 = vadd.f32 %v2227, %v2526
      %v2528 = vpop.f32.mrb[0].mxu0
      %v2529 = vpop.f32.mrb[0].mxu0
      %v2530 = vadd.f32 %v2227, %v2529
      %v2531 = vpop.f32.mrb[0].mxu0
      %2532 = vmatprep.mubr.bf16.mxu0 0
      %2533 = vmatmul.mubr.bf16.gmra.mrb[0].mxu0 %v2203
      %v2534 = vpop.f32.mrb[0].mxu0
      %v2535 = vadd.f32 %v2227, %v2534
      %v2536 = vpop.f32.mrb[0].mxu0
      %v2537 = vpop.f32.mrb[0].mxu0
      %v2538 = vadd.f32 %v2227, %v2537
      %v2539 = vpop.f32.mrb[0].mxu0
      %2540 = vmatprep.mubr.bf16.mxu0 0
      %2541 = vmatmul.mubr.bf16.gmra.mrb[0].mxu0 %v2204
      %v2542 = vpop.f32.mrb[0].mxu0
      %v2543 = vadd.f32 %v2227, %v2542
      %v2544 = vpop.f32.mrb[0].mxu0
      %v2545 = vpop.f32.mrb[0].mxu0
      %v2546 = vadd.f32 %v2227, %v2545
      %v2547 = vpop.f32.mrb[0].mxu0
      %2548 = vmatprep.mubr.bf16.mxu0 0
      %2549 = vmatmul.mubr.bf16.gmra.mrb[0].mxu0 %v2205
      %v2550 = vpop.f32.mrb[0].mxu0
      %v2551 = vadd.f32 %v2227, %v2550
      %v2552 = vpop.f32.mrb[0].mxu0
      %v2553 = vpop.f32.mrb[0].mxu0
      %v2554 = vadd.f32 %v2227, %v2553
      %v2555 = vpop.f32.mrb[0].mxu0
      %2556 = vmatprep.mubr.bf16.mxu0 0
      %2557 = vmatmul.mubr.bf16.gmra.mrb[0].mxu0 %v2206
      %v2558 = vpop.f32.mrb[0].mxu0
      %v2559 = vadd.f32 %v2227, %v2558
      %v2560 = vpop.f32.mrb[0].mxu0
      %v2561 = vpop.f32.mrb[0].mxu0
      %v2562 = vadd.f32 %v2227, %v2561
      %v2563 = vpop.f32.mrb[0].mxu0
      %2564 = vdwg.mxu0
      %v2565 = vmax.f32 %v2311, 0.0
      %v2566 = vmax.f32 %v2314, 0.0
      %v2567 = vmax.f32 %v2319, 0.0
      %v2568 = vmax.f32 %v2322, 0.0
      %v2569 = vmax.f32 %v2327, 0.0
      %v2570 = vmax.f32 %v2330, 0.0
      %v2571 = vmax.f32 %v2335, 0.0
      %v2572 = vmax.f32 %v2338, 0.0
      %v2573 = vmax.f32 %v2343, 0.0
      %v2574 = vmax.f32 %v2346, 0.0
      %v2575 = vmax.f32 %v2351, 0.0
      %v2576 = vmax.f32 %v2354, 0.0
      %v2577 = vmax.f32 %v2359, 0.0
      %v2578 = vmax.f32 %v2362, 0.0
      %v2579 = vmax.f32 %v2367, 0.0
      %v2580 = vmax.f32 %v2370, 0.0
      %v2581 = vmax.f32 %v2375, 0.0
      %v2582 = vmax.f32 %v2378, 0.0
      %v2583 = vmax.f32 %v2383, 0.0
      %v2584 = vmax.f32 %v2386, 0.0
      %v2585 = vmax.f32 %v2391, 0.0
      %v2586 = vmax.f32 %v2394, 0.0
      %v2587 = vmax.f32 %v2399, 0.0
      %v2588 = vmax.f32 %v2402, 0.0
      %v2589 = vmax.f32 %v2407, 0.0
      %v2590 = vmax.f32 %v2410, 0.0
      %v2591 = vmax.f32 %v2415, 0.0
      %v2592 = vmax.f32 %v2418, 0.0
      %v2593 = vmax.f32 %v2423, 0.0
      %v2594 = vmax.f32 %v2426, 0.0
      %v2595 = vmax.f32 %v2431, 0.0
      %v2596 = vmax.f32 %v2434, 0.0
      %v2597 = vmax.f32 %v2439, 0.0
      %v2598 = vmax.f32 %v2442, 0.0
      %v2599 = vmax.f32 %v2447, 0.0
      %v2600 = vmax.f32 %v2450, 0.0
      %v2601 = vmax.f32 %v2455, 0.0
      %v2602 = vmax.f32 %v2458, 0.0
      %v2603 = vmax.f32 %v2463, 0.0
      %v2604 = vmax.f32 %v2466, 0.0
      %v2605 = vmax.f32 %v2471, 0.0
      %v2606 = vmax.f32 %v2474, 0.0
      %v2607 = vmax.f32 %v2479, 0.0
      %v2608 = vmax.f32 %v2482, 0.0
      %v2609 = vmax.f32 %v2487, 0.0
      %v2610 = vmax.f32 %v2490, 0.0
      %v2611 = vmax.f32 %v2495, 0.0
      %v2612 = vmax.f32 %v2498, 0.0
      %v2613 = vmax.f32 %v2503, 0.0
      %v2614 = vmax.f32 %v2506, 0.0
      %v2615 = vmax.f32 %v2511, 0.0
      %v2616 = vmax.f32 %v2514, 0.0
      %v2617 = vmax.f32 %v2519, 0.0
      %v2618 = vmax.f32 %v2522, 0.0
      %v2619 = vmax.f32 %v2527, 0.0
      %v2620 = vmax.f32 %v2530, 0.0
      %v2621 = vmax.f32 %v2535, 0.0
      %v2622 = vmax.f32 %v2538, 0.0
      %v2623 = vmax.f32 %v2543, 0.0
      %v2624 = vmax.f32 %v2546, 0.0
      %v2625 = vmax.f32 %v2551, 0.0
      %v2626 = vmax.f32 %v2554, 0.0
      %v2627 = vmax.f32 %v2559, 0.0
      %v2628 = vmax.f32 %v2562, 0.0
      %v2629 = vpack.c.bf16 %v2566, %v2565
      %v2630 = vpack.c.bf16 %v2568, %v2567
      %v2631 = vpack.c.bf16 %v2570, %v2569
      %v2632 = vpack.c.bf16 %v2572, %v2571
      %v2633 = vpack.c.bf16 %v2574, %v2573
      %v2634 = vpack.c.bf16 %v2576, %v2575
      %v2635 = vpack.c.bf16 %v2578, %v2577
      %v2636 = vpack.c.bf16 %v2580, %v2579
      %v2637 = vpack.c.bf16 %v2582, %v2581
      %v2638 = vpack.c.bf16 %v2584, %v2583
      %v2639 = vpack.c.bf16 %v2586, %v2585
      %v2640 = vpack.c.bf16 %v2588, %v2587
      %v2641 = vpack.c.bf16 %v2590, %v2589
      %v2642 = vpack.c.bf16 %v2592, %v2591
      %v2643 = vpack.c.bf16 %v2594, %v2593
      %v2644 = vpack.c.bf16 %v2596, %v2595
      %v2645 = vpack.c.bf16 %v2598, %v2597
      %v2646 = vpack.c.bf16 %v2600, %v2599
      %v2647 = vpack.c.bf16 %v2602, %v2601
      %v2648 = vpack.c.bf16 %v2604, %v2603
      %v2649 = vpack.c.bf16 %v2606, %v2605
      %v2650 = vpack.c.bf16 %v2608, %v2607
      %v2651 = vpack.c.bf16 %v2610, %v2609
      %v2652 = vpack.c.bf16 %v2612, %v2611
      %v2653 = vpack.c.bf16 %v2614, %v2613
      %v2654 = vpack.c.bf16 %v2616, %v2615
      %v2655 = vpack.c.bf16 %v2618, %v2617
      %v2656 = vpack.c.bf16 %v2620, %v2619
      %v2657 = vpack.c.bf16 %v2622, %v2621
      %v2658 = vpack.c.bf16 %v2624, %v2623
      %v2659 = vpack.c.bf16 %v2626, %v2625
      %v2660 = vpack.c.bf16 %v2628, %v2627
      %v2661 = vld [vmem:[%s6] sm:$0xf]
      %v2662 = vld [vmem:[%s6 + $0x4] sm:$0xf]
      %v2663 = vld [vmem:[%s6 + $0x8] sm:$0xf]
      %v2664 = vld [vmem:[%s6 + $0xc] sm:$0xf]
      %v2665 = vld [vmem:[%s6 + $0x10] sm:$0xf]
      %v2666 = vld [vmem:[%s6 + $0x14] sm:$0xf]
      %v2667 = vld [vmem:[%s6 + $0x18] sm:$0xf]
      %v2668 = vld [vmem:[%s6 + $0x1c] sm:$0xf]
      %v2669 = vld [vmem:[%s6 + $0x20] sm:$0xf]
      %v2670 = vld [vmem:[%s6 + $0x24] sm:$0xf]
      %v2671 = vld [vmem:[%s6 + $0x28] sm:$0xf]
      %v2672 = vld [vmem:[%s6 + $0x2c] sm:$0xf]
      %v2673 = vld [vmem:[%s6 + $0x30] sm:$0xf]
      %v2674 = vld [vmem:[%s6 + $0x34] sm:$0xf]
      %v2675 = vld [vmem:[%s6 + $0x38] sm:$0xf]
      %v2676 = vld [vmem:[%s6 + $0x3c] sm:$0xf]
      %v2677 = vld [vmem:[%s7 + $0x5] sm:$0x1]
      %v2678 = vlaneseq
      %v2679 = vshrl.u32 %v2678, 7
      %v2680 = vsub.s32 0, %v2679
      %v2681 = vrot.slane %v2677, %v2680
      %v2698 = vunpack.c.l.b16 %v2661
      %v2699 = vunpack.c.l.b16 %v2662
      %v2700 = vunpack.c.l.b16 %v2663
      %v2701 = vunpack.c.l.b16 %v2664
      %v2702 = vunpack.c.l.b16 %v2665
      %v2703 = vunpack.c.l.b16 %v2666
      %v2704 = vunpack.c.l.b16 %v2667
      %v2705 = vunpack.c.l.b16 %v2668
      %v2706 = vunpack.c.l.b16 %v2669
      %v2707 = vunpack.c.l.b16 %v2670
      %v2708 = vunpack.c.l.b16 %v2671
      %v2709 = vunpack.c.l.b16 %v2672
      %v2710 = vunpack.c.l.b16 %v2673
      %v2711 = vunpack.c.l.b16 %v2674
      %v2712 = vunpack.c.l.b16 %v2675
      %v2713 = vunpack.c.l.b16 %v2676
      %v2714 = vpack.c.b16 %v2699, %v2698
      %v2715 = vpack.c.b16 %v2701, %v2700
      %v2716 = vpack.c.b16 %v2703, %v2702
      %v2717 = vpack.c.b16 %v2705, %v2704
      %v2718 = vpack.c.b16 %v2707, %v2706
      %v2719 = vpack.c.b16 %v2709, %v2708
      %v2720 = vpack.c.b16 %v2711, %v2710
      %v2721 = vpack.c.b16 %v2713, %v2712
      %2730 = vmatprep.subr.bf16.mxu0 0
      %2731 = vmatpush1.bf16.msra.mxu0 %v2714
      %2732 = vmatprep.subr.bf16.mxu0 0
      %2733 = vmatpush1.bf16.msra.mxu0 %v2715
      %2734 = vmatprep.subr.bf16.mxu0 0
      %2735 = vmatpush1.bf16.msra.mxu0 %v2716
      %2736 = vmatprep.subr.bf16.mxu0 0
      %2737 = vmatpush1.bf16.msra.mxu0 %v2717
      %2738 = vmatprep.subr.bf16.mxu0 0
      %2739 = vmatpush1.bf16.msra.mxu0 %v2718
      %2740 = vmatprep.subr.bf16.mxu0 0
      %2741 = vmatpush1.bf16.msra.mxu0 %v2719
      %2742 = vmatprep.subr.bf16.mxu0 0
      %2743 = vmatpush1.bf16.msra.mxu0 %v2720
      %2744 = vmatprep.subr.bf16.mxu0 0
      %2745 = vmatpush1.bf16.msra.mxu0 %v2721
      %2746 = vmatprep.subr.bf16.mxu0 0
      %2747 = vmatpush1.bf16.msra.mxu0 0
      %2748 = vmatprep.subr.bf16.mxu0 0
      %2749 = vmatpush1.bf16.msra.mxu0 0
      %2750 = vmatprep.subr.bf16.mxu0 0
      %2751 = vmatpush1.bf16.msra.mxu0 0
      %2752 = vmatprep.subr.bf16.mxu0 0
      %2753 = vmatpush1.bf16.msra.mxu0 0
      %2754 = vmatprep.subr.bf16.mxu0 0
      %2755 = vmatpush1.bf16.msra.mxu0 0
      %2756 = vmatprep.subr.bf16.mxu0 0
      %2757 = vmatpush1.bf16.msra.mxu0 0
      %2758 = vmatprep.subr.bf16.mxu0 0
      %2759 = vmatpush1.bf16.msra.mxu0 0
      %2760 = vmatprep.subr.bf16.mxu0 0
      %2761 = vmatpush1.bf16.msra.mxu0 0
      %2762 = vmatprep.mubr.bf16.mxu0 0
      %2763 = vmatmul.mubr.bf16.gmra.mrb[0].mxu0 %v2629
      %v2764 = vpop.f32.mrb[0].mxu0
      %v2765 = vadd.f32 %v2681, %v2764
      %v2766 = vpop.f32.mrb[0].mxu0
      %v2767 = vpop.f32.mrb[0].mxu0
      %v2768 = vadd.f32 %v2681, %v2767
      %v2769 = vpop.f32.mrb[0].mxu0
      %2770 = vmatprep.mubr.bf16.mxu0 0
      %2771 = vmatmul.mubr.bf16.gmra.mrb[0].mxu0 %v2630
      %v2772 = vpop.f32.mrb[0].mxu0
      %v2773 = vadd.f32 %v2681, %v2772
      %v2774 = vpop.f32.mrb[0].mxu0
      %v2775 = vpop.f32.mrb[0].mxu0
      %v2776 = vadd.f32 %v2681, %v2775
      %v2777 = vpop.f32.mrb[0].mxu0
      %2778 = vmatprep.mubr.bf16.mxu0 0
      %2779 = vmatmul.mubr.bf16.gmra.mrb[0].mxu0 %v2631
      %v2780 = vpop.f32.mrb[0].mxu0
      %v2781 = vadd.f32 %v2681, %v2780
      %v2782 = vpop.f32.mrb[0].mxu0
      %v2783 = vpop.f32.mrb[0].mxu0
      %v2784 = vadd.f32 %v2681, %v2783
      %v2785 = vpop.f32.mrb[0].mxu0
      %2786 = vmatprep.mubr.bf16.mxu0 0
      %2787 = vmatmul.mubr.bf16.gmra.mrb[0].mxu0 %v2632
      %v2788 = vpop.f32.mrb[0].mxu0
      %v2789 = vadd.f32 %v2681, %v2788
      %v2790 = vpop.f32.mrb[0].mxu0
      %v2791 = vpop.f32.mrb[0].mxu0
      %v2792 = vadd.f32 %v2681, %v2791
      %v2793 = vpop.f32.mrb[0].mxu0
      %2794 = vmatprep.mubr.bf16.mxu0 0
      %2795 = vmatmul.mubr.bf16.gmra.mrb[0].mxu0 %v2633
      %v2796 = vpop.f32.mrb[0].mxu0
      %v2797 = vadd.f32 %v2681, %v2796
      %v2798 = vpop.f32.mrb[0].mxu0
      %v2799 = vpop.f32.mrb[0].mxu0
      %v2800 = vadd.f32 %v2681, %v2799
      %v2801 = vpop.f32.mrb[0].mxu0
      %2802 = vmatprep.mubr.bf16.mxu0 0
      %2803 = vmatmul.mubr.bf16.gmra.mrb[0].mxu0 %v2634
      %v2804 = vpop.f32.mrb[0].mxu0
      %v2805 = vadd.f32 %v2681, %v2804
      %v2806 = vpop.f32.mrb[0].mxu0
      %v2807 = vpop.f32.mrb[0].mxu0
      %v2808 = vadd.f32 %v2681, %v2807
      %v2809 = vpop.f32.mrb[0].mxu0
      %2810 = vmatprep.mubr.bf16.mxu0 0
      %2811 = vmatmul.mubr.bf16.gmra.mrb[0].mxu0 %v2635
      %v2812 = vpop.f32.mrb[0].mxu0
      %v2813 = vadd.f32 %v2681, %v2812
      %v2814 = vpop.f32.mrb[0].mxu0
      %v2815 = vpop.f32.mrb[0].mxu0
      %v2816 = vadd.f32 %v2681, %v2815
      %v2817 = vpop.f32.mrb[0].mxu0
      %2818 = vmatprep.mubr.bf16.mxu0 0
      %2819 = vmatmul.mubr.bf16.gmra.mrb[0].mxu0 %v2636
      %v2820 = vpop.f32.mrb[0].mxu0
      %v2821 = vadd.f32 %v2681, %v2820
      %v2822 = vpop.f32.mrb[0].mxu0
      %v2823 = vpop.f32.mrb[0].mxu0
      %v2824 = vadd.f32 %v2681, %v2823
      %v2825 = vpop.f32.mrb[0].mxu0
      %2826 = vmatprep.mubr.bf16.mxu0 0
      %2827 = vmatmul.mubr.bf16.gmra.mrb[0].mxu0 %v2637
      %v2828 = vpop.f32.mrb[0].mxu0
      %v2829 = vadd.f32 %v2681, %v2828
      %v2830 = vpop.f32.mrb[0].mxu0
      %v2831 = vpop.f32.mrb[0].mxu0
      %v2832 = vadd.f32 %v2681, %v2831
      %v2833 = vpop.f32.mrb[0].mxu0
      %2834 = vmatprep.mubr.bf16.mxu0 0
      %2835 = vmatmul.mubr.bf16.gmra.mrb[0].mxu0 %v2638
      %v2836 = vpop.f32.mrb[0].mxu0
      %v2837 = vadd.f32 %v2681, %v2836
      %v2838 = vpop.f32.mrb[0].mxu0
      %v2839 = vpop.f32.mrb[0].mxu0
      %v2840 = vadd.f32 %v2681, %v2839
      %v2841 = vpop.f32.mrb[0].mxu0
      %2842 = vmatprep.mubr.bf16.mxu0 0
      %2843 = vmatmul.mubr.bf16.gmra.mrb[0].mxu0 %v2639
      %v2844 = vpop.f32.mrb[0].mxu0
      %v2845 = vadd.f32 %v2681, %v2844
      %v2846 = vpop.f32.mrb[0].mxu0
      %v2847 = vpop.f32.mrb[0].mxu0
      %v2848 = vadd.f32 %v2681, %v2847
      %v2849 = vpop.f32.mrb[0].mxu0
      %2850 = vmatprep.mubr.bf16.mxu0 0
      %2851 = vmatmul.mubr.bf16.gmra.mrb[0].mxu0 %v2640
      %v2852 = vpop.f32.mrb[0].mxu0
      %v2853 = vadd.f32 %v2681, %v2852
      %v2854 = vpop.f32.mrb[0].mxu0
      %v2855 = vpop.f32.mrb[0].mxu0
      %v2856 = vadd.f32 %v2681, %v2855
      %v2857 = vpop.f32.mrb[0].mxu0
      %2858 = vmatprep.mubr.bf16.mxu0 0
      %2859 = vmatmul.mubr.bf16.gmra.mrb[0].mxu0 %v2641
      %v2860 = vpop.f32.mrb[0].mxu0
      %v2861 = vadd.f32 %v2681, %v2860
      %v2862 = vpop.f32.mrb[0].mxu0
      %v2863 = vpop.f32.mrb[0].mxu0
      %v2864 = vadd.f32 %v2681, %v2863
      %v2865 = vpop.f32.mrb[0].mxu0
      %2866 = vmatprep.mubr.bf16.mxu0 0
      %2867 = vmatmul.mubr.bf16.gmra.mrb[0].mxu0 %v2642
      %v2868 = vpop.f32.mrb[0].mxu0
      %v2869 = vadd.f32 %v2681, %v2868
      %v2870 = vpop.f32.mrb[0].mxu0
      %v2871 = vpop.f32.mrb[0].mxu0
      %v2872 = vadd.f32 %v2681, %v2871
      %v2873 = vpop.f32.mrb[0].mxu0
      %2874 = vmatprep.mubr.bf16.mxu0 0
      %2875 = vmatmul.mubr.bf16.gmra.mrb[0].mxu0 %v2643
      %v2876 = vpop.f32.mrb[0].mxu0
      %v2877 = vadd.f32 %v2681, %v2876
      %v2878 = vpop.f32.mrb[0].mxu0
      %v2879 = vpop.f32.mrb[0].mxu0
      %v2880 = vadd.f32 %v2681, %v2879
      %v2881 = vpop.f32.mrb[0].mxu0
      %2882 = vmatprep.mubr.bf16.mxu0 0
      %2883 = vmatmul.mubr.bf16.gmra.mrb[0].mxu0 %v2644
      %v2884 = vpop.f32.mrb[0].mxu0
      %v2885 = vadd.f32 %v2681, %v2884
      %v2886 = vpop.f32.mrb[0].mxu0
      %v2887 = vpop.f32.mrb[0].mxu0
      %v2888 = vadd.f32 %v2681, %v2887
      %v2889 = vpop.f32.mrb[0].mxu0
      %2890 = vmatprep.mubr.bf16.mxu0 0
      %2891 = vmatmul.mubr.bf16.gmra.mrb[0].mxu0 %v2645
      %v2892 = vpop.f32.mrb[0].mxu0
      %v2893 = vadd.f32 %v2681, %v2892
      %v2894 = vpop.f32.mrb[0].mxu0
      %v2895 = vpop.f32.mrb[0].mxu0
      %v2896 = vadd.f32 %v2681, %v2895
      %v2897 = vpop.f32.mrb[0].mxu0
      %2898 = vmatprep.mubr.bf16.mxu0 0
      %2899 = vmatmul.mubr.bf16.gmra.mrb[0].mxu0 %v2646
      %v2900 = vpop.f32.mrb[0].mxu0
      %v2901 = vadd.f32 %v2681, %v2900
      %v2902 = vpop.f32.mrb[0].mxu0
      %v2903 = vpop.f32.mrb[0].mxu0
      %v2904 = vadd.f32 %v2681, %v2903
      %v2905 = vpop.f32.mrb[0].mxu0
      %2906 = vmatprep.mubr.bf16.mxu0 0
      %2907 = vmatmul.mubr.bf16.gmra.mrb[0].mxu0 %v2647
      %v2908 = vpop.f32.mrb[0].mxu0
      %v2909 = vadd.f32 %v2681, %v2908
      %v2910 = vpop.f32.mrb[0].mxu0
      %v2911 = vpop.f32.mrb[0].mxu0
      %v2912 = vadd.f32 %v2681, %v2911
      %v2913 = vpop.f32.mrb[0].mxu0
      %2914 = vmatprep.mubr.bf16.mxu0 0
      %2915 = vmatmul.mubr.bf16.gmra.mrb[0].mxu0 %v2648
      %v2916 = vpop.f32.mrb[0].mxu0
      %v2917 = vadd.f32 %v2681, %v2916
      %v2918 = vpop.f32.mrb[0].mxu0
      %v2919 = vpop.f32.mrb[0].mxu0
      %v2920 = vadd.f32 %v2681, %v2919
      %v2921 = vpop.f32.mrb[0].mxu0
      %2922 = vmatprep.mubr.bf16.mxu0 0
      %2923 = vmatmul.mubr.bf16.gmra.mrb[0].mxu0 %v2649
      %v2924 = vpop.f32.mrb[0].mxu0
      %v2925 = vadd.f32 %v2681, %v2924
      %v2926 = vpop.f32.mrb[0].mxu0
      %v2927 = vpop.f32.mrb[0].mxu0
      %v2928 = vadd.f32 %v2681, %v2927
      %v2929 = vpop.f32.mrb[0].mxu0
      %2930 = vmatprep.mubr.bf16.mxu0 0
      %2931 = vmatmul.mubr.bf16.gmra.mrb[0].mxu0 %v2650
      %v2932 = vpop.f32.mrb[0].mxu0
      %v2933 = vadd.f32 %v2681, %v2932
      %v2934 = vpop.f32.mrb[0].mxu0
      %v2935 = vpop.f32.mrb[0].mxu0
      %v2936 = vadd.f32 %v2681, %v2935
      %v2937 = vpop.f32.mrb[0].mxu0
      %2938 = vmatprep.mubr.bf16.mxu0 0
      %2939 = vmatmul.mubr.bf16.gmra.mrb[0].mxu0 %v2651
      %v2940 = vpop.f32.mrb[0].mxu0
      %v2941 = vadd.f32 %v2681, %v2940
      %v2942 = vpop.f32.mrb[0].mxu0
      %v2943 = vpop.f32.mrb[0].mxu0
      %v2944 = vadd.f32 %v2681, %v2943
      %v2945 = vpop.f32.mrb[0].mxu0
      %2946 = vmatprep.mubr.bf16.mxu0 0
      %2947 = vmatmul.mubr.bf16.gmra.mrb[0].mxu0 %v2652
      %v2948 = vpop.f32.mrb[0].mxu0
      %v2949 = vadd.f32 %v2681, %v2948
      %v2950 = vpop.f32.mrb[0].mxu0
      %v2951 = vpop.f32.mrb[0].mxu0
      %v2952 = vadd.f32 %v2681, %v2951
      %v2953 = vpop.f32.mrb[0].mxu0
      %2954 = vmatprep.mubr.bf16.mxu0 0
      %2955 = vmatmul.mubr.bf16.gmra.mrb[0].mxu0 %v2653
      %v2956 = vpop.f32.mrb[0].mxu0
      %v2957 = vadd.f32 %v2681, %v2956
      %v2958 = vpop.f32.mrb[0].mxu0
      %v2959 = vpop.f32.mrb[0].mxu0
      %v2960 = vadd.f32 %v2681, %v2959
      %v2961 = vpop.f32.mrb[0].mxu0
      %2962 = vmatprep.mubr.bf16.mxu0 0
      %2963 = vmatmul.mubr.bf16.gmra.mrb[0].mxu0 %v2654
      %v2964 = vpop.f32.mrb[0].mxu0
      %v2965 = vadd.f32 %v2681, %v2964
      %v2966 = vpop.f32.mrb[0].mxu0
      %v2967 = vpop.f32.mrb[0].mxu0
      %v2968 = vadd.f32 %v2681, %v2967
      %v2969 = vpop.f32.mrb[0].mxu0
      %2970 = vmatprep.mubr.bf16.mxu0 0
      %2971 = vmatmul.mubr.bf16.gmra.mrb[0].mxu0 %v2655
      %v2972 = vpop.f32.mrb[0].mxu0
      %v2973 = vadd.f32 %v2681, %v2972
      %v2974 = vpop.f32.mrb[0].mxu0
      %v2975 = vpop.f32.mrb[0].mxu0
      %v2976 = vadd.f32 %v2681, %v2975
      %v2977 = vpop.f32.mrb[0].mxu0
      %2978 = vmatprep.mubr.bf16.mxu0 0
      %2979 = vmatmul.mubr.bf16.gmra.mrb[0].mxu0 %v2656
      %v2980 = vpop.f32.mrb[0].mxu0
      %v2981 = vadd.f32 %v2681, %v2980
      %v2982 = vpop.f32.mrb[0].mxu0
      %v2983 = vpop.f32.mrb[0].mxu0
      %v2984 = vadd.f32 %v2681, %v2983
      %v2985 = vpop.f32.mrb[0].mxu0
      %2986 = vmatprep.mubr.bf16.mxu0 0
      %2987 = vmatmul.mubr.bf16.gmra.mrb[0].mxu0 %v2657
      %v2988 = vpop.f32.mrb[0].mxu0
      %v2989 = vadd.f32 %v2681, %v2988
      %v2990 = vpop.f32.mrb[0].mxu0
      %v2991 = vpop.f32.mrb[0].mxu0
      %v2992 = vadd.f32 %v2681, %v2991
      %v2993 = vpop.f32.mrb[0].mxu0
      %2994 = vmatprep.mubr.bf16.mxu0 0
      %2995 = vmatmul.mubr.bf16.gmra.mrb[0].mxu0 %v2658
      %v2996 = vpop.f32.mrb[0].mxu0
      %v2997 = vadd.f32 %v2681, %v2996
      %v2998 = vpop.f32.mrb[0].mxu0
      %v2999 = vpop.f32.mrb[0].mxu0
      %v3000 = vadd.f32 %v2681, %v2999
      %v3001 = vpop.f32.mrb[0].mxu0
      %3002 = vmatprep.mubr.bf16.mxu0 0
      %3003 = vmatmul.mubr.bf16.gmra.mrb[0].mxu0 %v2659
      %v3004 = vpop.f32.mrb[0].mxu0
      %v3005 = vadd.f32 %v2681, %v3004
      %v3006 = vpop.f32.mrb[0].mxu0
      %v3007 = vpop.f32.mrb[0].mxu0
      %v3008 = vadd.f32 %v2681, %v3007
      %v3009 = vpop.f32.mrb[0].mxu0
      %3010 = vmatprep.mubr.bf16.mxu0 0
      %3011 = vmatmul.mubr.bf16.gmra.mrb[0].mxu0 %v2660
      %v3012 = vpop.f32.mrb[0].mxu0
      %v3013 = vadd.f32 %v2681, %v3012
      %v3014 = vpop.f32.mrb[0].mxu0
      %v3015 = vpop.f32.mrb[0].mxu0
      %v3016 = vadd.f32 %v2681, %v3015
      %v3017 = vpop.f32.mrb[0].mxu0
      %3018 = vdwg.mxu0
      %v3019 = vxor.u32 %v2765, 2147483648
      %v3020 = vxor.u32 %v2768, 2147483648
      %v3021 = vxor.u32 %v2773, 2147483648
      %v3022 = vxor.u32 %v2776, 2147483648
      %v3023 = vxor.u32 %v2781, 2147483648
      %v3024 = vxor.u32 %v2784, 2147483648
      %v3025 = vxor.u32 %v2789, 2147483648
      %v3026 = vxor.u32 %v2792, 2147483648
      %v3027 = vxor.u32 %v2797, 2147483648
      %v3028 = vxor.u32 %v2800, 2147483648
      %v3029 = vxor.u32 %v2805, 2147483648
      %v3030 = vxor.u32 %v2808, 2147483648
      %v3031 = vxor.u32 %v2813, 2147483648
      %v3032 = vxor.u32 %v2816, 2147483648
      %v3033 = vxor.u32 %v2821, 2147483648
      %v3034 = vxor.u32 %v2824, 2147483648
      %v3035 = vxor.u32 %v2829, 2147483648
      %v3036 = vxor.u32 %v2832, 2147483648
      %v3037 = vxor.u32 %v2837, 2147483648
      %v3038 = vxor.u32 %v2840, 2147483648
      %v3039 = vxor.u32 %v2845, 2147483648
      %v3040 = vxor.u32 %v2848, 2147483648
      %v3041 = vxor.u32 %v2853, 2147483648
      %v3042 = vxor.u32 %v2856, 2147483648
      %v3043 = vxor.u32 %v2861, 2147483648
      %v3044 = vxor.u32 %v2864, 2147483648
      %v3045 = vxor.u32 %v2869, 2147483648
      %v3046 = vxor.u32 %v2872, 2147483648
      %v3047 = vxor.u32 %v2877, 2147483648
      %v3048 = vxor.u32 %v2880, 2147483648
      %v3049 = vxor.u32 %v2885, 2147483648
      %v3050 = vxor.u32 %v2888, 2147483648
      %v3051 = vxor.u32 %v2893, 2147483648
      %v3052 = vxor.u32 %v2896, 2147483648
      %v3053 = vxor.u32 %v2901, 2147483648
      %v3054 = vxor.u32 %v2904, 2147483648
      %v3055 = vxor.u32 %v2909, 2147483648
      %v3056 = vxor.u32 %v2912, 2147483648
      %v3057 = vxor.u32 %v2917, 2147483648
      %v3058 = vxor.u32 %v2920, 2147483648
      %v3059 = vxor.u32 %v2925, 2147483648
      %v3060 = vxor.u32 %v2928, 2147483648
      %v3061 = vxor.u32 %v2933, 2147483648
      %v3062 = vxor.u32 %v2936, 2147483648
      %v3063 = vxor.u32 %v2941, 2147483648
      %v3064 = vxor.u32 %v2944, 2147483648
      %v3065 = vxor.u32 %v2949, 2147483648
      %v3066 = vxor.u32 %v2952, 2147483648
      %v3067 = vxor.u32 %v2957, 2147483648
      %v3068 = vxor.u32 %v2960, 2147483648
      %v3069 = vxor.u32 %v2965, 2147483648
      %v3070 = vxor.u32 %v2968, 2147483648
      %v3071 = vxor.u32 %v2973, 2147483648
      %v3072 = vxor.u32 %v2976, 2147483648
      %v3073 = vxor.u32 %v2981, 2147483648
      %v3074 = vxor.u32 %v2984, 2147483648
      %v3075 = vxor.u32 %v2989, 2147483648
      %v3076 = vxor.u32 %v2992, 2147483648
      %v3077 = vxor.u32 %v2997, 2147483648
      %v3078 = vxor.u32 %v3000, 2147483648
      %v3079 = vxor.u32 %v3005, 2147483648
      %v3080 = vxor.u32 %v3008, 2147483648
      %v3081 = vxor.u32 %v3013, 2147483648
      %v3082 = vxor.u32 %v3016, 2147483648
      %v3083 = vmul.f32 %v3019, 1.442695
      %v3084 = vpow.pop %v3083
      %v3085 = vmul.f32 %v3020, 1.442695
      %v3086 = vpow.pop %v3085
      %v3087 = vmul.f32 %v3021, 1.442695
      %v3088 = vpow.pop %v3087
      %v3089 = vmul.f32 %v3022, 1.442695
      %v3090 = vpow.pop %v3089
      %v3091 = vmul.f32 %v3023, 1.442695
      %v3092 = vpow.pop %v3091
      %v3093 = vmul.f32 %v3024, 1.442695
      %v3094 = vpow.pop %v3093
      %v3095 = vmul.f32 %v3025, 1.442695
      %v3096 = vpow.pop %v3095
      %v3097 = vmul.f32 %v3026, 1.442695
      %v3098 = vpow.pop %v3097
      %v3099 = vmul.f32 %v3027, 1.442695
      %v3100 = vpow.pop %v3099
      %v3101 = vmul.f32 %v3028, 1.442695
      %v3102 = vpow.pop %v3101
      %v3103 = vmul.f32 %v3029, 1.442695
      %v3104 = vpow.pop %v3103
      %v3105 = vmul.f32 %v3030, 1.442695
      %v3106 = vpow.pop %v3105
      %v3107 = vmul.f32 %v3031, 1.442695
      %v3108 = vpow.pop %v3107
      %v3109 = vmul.f32 %v3032, 1.442695
      %v3110 = vpow.pop %v3109
      %v3111 = vmul.f32 %v3033, 1.442695
      %v3112 = vpow.pop %v3111
      %v3113 = vmul.f32 %v3034, 1.442695
      %v3114 = vpow.pop %v3113
      %v3115 = vmul.f32 %v3035, 1.442695
      %v3116 = vpow.pop %v3115
      %v3117 = vmul.f32 %v3036, 1.442695
      %v3118 = vpow.pop %v3117
      %v3119 = vmul.f32 %v3037, 1.442695
      %v3120 = vpow.pop %v3119
      %v3121 = vmul.f32 %v3038, 1.442695
      %v3122 = vpow.pop %v3121
      %v3123 = vmul.f32 %v3039, 1.442695
      %v3124 = vpow.pop %v3123
      %v3125 = vmul.f32 %v3040, 1.442695
      %v3126 = vpow.pop %v3125
      %v3127 = vmul.f32 %v3041, 1.442695
      %v3128 = vpow.pop %v3127
      %v3129 = vmul.f32 %v3042, 1.442695
      %v3130 = vpow.pop %v3129
      %v3131 = vmul.f32 %v3043, 1.442695
      %v3132 = vpow.pop %v3131
      %v3133 = vmul.f32 %v3044, 1.442695
      %v3134 = vpow.pop %v3133
      %v3135 = vmul.f32 %v3045, 1.442695
      %v3136 = vpow.pop %v3135
      %v3137 = vmul.f32 %v3046, 1.442695
      %v3138 = vpow.pop %v3137
      %v3139 = vmul.f32 %v3047, 1.442695
      %v3140 = vpow.pop %v3139
      %v3141 = vmul.f32 %v3048, 1.442695
      %v3142 = vpow.pop %v3141
      %v3143 = vmul.f32 %v3049, 1.442695
      %v3144 = vpow.pop %v3143
      %v3145 = vmul.f32 %v3050, 1.442695
      %v3146 = vpow.pop %v3145
      %v3147 = vmul.f32 %v3051, 1.442695
      %v3148 = vpow.pop %v3147
      %v3149 = vmul.f32 %v3052, 1.442695
      %v3150 = vpow.pop %v3149
      %v3151 = vmul.f32 %v3053, 1.442695
      %v3152 = vpow.pop %v3151
      %v3153 = vmul.f32 %v3054, 1.442695
      %v3154 = vpow.pop %v3153
      %v3155 = vmul.f32 %v3055, 1.442695
      %v3156 = vpow.pop %v3155
      %v3157 = vmul.f32 %v3056, 1.442695
      %v3158 = vpow.pop %v3157
      %v3159 = vmul.f32 %v3057, 1.442695
      %v3160 = vpow.pop %v3159
      %v3161 = vmul.f32 %v3058, 1.442695
      %v3162 = vpow.pop %v3161
      %v3163 = vmul.f32 %v3059, 1.442695
      %v3164 = vpow.pop %v3163
      %v3165 = vmul.f32 %v3060, 1.442695
      %v3166 = vpow.pop %v3165
      %v3167 = vmul.f32 %v3061, 1.442695
      %v3168 = vpow.pop %v3167
      %v3169 = vmul.f32 %v3062, 1.442695
      %v3170 = vpow.pop %v3169
      %v3171 = vmul.f32 %v3063, 1.442695
      %v3172 = vpow.pop %v3171
      %v3173 = vmul.f32 %v3064, 1.442695
      %v3174 = vpow.pop %v3173
      %v3175 = vmul.f32 %v3065, 1.442695
      %v3176 = vpow.pop %v3175
      %v3177 = vmul.f32 %v3066, 1.442695
      %v3178 = vpow.pop %v3177
      %v3179 = vmul.f32 %v3067, 1.442695
      %v3180 = vpow.pop %v3179
      %v3181 = vmul.f32 %v3068, 1.442695
      %v3182 = vpow.pop %v3181
      %v3183 = vmul.f32 %v3069, 1.442695
      %v3184 = vpow.pop %v3183
      %v3185 = vmul.f32 %v3070, 1.442695
      %v3186 = vpow.pop %v3185
      %v3187 = vmul.f32 %v3071, 1.442695
      %v3188 = vpow.pop %v3187
      %v3189 = vmul.f32 %v3072, 1.442695
      %v3190 = vpow.pop %v3189
      %v3191 = vmul.f32 %v3073, 1.442695
      %v3192 = vpow.pop %v3191
      %v3193 = vmul.f32 %v3074, 1.442695
      %v3194 = vpow.pop %v3193
      %v3195 = vmul.f32 %v3075, 1.442695
      %v3196 = vpow.pop %v3195
      %v3197 = vmul.f32 %v3076, 1.442695
      %v3198 = vpow.pop %v3197
      %v3199 = vmul.f32 %v3077, 1.442695
      %v3200 = vpow.pop %v3199
      %v3201 = vmul.f32 %v3078, 1.442695
      %v3202 = vpow.pop %v3201
      %v3203 = vmul.f32 %v3079, 1.442695
      %v3204 = vpow.pop %v3203
      %v3205 = vmul.f32 %v3080, 1.442695
      %v3206 = vpow.pop %v3205
      %v3207 = vmul.f32 %v3081, 1.442695
      %v3208 = vpow.pop %v3207
      %v3209 = vmul.f32 %v3082, 1.442695
      %v3210 = vpow.pop %v3209
      %v3211 = vadd.f32 %v3084, 1.0
      %v3212 = vadd.f32 %v3086, 1.0
      %v3213 = vadd.f32 %v3088, 1.0
      %v3214 = vadd.f32 %v3090, 1.0
      %v3215 = vadd.f32 %v3092, 1.0
      %v3216 = vadd.f32 %v3094, 1.0
      %v3217 = vadd.f32 %v3096, 1.0
      %v3218 = vadd.f32 %v3098, 1.0
      %v3219 = vadd.f32 %v3100, 1.0
      %v3220 = vadd.f32 %v3102, 1.0
      %v3221 = vadd.f32 %v3104, 1.0
      %v3222 = vadd.f32 %v3106, 1.0
      %v3223 = vadd.f32 %v3108, 1.0
      %v3224 = vadd.f32 %v3110, 1.0
      %v3225 = vadd.f32 %v3112, 1.0
      %v3226 = vadd.f32 %v3114, 1.0
      %v3227 = vadd.f32 %v3116, 1.0
      %v3228 = vadd.f32 %v3118, 1.0
      %v3229 = vadd.f32 %v3120, 1.0
      %v3230 = vadd.f32 %v3122, 1.0
      %v3231 = vadd.f32 %v3124, 1.0
      %v3232 = vadd.f32 %v3126, 1.0
      %v3233 = vadd.f32 %v3128, 1.0
      %v3234 = vadd.f32 %v3130, 1.0
      %v3235 = vadd.f32 %v3132, 1.0
      %v3236 = vadd.f32 %v3134, 1.0
      %v3237 = vadd.f32 %v3136, 1.0
      %v3238 = vadd.f32 %v3138, 1.0
      %v3239 = vadd.f32 %v3140, 1.0
      %v3240 = vadd.f32 %v3142, 1.0
      %v3241 = vadd.f32 %v3144, 1.0
      %v3242 = vadd.f32 %v3146, 1.0
      %v3243 = vadd.f32 %v3148, 1.0
      %v3244 = vadd.f32 %v3150, 1.0
      %v3245 = vadd.f32 %v3152, 1.0
      %v3246 = vadd.f32 %v3154, 1.0
      %v3247 = vadd.f32 %v3156, 1.0
      %v3248 = vadd.f32 %v3158, 1.0
      %v3249 = vadd.f32 %v3160, 1.0
      %v3250 = vadd.f32 %v3162, 1.0
      %v3251 = vadd.f32 %v3164, 1.0
      %v3252 = vadd.f32 %v3166, 1.0
      %v3253 = vadd.f32 %v3168, 1.0
      %v3254 = vadd.f32 %v3170, 1.0
      %v3255 = vadd.f32 %v3172, 1.0
      %v3256 = vadd.f32 %v3174, 1.0
      %v3257 = vadd.f32 %v3176, 1.0
      %v3258 = vadd.f32 %v3178, 1.0
      %v3259 = vadd.f32 %v3180, 1.0
      %v3260 = vadd.f32 %v3182, 1.0
      %v3261 = vadd.f32 %v3184, 1.0
      %v3262 = vadd.f32 %v3186, 1.0
      %v3263 = vadd.f32 %v3188, 1.0
      %v3264 = vadd.f32 %v3190, 1.0
      %v3265 = vadd.f32 %v3192, 1.0
      %v3266 = vadd.f32 %v3194, 1.0
      %v3267 = vadd.f32 %v3196, 1.0
      %v3268 = vadd.f32 %v3198, 1.0
      %v3269 = vadd.f32 %v3200, 1.0
      %v3270 = vadd.f32 %v3202, 1.0
      %v3271 = vadd.f32 %v3204, 1.0
      %v3272 = vadd.f32 %v3206, 1.0
      %v3273 = vadd.f32 %v3208, 1.0
      %v3274 = vadd.f32 %v3210, 1.0
      %v3275 = vrcp.pop %v3211
      %v3276 = vmul.f32 1.0, %v3275
      %v3277 = vrcp.pop %v3212
      %v3278 = vmul.f32 1.0, %v3277
      %v3279 = vrcp.pop %v3213
      %v3280 = vmul.f32 1.0, %v3279
      %v3281 = vrcp.pop %v3214
      %v3282 = vmul.f32 1.0, %v3281
      %v3283 = vrcp.pop %v3215
      %v3284 = vmul.f32 1.0, %v3283
      %v3285 = vrcp.pop %v3216
      %v3286 = vmul.f32 1.0, %v3285
      %v3287 = vrcp.pop %v3217
      %v3288 = vmul.f32 1.0, %v3287
      %v3289 = vrcp.pop %v3218
      %v3290 = vmul.f32 1.0, %v3289
      %v3291 = vrcp.pop %v3219
      %v3292 = vmul.f32 1.0, %v3291
      %v3293 = vrcp.pop %v3220
      %v3294 = vmul.f32 1.0, %v3293
      %v3295 = vrcp.pop %v3221
      %v3296 = vmul.f32 1.0, %v3295
      %v3297 = vrcp.pop %v3222
      %v3298 = vmul.f32 1.0, %v3297
      %v3299 = vrcp.pop %v3223
      %v3300 = vmul.f32 1.0, %v3299
      %v3301 = vrcp.pop %v3224
      %v3302 = vmul.f32 1.0, %v3301
      %v3303 = vrcp.pop %v3225
      %v3304 = vmul.f32 1.0, %v3303
      %v3305 = vrcp.pop %v3226
      %v3306 = vmul.f32 1.0, %v3305
      %v3307 = vrcp.pop %v3227
      %v3308 = vmul.f32 1.0, %v3307
      %v3309 = vrcp.pop %v3228
      %v3310 = vmul.f32 1.0, %v3309
      %v3311 = vrcp.pop %v3229
      %v3312 = vmul.f32 1.0, %v3311
      %v3313 = vrcp.pop %v3230
      %v3314 = vmul.f32 1.0, %v3313
      %v3315 = vrcp.pop %v3231
      %v3316 = vmul.f32 1.0, %v3315
      %v3317 = vrcp.pop %v3232
      %v3318 = vmul.f32 1.0, %v3317
      %v3319 = vrcp.pop %v3233
      %v3320 = vmul.f32 1.0, %v3319
      %v3321 = vrcp.pop %v3234
      %v3322 = vmul.f32 1.0, %v3321
      %v3323 = vrcp.pop %v3235
      %v3324 = vmul.f32 1.0, %v3323
      %v3325 = vrcp.pop %v3236
      %v3326 = vmul.f32 1.0, %v3325
      %v3327 = vrcp.pop %v3237
      %v3328 = vmul.f32 1.0, %v3327
      %v3329 = vrcp.pop %v3238
      %v3330 = vmul.f32 1.0, %v3329
      %v3331 = vrcp.pop %v3239
      %v3332 = vmul.f32 1.0, %v3331
      %v3333 = vrcp.pop %v3240
      %v3334 = vmul.f32 1.0, %v3333
      %v3335 = vrcp.pop %v3241
      %v3336 = vmul.f32 1.0, %v3335
      %v3337 = vrcp.pop %v3242
      %v3338 = vmul.f32 1.0, %v3337
      %v3339 = vrcp.pop %v3243
      %v3340 = vmul.f32 1.0, %v3339
      %v3341 = vrcp.pop %v3244
      %v3342 = vmul.f32 1.0, %v3341
      %v3343 = vrcp.pop %v3245
      %v3344 = vmul.f32 1.0, %v3343
      %v3345 = vrcp.pop %v3246
      %v3346 = vmul.f32 1.0, %v3345
      %v3347 = vrcp.pop %v3247
      %v3348 = vmul.f32 1.0, %v3347
      %v3349 = vrcp.pop %v3248
      %v3350 = vmul.f32 1.0, %v3349
      %v3351 = vrcp.pop %v3249
      %v3352 = vmul.f32 1.0, %v3351
      %v3353 = vrcp.pop %v3250
      %v3354 = vmul.f32 1.0, %v3353
      %v3355 = vrcp.pop %v3251
      %v3356 = vmul.f32 1.0, %v3355
      %v3357 = vrcp.pop %v3252
      %v3358 = vmul.f32 1.0, %v3357
      %v3359 = vrcp.pop %v3253
      %v3360 = vmul.f32 1.0, %v3359
      %v3361 = vrcp.pop %v3254
      %v3362 = vmul.f32 1.0, %v3361
      %v3363 = vrcp.pop %v3255
      %v3364 = vmul.f32 1.0, %v3363
      %v3365 = vrcp.pop %v3256
      %v3366 = vmul.f32 1.0, %v3365
      %v3367 = vrcp.pop %v3257
      %v3368 = vmul.f32 1.0, %v3367
      %v3369 = vrcp.pop %v3258
      %v3370 = vmul.f32 1.0, %v3369
      %v3371 = vrcp.pop %v3259
      %v3372 = vmul.f32 1.0, %v3371
      %v3373 = vrcp.pop %v3260
      %v3374 = vmul.f32 1.0, %v3373
      %v3375 = vrcp.pop %v3261
      %v3376 = vmul.f32 1.0, %v3375
      %v3377 = vrcp.pop %v3262
      %v3378 = vmul.f32 1.0, %v3377
      %v3379 = vrcp.pop %v3263
      %v3380 = vmul.f32 1.0, %v3379
      %v3381 = vrcp.pop %v3264
      %v3382 = vmul.f32 1.0, %v3381
      %v3383 = vrcp.pop %v3265
      %v3384 = vmul.f32 1.0, %v3383
      %v3385 = vrcp.pop %v3266
      %v3386 = vmul.f32 1.0, %v3385
      %v3387 = vrcp.pop %v3267
      %v3388 = vmul.f32 1.0, %v3387
      %v3389 = vrcp.pop %v3268
      %v3390 = vmul.f32 1.0, %v3389
      %v3391 = vrcp.pop %v3269
      %v3392 = vmul.f32 1.0, %v3391
      %v3393 = vrcp.pop %v3270
      %v3394 = vmul.f32 1.0, %v3393
      %v3395 = vrcp.pop %v3271
      %v3396 = vmul.f32 1.0, %v3395
      %v3397 = vrcp.pop %v3272
      %v3398 = vmul.f32 1.0, %v3397
      %v3399 = vrcp.pop %v3273
      %v3400 = vmul.f32 1.0, %v3399
      %v3401 = vrcp.pop %v3274
      %v3402 = vmul.f32 1.0, %v3401
      %v3403 = vpack.c.bf16 %v3278, %v3276
      %v3404 = vpack.c.bf16 %v3282, %v3280
      %v3405 = vpack.c.bf16 %v3286, %v3284
      %v3406 = vpack.c.bf16 %v3290, %v3288
      %v3407 = vpack.c.bf16 %v3294, %v3292
      %v3408 = vpack.c.bf16 %v3298, %v3296
      %v3409 = vpack.c.bf16 %v3302, %v3300
      %v3410 = vpack.c.bf16 %v3306, %v3304
      %v3411 = vpack.c.bf16 %v3310, %v3308
      %v3412 = vpack.c.bf16 %v3314, %v3312
      %v3413 = vpack.c.bf16 %v3318, %v3316
      %v3414 = vpack.c.bf16 %v3322, %v3320
      %v3415 = vpack.c.bf16 %v3326, %v3324
      %v3416 = vpack.c.bf16 %v3330, %v3328
      %v3417 = vpack.c.bf16 %v3334, %v3332
      %v3418 = vpack.c.bf16 %v3338, %v3336
      %v3419 = vpack.c.bf16 %v3342, %v3340
      %v3420 = vpack.c.bf16 %v3346, %v3344
      %v3421 = vpack.c.bf16 %v3350, %v3348
      %v3422 = vpack.c.bf16 %v3354, %v3352
      %v3423 = vpack.c.bf16 %v3358, %v3356
      %v3424 = vpack.c.bf16 %v3362, %v3360
      %v3425 = vpack.c.bf16 %v3366, %v3364
      %v3426 = vpack.c.bf16 %v3370, %v3368
      %v3427 = vpack.c.bf16 %v3374, %v3372
      %v3428 = vpack.c.bf16 %v3378, %v3376
      %v3429 = vpack.c.bf16 %v3382, %v3380
      %v3430 = vpack.c.bf16 %v3386, %v3384
      %v3431 = vpack.c.bf16 %v3390, %v3388
      %v3432 = vpack.c.bf16 %v3394, %v3392
      %v3433 = vpack.c.bf16 %v3398, %v3396
      %v3434 = vpack.c.bf16 %v3402, %v3400
      %v3467 = vunpack.c.l.b16 %v3403
      %v3468 = vunpack.c.h.b16 %v3403
      %v3469 = vunpack.c.l.b16 %v3404
      %v3470 = vunpack.c.h.b16 %v3404
      %v3471 = vunpack.c.l.b16 %v3405
      %v3472 = vunpack.c.h.b16 %v3405
      %v3473 = vunpack.c.l.b16 %v3406
      %v3474 = vunpack.c.h.b16 %v3406
      %v3475 = vunpack.c.l.b16 %v3407
      %v3476 = vunpack.c.h.b16 %v3407
      %v3477 = vunpack.c.l.b16 %v3408
      %v3478 = vunpack.c.h.b16 %v3408
      %v3479 = vunpack.c.l.b16 %v3409
      %v3480 = vunpack.c.h.b16 %v3409
      %v3481 = vunpack.c.l.b16 %v3410
      %v3482 = vunpack.c.h.b16 %v3410
      %v3483 = vunpack.c.l.b16 %v3411
      %v3484 = vunpack.c.h.b16 %v3411
      %v3485 = vunpack.c.l.b16 %v3412
      %v3486 = vunpack.c.h.b16 %v3412
      %v3487 = vunpack.c.l.b16 %v3413
      %v3488 = vunpack.c.h.b16 %v3413
      %v3489 = vunpack.c.l.b16 %v3414
      %v3490 = vunpack.c.h.b16 %v3414
      %v3491 = vunpack.c.l.b16 %v3415
      %v3492 = vunpack.c.h.b16 %v3415
      %v3493 = vunpack.c.l.b16 %v3416
      %v3494 = vunpack.c.h.b16 %v3416
      %v3495 = vunpack.c.l.b16 %v3417
      %v3496 = vunpack.c.h.b16 %v3417
      %v3497 = vunpack.c.l.b16 %v3418
      %v3498 = vunpack.c.h.b16 %v3418
      %v3499 = vunpack.c.l.b16 %v3419
      %v3500 = vunpack.c.h.b16 %v3419
      %v3501 = vunpack.c.l.b16 %v3420
      %v3502 = vunpack.c.h.b16 %v3420
      %v3503 = vunpack.c.l.b16 %v3421
      %v3504 = vunpack.c.h.b16 %v3421
      %v3505 = vunpack.c.l.b16 %v3422
      %v3506 = vunpack.c.h.b16 %v3422
      %v3507 = vunpack.c.l.b16 %v3423
      %v3508 = vunpack.c.h.b16 %v3423
      %v3509 = vunpack.c.l.b16 %v3424
      %v3510 = vunpack.c.h.b16 %v3424
      %v3511 = vunpack.c.l.b16 %v3425
      %v3512 = vunpack.c.h.b16 %v3425
      %v3513 = vunpack.c.l.b16 %v3426
      %v3514 = vunpack.c.h.b16 %v3426
      %v3515 = vunpack.c.l.b16 %v3427
      %v3516 = vunpack.c.h.b16 %v3427
      %v3517 = vunpack.c.l.b16 %v3428
      %v3518 = vunpack.c.h.b16 %v3428
      %v3519 = vunpack.c.l.b16 %v3429
      %v3520 = vunpack.c.h.b16 %v3429
      %v3521 = vunpack.c.l.b16 %v3430
      %v3522 = vunpack.c.h.b16 %v3430
      %v3523 = vunpack.c.l.b16 %v3431
      %v3524 = vunpack.c.h.b16 %v3431
      %v3525 = vunpack.c.l.b16 %v3432
      %v3526 = vunpack.c.h.b16 %v3432
      %v3527 = vunpack.c.l.b16 %v3433
      %v3528 = vunpack.c.h.b16 %v3433
      %v3529 = vunpack.c.l.b16 %v3434
      %v3530 = vunpack.c.h.b16 %v3434
      %v3531 = vpack.c.b16 %v3467, %v3467
      %v3532 = vpack.c.b16 %v3468, %v3468
      %v3533 = vpack.c.b16 %v3469, %v3469
      %v3534 = vpack.c.b16 %v3470, %v3470
      %v3535 = vpack.c.b16 %v3471, %v3471
      %v3536 = vpack.c.b16 %v3472, %v3472
      %v3537 = vpack.c.b16 %v3473, %v3473
      %v3538 = vpack.c.b16 %v3474, %v3474
      %v3539 = vpack.c.b16 %v3475, %v3475
      %v3540 = vpack.c.b16 %v3476, %v3476
      %v3541 = vpack.c.b16 %v3477, %v3477
      %v3542 = vpack.c.b16 %v3478, %v3478
      %v3543 = vpack.c.b16 %v3479, %v3479
      %v3544 = vpack.c.b16 %v3480, %v3480
      %v3545 = vpack.c.b16 %v3481, %v3481
      %v3546 = vpack.c.b16 %v3482, %v3482
      %v3547 = vpack.c.b16 %v3483, %v3483
      %v3548 = vpack.c.b16 %v3484, %v3484
      %v3549 = vpack.c.b16 %v3485, %v3485
      %v3550 = vpack.c.b16 %v3486, %v3486
      %v3551 = vpack.c.b16 %v3487, %v3487
      %v3552 = vpack.c.b16 %v3488, %v3488
      %v3553 = vpack.c.b16 %v3489, %v3489
      %v3554 = vpack.c.b16 %v3490, %v3490
      %v3555 = vpack.c.b16 %v3491, %v3491
      %v3556 = vpack.c.b16 %v3492, %v3492
      %v3557 = vpack.c.b16 %v3493, %v3493
      %v3558 = vpack.c.b16 %v3494, %v3494
      %v3559 = vpack.c.b16 %v3495, %v3495
      %v3560 = vpack.c.b16 %v3496, %v3496
      %v3561 = vpack.c.b16 %v3497, %v3497
      %v3562 = vpack.c.b16 %v3498, %v3498
      %v3563 = vpack.c.b16 %v3499, %v3499
      %v3564 = vpack.c.b16 %v3500, %v3500
      %v3565 = vpack.c.b16 %v3501, %v3501
      %v3566 = vpack.c.b16 %v3502, %v3502
      %v3567 = vpack.c.b16 %v3503, %v3503
      %v3568 = vpack.c.b16 %v3504, %v3504
      %v3569 = vpack.c.b16 %v3505, %v3505
      %v3570 = vpack.c.b16 %v3506, %v3506
      %v3571 = vpack.c.b16 %v3507, %v3507
      %v3572 = vpack.c.b16 %v3508, %v3508
      %v3573 = vpack.c.b16 %v3509, %v3509
      %v3574 = vpack.c.b16 %v3510, %v3510
      %v3575 = vpack.c.b16 %v3511, %v3511
      %v3576 = vpack.c.b16 %v3512, %v3512
      %v3577 = vpack.c.b16 %v3513, %v3513
      %v3578 = vpack.c.b16 %v3514, %v3514
      %v3579 = vpack.c.b16 %v3515, %v3515
      %v3580 = vpack.c.b16 %v3516, %v3516
      %v3581 = vpack.c.b16 %v3517, %v3517
      %v3582 = vpack.c.b16 %v3518, %v3518
      %v3583 = vpack.c.b16 %v3519, %v3519
      %v3584 = vpack.c.b16 %v3520, %v3520
      %v3585 = vpack.c.b16 %v3521, %v3521
      %v3586 = vpack.c.b16 %v3522, %v3522
      %v3587 = vpack.c.b16 %v3523, %v3523
      %v3588 = vpack.c.b16 %v3524, %v3524
      %v3589 = vpack.c.b16 %v3525, %v3525
      %v3590 = vpack.c.b16 %v3526, %v3526
      %v3591 = vpack.c.b16 %v3527, %v3527
      %v3592 = vpack.c.b16 %v3528, %v3528
      %v3593 = vpack.c.b16 %v3529, %v3529
      %v3594 = vpack.c.b16 %v3530, %v3530
      %3659 = vst [vmem:[%s307] sm:$0xf] %v3531
      %3660 = vst [vmem:[%s307 + $0x4] sm:$0xf] %v3532
      %3661 = vst [vmem:[%s307 + $0x8] sm:$0xf] %v3533
      %3662 = vst [vmem:[%s307 + $0xc] sm:$0xf] %v3534
      %3663 = vst [vmem:[%s307 + $0x10] sm:$0xf] %v3535
      %3664 = vst [vmem:[%s307 + $0x14] sm:$0xf] %v3536
      %3665 = vst [vmem:[%s307 + $0x18] sm:$0xf] %v3537
      %3666 = vst [vmem:[%s307 + $0x1c] sm:$0xf] %v3538
      %3667 = vst [vmem:[%s307 + $0x20] sm:$0xf] %v3539
      %3668 = vst [vmem:[%s307 + $0x24] sm:$0xf] %v3540
      %3669 = vst [vmem:[%s307 + $0x28] sm:$0xf] %v3541
      %3670 = vst [vmem:[%s307 + $0x2c] sm:$0xf] %v3542
      %3671 = vst [vmem:[%s307 + $0x30] sm:$0xf] %v3543
      %3672 = vst [vmem:[%s307 + $0x34] sm:$0xf] %v3544
      %3673 = vst [vmem:[%s307 + $0x38] sm:$0xf] %v3545
      %3674 = vst [vmem:[%s307 + $0x3c] sm:$0xf] %v3546
      %3675 = vst [vmem:[%s307 + $0x40] sm:$0xf] %v3547
      %3676 = vst [vmem:[%s307 + $0x44] sm:$0xf] %v3548
      %3677 = vst [vmem:[%s307 + $0x48] sm:$0xf] %v3549
      %3678 = vst [vmem:[%s307 + $0x4c] sm:$0xf] %v3550
      %3679 = vst [vmem:[%s307 + $0x50] sm:$0xf] %v3551
      %3680 = vst [vmem:[%s307 + $0x54] sm:$0xf] %v3552
      %3681 = vst [vmem:[%s307 + $0x58] sm:$0xf] %v3553
      %3682 = vst [vmem:[%s307 + $0x5c] sm:$0xf] %v3554
      %3683 = vst [vmem:[%s307 + $0x60] sm:$0xf] %v3555
      %3684 = vst [vmem:[%s307 + $0x64] sm:$0xf] %v3556
      %3685 = vst [vmem:[%s307 + $0x68] sm:$0xf] %v3557
      %3686 = vst [vmem:[%s307 + $0x6c] sm:$0xf] %v3558
      %3687 = vst [vmem:[%s307 + $0x70] sm:$0xf] %v3559
      %3688 = vst [vmem:[%s307 + $0x74] sm:$0xf] %v3560
      %3689 = vst [vmem:[%s307 + $0x78] sm:$0xf] %v3561
      %3690 = vst [vmem:[%s307 + $0x7c] sm:$0xf] %v3562
      %3691 = vst [vmem:[%s307 + $0x80] sm:$0xf] %v3563
      %3692 = vst [vmem:[%s307 + $0x84] sm:$0xf] %v3564
      %3693 = vst [vmem:[%s307 + $0x88] sm:$0xf] %v3565
      %3694 = vst [vmem:[%s307 + $0x8c] sm:$0xf] %v3566
      %3695 = vst [vmem:[%s307 + $0x90] sm:$0xf] %v3567
      %3696 = vst [vmem:[%s307 + $0x94] sm:$0xf] %v3568
      %3697 = vst [vmem:[%s307 + $0x98] sm:$0xf] %v3569
      %3698 = vst [vmem:[%s307 + $0x9c] sm:$0xf] %v3570
      %3699 = vst [vmem:[%s307 + $0xa0] sm:$0xf] %v3571
      %3700 = vst [vmem:[%s307 + $0xa4] sm:$0xf] %v3572
      %3701 = vst [vmem:[%s307 + $0xa8] sm:$0xf] %v3573
      %3702 = vst [vmem:[%s307 + $0xac] sm:$0xf] %v3574
      %3703 = vst [vmem:[%s307 + $0xb0] sm:$0xf] %v3575
      %3704 = vst [vmem:[%s307 + $0xb4] sm:$0xf] %v3576
      %3705 = vst [vmem:[%s307 + $0xb8] sm:$0xf] %v3577
      %3706 = vst [vmem:[%s307 + $0xbc] sm:$0xf] %v3578
      %3707 = vst [vmem:[%s307 + $0xc0] sm:$0xf] %v3579
      %3708 = vst [vmem:[%s307 + $0xc4] sm:$0xf] %v3580
      %3709 = vst [vmem:[%s307 + $0xc8] sm:$0xf] %v3581
      %3710 = vst [vmem:[%s307 + $0xcc] sm:$0xf] %v3582
      %3711 = vst [vmem:[%s307 + $0xd0] sm:$0xf] %v3583
      %3712 = vst [vmem:[%s307 + $0xd4] sm:$0xf] %v3584
      %3713 = vst [vmem:[%s307 + $0xd8] sm:$0xf] %v3585
      %3714 = vst [vmem:[%s307 + $0xdc] sm:$0xf] %v3586
      %3715 = vst [vmem:[%s307 + $0xe0] sm:$0xf] %v3587
      %3716 = vst [vmem:[%s307 + $0xe4] sm:$0xf] %v3588
      %3717 = vst [vmem:[%s307 + $0xe8] sm:$0xf] %v3589
      %3718 = vst [vmem:[%s307 + $0xec] sm:$0xf] %v3590
      %3719 = vst [vmem:[%s307 + $0xf0] sm:$0xf] %v3591
      %3720 = vst [vmem:[%s307 + $0xf4] sm:$0xf] %v3592
      %3721 = vst [vmem:[%s307 + $0xf8] sm:$0xf] %v3593
      %3722 = vst [vmem:[%s307 + $0xfc] sm:$0xf] %v3594
      %s3723 = smul.u32 64, %s19
      %p3724 = scmp.lt.s32.totalorder %s3723, 127
      %s3725 = scalar_select %p3724, %s3723, 127
      %s3726 = smul.addr %s3725, 4
      %s3727 = scalar_lea.vmem %s8, %s3726
      // Predicated region
      $region53: #{autoencoder_forward.1} parent=51 // pred_check
        %p3728 = pneg %p210
      $region54: #{autoencoder_forward.1} parent=51 // pred_check_branch
        %3730 = sbr.rel (%p3728) target = $region56
      $region55: #{autoencoder_forward.1} parent=51 // pred_region
        %s3731 = smul.u32 64, %s19
      $region56: #{autoencoder_forward.1} parent=51 // pred_fallthru
        _
    $region52: #{autoencoder_forward.1} parent=5 // pred_fallthru
      _
    %p3732 = scmp.le.s32.totalorder 2, %s14
    // Predicated region
    $region57: #{autoencoder_forward.1} parent=5 // pred_check
      %p3733 = pneg %p3732
    $region58: #{autoencoder_forward.1} parent=5 // pred_check_branch
      %3735 = sbr.rel (%p3733) target = $region60
    $region59: #{autoencoder_forward.1} parent=5 // pred_region
      %s3736 = ssub.s32 %s14, 2
      // Predicated region
      $region61: #{autoencoder_forward.1} parent=59 // pred_check
        %p3737 = pneg %p216
      $region62: #{autoencoder_forward.1} parent=59 // pred_check_branch
        %3739 = sbr.rel (%p3737) target = $region64
      $region63: #{autoencoder_forward.1} parent=59 // pred_region
        %s3740 = smul.u32 64, %s20
        %p3741 = scmp.lt.s32.totalorder %s3740, 127
        %s3742 = scalar_select %p3741, %s3740, 127
        %s3743 = smul.addr %s3742, 4
        %s3744 = scalar_lea.vmem %s8, %s3743
      $region64: #{autoencoder_forward.1} parent=59 // pred_fallthru
        _
    $region60: #{autoencoder_forward.1} parent=5 // pred_fallthru
      _
  $region6: #{autoencoder_forward.1} parent=0 // loop_footer
    %s18 = sadd.s32 1, %s14
  $region7: #{autoencoder_forward.1} parent=0 // loop_footer_branch
    %13 = sbr.rel target = $region3
  $region8: #{autoencoder_forward.1} parent=0 // loop_exit
    _

</llo_original>
